<compile_context>
chip_gen: v6e
topology: v6e:2x2x1
jax: 0.10.0
libtpu: 0.0.40
codegen_flags: <defaults>
</compile_context>

<pallas_src>
import functools

import jax
import jax.numpy as jnp
from jax.experimental import pallas as pl
from jax.experimental.pallas import tpu as pltpu


_K = 3        # conv kernel size (stand-in backbone conv, padding=1, stride=1)
_KPAD = 128   # contraction depth after zero-padding (K*K*Cp = 72 -> 128)


def _vmem_cap_bytes():
    try:
        return int(pltpu.get_tpu_info().vmem_capacity_bytes)
    except Exception:
        return 64 << 20   # conservative fallback (v7x physical VMEM)


def _padded_block_bytes(shape, dtype):
    """VMEM footprint of one buffer after (sublane, lane) tile padding."""
    itemsize = jnp.dtype(dtype).itemsize
    sub_tile = 32 // itemsize                     # 8 for f32, 16 for bf16
    shape = tuple(int(d) for d in shape)
    if len(shape) < 2:
        shape = (1,) * (2 - len(shape)) + shape
    lead = 1
    for d in shape[:-2]:
        lead *= d
    rows = pl.cdiv(shape[-2], sub_tile) * sub_tile
    lanes = pl.cdiv(shape[-1], 128) * 128
    return lead * rows * lanes * itemsize


# ---------------------------------------------------------------------------
# Fused kernel: in-VMEM im2col -> 3x3 conv (single MXU dot) -> bias -> ReLU ->
# global average pool (MXU dot) -> Linear.   One grid step per image.
# ---------------------------------------------------------------------------
def _encoder_kernel(x_ref, w_ref, bias_ref, lw_ref, lb_ref, out_ref, patch_ref,
                    *, H, W, Wp, Cp):
    """x_ref     : [Hp*Wp, Cp]    bf16  flat zero-padded image (one batch elem)
       w_ref     : [128, Cfeat]   bf16  conv weight, tap-major, rows 72.. zero
       bias_ref  : [1, Cfeat]     f32
       lw_ref    : [Cfeat, Ep]    bf16  linear weight (transposed, lane-padded)
       lb_ref    : [1, Ep]        f32
       out_ref   : [1, 1, Ep]     f32   linear output for this image
       patch_ref : [R, 128]       bf16  VMEM im2col scratch
    """
    R = H * Wp                      # conv-output rows (valid + width-wrap junk)
    KKC = _K * _K * Cp              # 72 real contraction rows

    # --- in-VMEM im2col: 9 static shifted copies of the flat padded image ---
    # (unaligned sublane slices paid once per grid step, feeding ONE fat dot)
    patch_ref[:, KKC:] = jnp.zeros((R, _KPAD - KKC), patch_ref.dtype)
    for u in range(_K):
        for v in range(_K):
            tap = u * _K + v
            off = u * Wp + v                              # static row offset
            patch_ref[:, tap * Cp:(tap + 1) * Cp] = x_ref[pl.ds(off, R), :]

    # --- single lane-dense MXU matmul: [R,128] x [128,Cfeat], f32 acc --------
    conv = jnp.dot(patch_ref[...], w_ref[...],
                   preferred_element_type=jnp.float32)    # [R, Cfeat] f32

    # bias + ReLU in f32 (v5e-safe elementwise path)
    feat = jnp.maximum(conv + bias_ref[...], 0.0)

    # --- fused AdaptiveAvgPool2d(1) on the MXU -------------------------------
    # mask row generated in-kernel: 1/(H*W) on valid columns, 0 on wrap junk.
    col = jax.lax.broadcasted_iota(jnp.int32, (1, R), 1) % Wp
    mrow = jnp.where(col < W, 1.0 / (H * W), 0.0).astype(jnp.float32)
    pooled = jnp.dot(mrow, feat,
                     preferred_element_type=jnp.float32)  # [1, Cfeat] f32

    # --- fused Linear(Cfeat -> Ep) epilogue ----------------------------------
    lin = jnp.dot(pooled.astype(jnp.bfloat16), lw_ref[...],
                  preferred_element_type=jnp.float32) + lb_ref[...]
    out_ref[...] = lin[None]                              # [1, 1, Ep]


# ---------------------------------------------------------------------------
# Wrapper
# ---------------------------------------------------------------------------
def encoder_cnn_forward(images, params):
    B, Cin, H, W = images.shape
    Wp = W + 2          # padded width (1 zero column each side)
    Hp = H + 4          # 1 zero row on top, 3 below (largest tap offset stays
                        # inside this image's rows)
    Cp = 8              # Cin zero-padded up to a sublane-friendly width
    R = H * Wp          # conv-output rows computed per image (junk rows masked)

    conv_w = params["conv_w"]
    Cfeat = conv_w.shape[0]

    # ---- layout-only host prep (no host-side im2col materialization) -------
    x = jnp.transpose(images, (0, 2, 3, 1))                      # NCHW -> NHWC
    x = jnp.pad(x, ((0, 0), (1, 3), (1, 1), (0, Cp - Cin)))      # [B,Hp,Wp,Cp]
    x_flat = x.reshape(B * Hp * Wp, Cp).astype(jnp.bfloat16)

    # conv weight [Cfeat, Cin, K, K] -> [K*K*Cp, Cfeat] tap-major, then the
    # contraction axis is zero-padded 72 -> 128 (matches the im2col scratch).
    w = jnp.transpose(conv_w, (2, 3, 1, 0))                      # [K,K,Cin,Cf]
    w = jnp.pad(w, ((0, 0), (0, 0), (0, Cp - Cin), (0, 0)))
    w = w.reshape(_K * _K * Cp, Cfeat)
    w = jnp.pad(w, ((0, _KPAD - _K * _K * Cp), (0, 0))).astype(jnp.bfloat16)

    conv_b = params["conv_b"].reshape(1, Cfeat).astype(jnp.float32)

    # Linear head weights, lane-padded to Ep so the kernel output is lane-dense.
    E = params["lin_w"].shape[0]
    Ep = pl.cdiv(E, 128) * 128
    lw = jnp.pad(params["lin_w"].T, ((0, 0), (0, Ep - E))).astype(jnp.bfloat16)
    lb = jnp.pad(params["lin_b"], (0, Ep - E)).reshape(1, Ep).astype(jnp.float32)

    # ---- VMEM budget: padded layouts, per-buffer 2x double-buffering --------
    io_blocks = [
        ((Hp * Wp, Cp), jnp.bfloat16),    # image tile (repacked in-VMEM)
        ((_KPAD, Cfeat), jnp.bfloat16),   # conv weight (resident)
        ((1, Cfeat), jnp.float32),        # conv bias
        ((Cfeat, Ep), jnp.bfloat16),      # linear weight (resident)
        ((1, Ep), jnp.float32),           # linear bias
        ((1, 1, Ep), jnp.float32),        # output block
    ]
    scratch_blocks = [((R, _KPAD), jnp.bfloat16)]
    temp_bytes = 2 * _padded_block_bytes((R, Cfeat), jnp.float32)  # conv/feat
    vmem_bytes = (sum(2 * _padded_block_bytes(s, d) for s, d in io_blocks)
                  + sum(_padded_block_bytes(s, d) for s, d in scratch_blocks)
                  + temp_bytes + (4 << 20))
    vmem_bytes = int(min(max(vmem_bytes, 16 << 20), _vmem_cap_bytes()))

    lin_out = pl.pallas_call(
        functools.partial(_encoder_kernel, H=H, W=W, Wp=Wp, Cp=Cp),
        out_shape=jax.ShapeDtypeStruct((B, 1, Ep), jnp.float32),
        grid_spec=pltpu.PrefetchScalarGridSpec(
            num_scalar_prefetch=0,
            grid=(B,),
            in_specs=[
                pl.BlockSpec((Hp * Wp, Cp), lambda b: (b, 0)),   # image b
                pl.BlockSpec((_KPAD, Cfeat), lambda b: (0, 0)),  # conv weight
                pl.BlockSpec((1, Cfeat), lambda b: (0, 0)),      # conv bias
                pl.BlockSpec((Cfeat, Ep), lambda b: (0, 0)),     # linear weight
                pl.BlockSpec((1, Ep), lambda b: (0, 0)),         # linear bias
            ],
            out_specs=pl.BlockSpec((1, 1, Ep), lambda b: (b, 0, 0)),
            scratch_shapes=[pltpu.VMEM((R, _KPAD), jnp.bfloat16)],
        ),
        compiler_params=pltpu.CompilerParams(
            dimension_semantics=("parallel",),
            vmem_limit_bytes=vmem_bytes),
    )(x_flat, w, conv_b, lw, lb)

    # ---- BatchNorm1d over the batch (plain jnp: needs full-batch stats; a
    # separate Pallas launch would cost more than its math, per perf review).
    # TODO(synk): training-mode batch statistics (PyTorch default for a fresh
    # module); eval-mode inference would use running_mean/running_var instead.
    feats = lin_out.reshape(B, Ep)[:, :E]
    mu = jnp.mean(feats, axis=0, keepdims=True)
    var = jnp.mean((feats - mu) ** 2, axis=0, keepdims=True)
    return (params["bn_gamma"] * (feats - mu) * jax.lax.rsqrt(var + 1e-5)
            + params["bn_beta"])


def init_params(key, cin=3, cfeat=256, embed_size=32):
    k1, k2, k3, k4 = jax.random.split(key, 4)
    return {
        # stand-in backbone conv (frozen in the original module)
        "conv_w": 0.1 * jax.random.normal(k1, (cfeat, cin, 3, 3), jnp.float32),
        "conv_b": 0.1 * jax.random.normal(k2, (cfeat,), jnp.float32),
        # nn.Linear(resnet.fc.in_features, embed_size): weight [E, Cfeat]
        "lin_w": 0.05 * jax.random.normal(k3, (embed_size, cfeat), jnp.float32),
        "lin_b": 0.05 * jax.random.normal(k4, (embed_size,), jnp.float32),
        # nn.BatchNorm1d(embed_size)
        "bn_gamma": jnp.ones((embed_size,), jnp.float32),
        "bn_beta": jnp.zeros((embed_size,), jnp.float32),
    }


if __name__ == "__main__":
    key = jax.random.PRNGKey(0)
    kp, kx = jax.random.split(key)

    B, Cin, H, W = 2, 3, 16, 16          # small NCHW images
    Cfeat, embed_size = 256, 32          # Cfeat stands in for resnet.fc.in_features

    params = init_params(kp, cin=Cin, cfeat=Cfeat, embed_size=embed_size)
    images = jax.random.normal(kx, (B, Cin, H, W), jnp.float32)

    fwd = jax.jit(encoder_cnn_forward)
    features = jax.block_until_ready(fwd(images, params))

    assert features.shape == (B, embed_size)
    assert features.dtype == jnp.float32
    print("KERNEL_OK")
</pallas_src>

<mosaic_0001>
module attributes {stable_mosaic.version = 11 : i64} {
  func.func @_encoder_kernel(%arg0: i32, %arg1: memref<360x8xbf16, #tpu.memory_space<vmem>>, %arg2: memref<128x256xbf16, #tpu.memory_space<vmem>>, %arg3: memref<1x256xf32, #tpu.memory_space<vmem>>, %arg4: memref<256x128xbf16, #tpu.memory_space<vmem>>, %arg5: memref<1x128xf32, #tpu.memory_space<vmem>>, %arg6: memref<1x1x128xf32, #tpu.memory_space<vmem>>, %arg7: memref<288x128xbf16, #tpu.memory_space<vmem>>) attributes {dimension_semantics = [#tpu.dimension_semantics<parallel>], iteration_bounds = array<i64: 2>, scalar_prefetch = 0 : i64, scratch_operands = 1 : i64, tpu.core_type = #tpu.core_type<tc>, window_params = [{transform_indices = @transform_0, window_bounds = array<i64: 360, 8>}, {pipeline_mode = #tpu.pipeline_mode<synchronous>, transform_indices = @transform_1, window_bounds = array<i64: 128, 256>}, {pipeline_mode = #tpu.pipeline_mode<synchronous>, transform_indices = @transform_2, window_bounds = array<i64: 1, 256>}, {pipeline_mode = #tpu.pipeline_mode<synchronous>, transform_indices = @transform_3, window_bounds = array<i64: 256, 128>}, {pipeline_mode = #tpu.pipeline_mode<synchronous>, transform_indices = @transform_4, window_bounds = array<i64: 1, 128>}, {transform_indices = @transform_5, window_bounds = array<i64: 1, 1, 128>}]} {
    %cst = arith.constant 0.000000e+00 : bf16
    %0 = vector.broadcast %cst : bf16 to vector<288x56xbf16>
    %c0 = arith.constant 0 : index
    %c72 = arith.constant 72 : index
    %1 = vector.load %arg7[%c0, %c72] : memref<288x128xbf16, #tpu.memory_space<vmem>>, vector<288x56xbf16>
    tpu.vector_store %arg7[%c0, %c72], %0 {strides = array<i32>} : memref<288x128xbf16, #tpu.memory_space<vmem>>, vector<288x56xbf16>,
    %c0_0 = arith.constant 0 : index
    %c0_1 = arith.constant 0 : index
    %2 = vector.load %arg1[%c0_0, %c0_1] : memref<360x8xbf16, #tpu.memory_space<vmem>>, vector<288x8xbf16>
    %c0_2 = arith.constant 0 : index
    %c0_3 = arith.constant 0 : index
    %3 = vector.load %arg7[%c0_2, %c0_3] : memref<288x128xbf16, #tpu.memory_space<vmem>>, vector<288x8xbf16>
    tpu.vector_store %arg7[%c0_2, %c0_3], %2 {strides = array<i32>} : memref<288x128xbf16, #tpu.memory_space<vmem>>, vector<288x8xbf16>,
    %c1 = arith.constant 1 : index
    %c0_4 = arith.constant 0 : index
    %4 = vector.load %arg1[%c1, %c0_4] : memref<360x8xbf16, #tpu.memory_space<vmem>>, vector<288x8xbf16>
    %c0_5 = arith.constant 0 : index
    %c8 = arith.constant 8 : index
    %5 = vector.load %arg7[%c0_5, %c8] : memref<288x128xbf16, #tpu.memory_space<vmem>>, vector<288x8xbf16>
    tpu.vector_store %arg7[%c0_5, %c8], %4 {strides = array<i32>} : memref<288x128xbf16, #tpu.memory_space<vmem>>, vector<288x8xbf16>,
    %c2 = arith.constant 2 : index
    %c0_6 = arith.constant 0 : index
    %6 = vector.load %arg1[%c2, %c0_6] : memref<360x8xbf16, #tpu.memory_space<vmem>>, vector<288x8xbf16>
    %c0_7 = arith.constant 0 : index
    %c16 = arith.constant 16 : index
    %7 = vector.load %arg7[%c0_7, %c16] : memref<288x128xbf16, #tpu.memory_space<vmem>>, vector<288x8xbf16>
    tpu.vector_store %arg7[%c0_7, %c16], %6 {strides = array<i32>} : memref<288x128xbf16, #tpu.memory_space<vmem>>, vector<288x8xbf16>,
    %c18 = arith.constant 18 : index
    %c0_8 = arith.constant 0 : index
    %8 = vector.load %arg1[%c18, %c0_8] : memref<360x8xbf16, #tpu.memory_space<vmem>>, vector<288x8xbf16>
    %c0_9 = arith.constant 0 : index
    %c24 = arith.constant 24 : index
    %9 = vector.load %arg7[%c0_9, %c24] : memref<288x128xbf16, #tpu.memory_space<vmem>>, vector<288x8xbf16>
    tpu.vector_store %arg7[%c0_9, %c24], %8 {strides = array<i32>} : memref<288x128xbf16, #tpu.memory_space<vmem>>, vector<288x8xbf16>,
    %c19 = arith.constant 19 : index
    %c0_10 = arith.constant 0 : index
    %10 = vector.load %arg1[%c19, %c0_10] : memref<360x8xbf16, #tpu.memory_space<vmem>>, vector<288x8xbf16>
    %c0_11 = arith.constant 0 : index
    %c32 = arith.constant 32 : index
    %11 = vector.load %arg7[%c0_11, %c32] : memref<288x128xbf16, #tpu.memory_space<vmem>>, vector<288x8xbf16>
    tpu.vector_store %arg7[%c0_11, %c32], %10 {strides = array<i32>} : memref<288x128xbf16, #tpu.memory_space<vmem>>, vector<288x8xbf16>,
    %c20 = arith.constant 20 : index
    %c0_12 = arith.constant 0 : index
    %12 = vector.load %arg1[%c20, %c0_12] : memref<360x8xbf16, #tpu.memory_space<vmem>>, vector<288x8xbf16>
    %c0_13 = arith.constant 0 : index
    %c40 = arith.constant 40 : index
    %13 = vector.load %arg7[%c0_13, %c40] : memref<288x128xbf16, #tpu.memory_space<vmem>>, vector<288x8xbf16>
    tpu.vector_store %arg7[%c0_13, %c40], %12 {strides = array<i32>} : memref<288x128xbf16, #tpu.memory_space<vmem>>, vector<288x8xbf16>,
    %c36 = arith.constant 36 : index
    %c0_14 = arith.constant 0 : index
    %14 = vector.load %arg1[%c36, %c0_14] : memref<360x8xbf16, #tpu.memory_space<vmem>>, vector<288x8xbf16>
    %c0_15 = arith.constant 0 : index
    %c48 = arith.constant 48 : index
    %15 = vector.load %arg7[%c0_15, %c48] : memref<288x128xbf16, #tpu.memory_space<vmem>>, vector<288x8xbf16>
    tpu.vector_store %arg7[%c0_15, %c48], %14 {strides = array<i32>} : memref<288x128xbf16, #tpu.memory_space<vmem>>, vector<288x8xbf16>,
    %c37 = arith.constant 37 : index
    %c0_16 = arith.constant 0 : index
    %16 = vector.load %arg1[%c37, %c0_16] : memref<360x8xbf16, #tpu.memory_space<vmem>>, vector<288x8xbf16>
    %c0_17 = arith.constant 0 : index
    %c56 = arith.constant 56 : index
    %17 = vector.load %arg7[%c0_17, %c56] : memref<288x128xbf16, #tpu.memory_space<vmem>>, vector<288x8xbf16>
    tpu.vector_store %arg7[%c0_17, %c56], %16 {strides = array<i32>} : memref<288x128xbf16, #tpu.memory_space<vmem>>, vector<288x8xbf16>,
    %c38 = arith.constant 38 : index
    %c0_18 = arith.constant 0 : index
    %18 = vector.load %arg1[%c38, %c0_18] : memref<360x8xbf16, #tpu.memory_space<vmem>>, vector<288x8xbf16>
    %c0_19 = arith.constant 0 : index
    %c64 = arith.constant 64 : index
    %19 = vector.load %arg7[%c0_19, %c64] : memref<288x128xbf16, #tpu.memory_space<vmem>>, vector<288x8xbf16>
    tpu.vector_store %arg7[%c0_19, %c64], %18 {strides = array<i32>} : memref<288x128xbf16, #tpu.memory_space<vmem>>, vector<288x8xbf16>,
    %c0_20 = arith.constant 0 : index
    %c0_21 = arith.constant 0 : index
    %20 = vector.load %arg7[%c0_20, %c0_21] : memref<288x128xbf16, #tpu.memory_space<vmem>>, vector<288x128xbf16>
    %c0_22 = arith.constant 0 : index
    %c0_23 = arith.constant 0 : index
    %21 = vector.load %arg2[%c0_22, %c0_23] : memref<128x256xbf16, #tpu.memory_space<vmem>>, vector<128x256xbf16>
    %cst_24 = arith.constant dense<0.000000e+00> : vector<288x256xf32>
    %22 = tpu.matmul %20, %21, %cst_24 {dimension_numbers = #tpu.dot_dimension_numbers<[1], [0], [0], [1], [0, 0, 1, 1], [], []>} : vector<288x128xbf16>, vector<128x256xbf16>, vector<288x256xf32> -> vector<288x256xf32>
    %c0_25 = arith.constant 0 : index
    %c0_26 = arith.constant 0 : index
    %23 = vector.load %arg3[%c0_25, %c0_26] : memref<1x256xf32, #tpu.memory_space<vmem>>, vector<1x256xf32>
    %24 = vector.broadcast %23 : vector<1x256xf32> to vector<288x256xf32>
    %25 = arith.addf %22, %24 : vector<288x256xf32>
    %cst_27 = arith.constant 0.000000e+00 : f32
    %26 = vector.broadcast %cst_27 : f32 to vector<288x256xf32>
    %27 = arith.maximumf %25, %26 : vector<288x256xf32>
    %28 = tpu.iota {dimensions = array<i32: 1>} : vector<1x288xi32>
    %c18_i32 = arith.constant 18 : i32
    %c0_i32 = arith.constant 0 : i32
    %29 = arith.cmpi eq, %c18_i32, %c0_i32 : i32
    %c1_i32 = arith.constant 1 : i32
    %30 = arith.select %29, %c1_i32, %c18_i32 : i32
    %31 = vector.broadcast %30 : i32 to vector<1x288xi32>
    %32 = arith.remsi %28, %31 : vector<1x288xi32>
    %c0_i32_28 = arith.constant 0 : i32
    %33 = vector.broadcast %c0_i32_28 : i32 to vector<1x288xi32>
    %34 = arith.cmpi ne, %32, %33 : vector<1x288xi32>
    %c0_i32_29 = arith.constant 0 : i32
    %35 = vector.broadcast %c0_i32_29 : i32 to vector<1x288xi32>
    %36 = arith.cmpi slt, %32, %35 : vector<1x288xi32>
    %c0_i32_30 = arith.constant 0 : i32
    %37 = arith.cmpi slt, %30, %c0_i32_30 : i32
    %38 = vector.broadcast %37 : i1 to vector<1x288xi1>
    %39 = vector.broadcast %38 : vector<1x288xi1> to vector<1x288xi1>
    %40 = arith.xori %36, %39 : vector<1x288xi1>
    %41 = arith.andi %40, %34 : vector<1x288xi1>
    %42 = vector.broadcast %30 : i32 to vector<1x288xi32>
    %43 = arith.addi %32, %42 : vector<1x288xi32>
    %44 = arith.select %41, %43, %32 : vector<1x288xi1>, vector<1x288xi32>
    %c16_i32 = arith.constant 16 : i32
    %45 = vector.broadcast %c16_i32 : i32 to vector<1x288xi32>
    %46 = arith.cmpi slt, %44, %45 : vector<1x288xi32>
    %cst_31 = arith.constant 3.906250e-03 : f32
    %cst_32 = arith.constant 0.000000e+00 : f32
    %47 = vector.broadcast %cst_31 : f32 to vector<1x288xf32>
    %48 = vector.broadcast %cst_32 : f32 to vector<1x288xf32>
    %49 = arith.select %46, %47, %48 : vector<1x288xi1>, vector<1x288xf32>
    %cst_33 = arith.constant dense<0.000000e+00> : vector<1x256xf32>
    %50 = tpu.matmul %49, %27, %cst_33 {dimension_numbers = #tpu.dot_dimension_numbers<[1], [0], [0], [1], [0, 0, 1, 1], [], []>} : vector<1x288xf32>, vector<288x256xf32>, vector<1x256xf32> -> vector<1x256xf32>
    %51 = arith.truncf %50 : vector<1x256xf32> to vector<1x256xbf16>
    %c0_34 = arith.constant 0 : index
    %c0_35 = arith.constant 0 : index
    %52 = vector.load %arg4[%c0_34, %c0_35] : memref<256x128xbf16, #tpu.memory_space<vmem>>, vector<256x128xbf16>
    %cst_36 = arith.constant dense<0.000000e+00> : vector<1x128xf32>
    %53 = tpu.matmul %51, %52, %cst_36 {dimension_numbers = #tpu.dot_dimension_numbers<[1], [0], [0], [1], [0, 0, 1, 1], [], []>} : vector<1x256xbf16>, vector<256x128xbf16>, vector<1x128xf32> -> vector<1x128xf32>
    %c0_37 = arith.constant 0 : index
    %c0_38 = arith.constant 0 : index
    %54 = vector.load %arg5[%c0_37, %c0_38] : memref<1x128xf32, #tpu.memory_space<vmem>>, vector<1x128xf32>
    %55 = arith.addf %53, %54 : vector<1x128xf32>
    %56 = vector.shape_cast %55 : vector<1x128xf32> to vector<1x1x128xf32>
    %c0_39 = arith.constant 0 : index
    %c0_40 = arith.constant 0 : index
    %c0_41 = arith.constant 0 : index
    %57 = vector.load %arg6[%c0_39, %c0_40, %c0_41] : memref<1x1x128xf32, #tpu.memory_space<vmem>>, vector<1x1x128xf32>
    tpu.vector_store %arg6[%c0_39, %c0_40, %c0_41], %56 {strides = array<i32>} : memref<1x1x128xf32, #tpu.memory_space<vmem>>, vector<1x1x128xf32>,
    return
  }
  func.func @transform_0(%arg0: i32) -> (i32, i32) {
    %c0_i32 = arith.constant 0 : i32
    %c0_i32_0 = arith.constant 0 : i32
    return %arg0, %c0_i32 : i32, i32
  }
  func.func @transform_1(%arg0: i32) -> (i32, i32) {
    %c0_i32 = arith.constant 0 : i32
    %c0_i32_0 = arith.constant 0 : i32
    %c0_i32_1 = arith.constant 0 : i32
    return %c0_i32, %c0_i32_0 : i32, i32
  }
  func.func @transform_2(%arg0: i32) -> (i32, i32) {
    %c0_i32 = arith.constant 0 : i32
    %c0_i32_0 = arith.constant 0 : i32
    %c0_i32_1 = arith.constant 0 : i32
    return %c0_i32, %c0_i32_0 : i32, i32
  }
  func.func @transform_3(%arg0: i32) -> (i32, i32) {
    %c0_i32 = arith.constant 0 : i32
    %c0_i32_0 = arith.constant 0 : i32
    %c0_i32_1 = arith.constant 0 : i32
    return %c0_i32, %c0_i32_0 : i32, i32
  }
  func.func @transform_4(%arg0: i32) -> (i32, i32) {
    %c0_i32 = arith.constant 0 : i32
    %c0_i32_0 = arith.constant 0 : i32
    %c0_i32_1 = arith.constant 0 : i32
    return %c0_i32, %c0_i32_0 : i32, i32
  }
  func.func @transform_5(%arg0: i32) -> (i32, i32, i32) {
    %c0_i32 = arith.constant 0 : i32
    %c0_i32_0 = arith.constant 0 : i32
    %c0_i32_1 = arith.constant 0 : i32
    return %arg0, %c0_i32, %c0_i32_0 : i32, i32, i32
  }
}

</mosaic_0001>

<llo_original>
// kernel: encoder_cnn_forward.1
$region0: #{encoder_cnn_forward.1}
  #allocation0 [shape = 'u32[]', space=smem, size = 0x4, offset = 0x4, fixed_abs, tag = 'smem constant byte address 0x4 - core index']
  #allocation1 [shape = 'u32[144,128]{1,0:T(1,128)}', space=vmem, size = 0x12000, scoped, tag = 'internal scratch']
  #allocation2 [shape = 'bf16[288,128]{1,0:T(8,128)(2,1)}', space=vmem, size = 0x12000, scoped, tag = 'scratch operand']
  %s0 = inlined_call_operand.vmem [shape: bf16[720,8], index: 0, kind: input, shape index: {}]
  %s1 = inlined_call_operand.vmem [shape: bf16[128,256], index: 1, kind: input, shape index: {}]
  %s2 = inlined_call_operand.vmem [shape: f32[1,256], index: 2, kind: input, shape index: {}]
  %s3 = inlined_call_operand.vmem [shape: bf16[256,128], index: 3, kind: input, shape index: {}]
  %s4 = inlined_call_operand.vmem [shape: f32[1,128], index: 4, kind: input, shape index: {}]
  %s5 = inlined_call_operand.vmem [shape: f32[2,1,128], index: 5, kind: output, shape index: {}]
  %s6 = sld [smem:[#allocation0]]
  $region53: #{encoder_cnn_forward.1} parent=0
    _
  %s8 = ssub.s32 1, %s6
  %s9 = scalar_select 0, %s8, %s6
  loop: start=0, step=1, limit=4
  $region2: #{encoder_cnn_forward.1} parent=0 // loop_pre_header
    _
  $region3: #{encoder_cnn_forward.1} parent=0 // loop_header
    %s11 = sphi 0, %s15
    %p12 = scmp.ge.s32.totalorder %s11, 4
    %s21 = sphi 0, %s23
    %s24 = sphi 0, %s21
    %s25 = sphi 0, %s24
    %s41 = sphi 0, %s25
    %s45 = sphi 0, %s45
    %s47 = sphi 0, %s45
    %s48 = sphi 0, %s47
    %s62 = sphi 0, %s48
    %s66 = sphi 0, %s66
    %s68 = sphi 0, %s66
    %s69 = sphi 0, %s68
    %s83 = sphi 0, %s69
    %s87 = sphi 0, %s87
    %s89 = sphi 0, %s87
    %s90 = sphi 0, %s89
    %s104 = sphi 0, %s90
    %s108 = sphi 0, %s108
    %s110 = sphi 0, %s108
    %s111 = sphi 0, %s110
    %s125 = sphi 0, %s111
    %s131 = sphi 0, %s133
    %s134 = sphi 0, %s131
    %s135 = sphi 0, %s134
    %s151 = sphi 0, %s135
  $region4: #{encoder_cnn_forward.1} parent=0 // loop_header_branch
    %14 = sbr.rel (%p12) target = $region8
  $region5: #{encoder_cnn_forward.1} parent=0 // loop_body
    %s16 = ssub.s32 %s11, 1
    %s17 = ssub.s32 %s11, 2
    %s18 = sadd.s32 %s11, 1
    %s19 = ssub.s32 %s11, %s18
    %p20 = scmp.eq.s32.totalorder %s19, 0
    %s22 = sadd.s32 %s21, 1
    %s23 = scalar_select %p20, %s21, %s22
    %p26 = pneg %p20
    %p27 = scmp.eq.s32.totalorder %s11, 1
    %p28 = por %p26, %p27
    %p29 = scmp.ne.s32.totalorder %s21, %s24
    %p30 = scmp.eq.s32.totalorder %s11, 0
    %p31 = por %p29, %p30
    %p32 = scmp.ne.s32.totalorder %s21, %s24
    %p33 = scmp.eq.s32.totalorder %s16, 1
    %p34 = por %p32, %p33
    %p35 = scmp.ne.s32.totalorder %s24, %s25
    %p36 = scmp.eq.s32.totalorder %s16, 0
    %p37 = por %p35, %p36
    %p38 = scmp.ne.s32.totalorder %s24, %s25
    %p39 = scmp.eq.s32.totalorder %s17, 1
    %p40 = por %p38, %p39
    %p42 = scmp.ne.s32.totalorder %s25, %s41
    %p43 = scmp.eq.s32.totalorder %s17, 0
    %p44 = por %p42, %p43
    %s46 = sadd.s32 %s45, 1
    %p49 = scmp.eq.s32.totalorder %s11, 1
    %p50 = scmp.ne.s32.totalorder %s45, %s47
    %p51 = scmp.eq.s32.totalorder %s11, 0
    %p52 = por %p50, %p51
    %p53 = scmp.ne.s32.totalorder %s45, %s47
    %p54 = scmp.eq.s32.totalorder %s16, 1
    %p55 = por %p53, %p54
    %p56 = scmp.ne.s32.totalorder %s47, %s48
    %p57 = scmp.eq.s32.totalorder %s16, 0
    %p58 = por %p56, %p57
    %p59 = scmp.ne.s32.totalorder %s47, %s48
    %p60 = scmp.eq.s32.totalorder %s17, 1
    %p61 = por %p59, %p60
    %p63 = scmp.ne.s32.totalorder %s48, %s62
    %p64 = scmp.eq.s32.totalorder %s17, 0
    %p65 = por %p63, %p64
    %s67 = sadd.s32 %s66, 1
    %p70 = scmp.eq.s32.totalorder %s11, 1
    %p71 = scmp.ne.s32.totalorder %s66, %s68
    %p72 = scmp.eq.s32.totalorder %s11, 0
    %p73 = por %p71, %p72
    %p74 = scmp.ne.s32.totalorder %s66, %s68
    %p75 = scmp.eq.s32.totalorder %s16, 1
    %p76 = por %p74, %p75
    %p77 = scmp.ne.s32.totalorder %s68, %s69
    %p78 = scmp.eq.s32.totalorder %s16, 0
    %p79 = por %p77, %p78
    %p80 = scmp.ne.s32.totalorder %s68, %s69
    %p81 = scmp.eq.s32.totalorder %s17, 1
    %p82 = por %p80, %p81
    %p84 = scmp.ne.s32.totalorder %s69, %s83
    %p85 = scmp.eq.s32.totalorder %s17, 0
    %p86 = por %p84, %p85
    %s88 = sadd.s32 %s87, 1
    %p91 = scmp.eq.s32.totalorder %s11, 1
    %p92 = scmp.ne.s32.totalorder %s87, %s89
    %p93 = scmp.eq.s32.totalorder %s11, 0
    %p94 = por %p92, %p93
    %p95 = scmp.ne.s32.totalorder %s87, %s89
    %p96 = scmp.eq.s32.totalorder %s16, 1
    %p97 = por %p95, %p96
    %p98 = scmp.ne.s32.totalorder %s89, %s90
    %p99 = scmp.eq.s32.totalorder %s16, 0
    %p100 = por %p98, %p99
    %p101 = scmp.ne.s32.totalorder %s89, %s90
    %p102 = scmp.eq.s32.totalorder %s17, 1
    %p103 = por %p101, %p102
    %p105 = scmp.ne.s32.totalorder %s90, %s104
    %p106 = scmp.eq.s32.totalorder %s17, 0
    %p107 = por %p105, %p106
    %s109 = sadd.s32 %s108, 1
    %p112 = scmp.eq.s32.totalorder %s11, 1
    %p113 = scmp.ne.s32.totalorder %s108, %s110
    %p114 = scmp.eq.s32.totalorder %s11, 0
    %p115 = por %p113, %p114
    %p116 = scmp.ne.s32.totalorder %s108, %s110
    %p117 = scmp.eq.s32.totalorder %s16, 1
    %p118 = por %p116, %p117
    %p119 = scmp.ne.s32.totalorder %s110, %s111
    %p120 = scmp.eq.s32.totalorder %s16, 0
    %p121 = por %p119, %p120
    %p122 = scmp.ne.s32.totalorder %s110, %s111
    %p123 = scmp.eq.s32.totalorder %s17, 1
    %p124 = por %p122, %p123
    %p126 = scmp.ne.s32.totalorder %s111, %s125
    %p127 = scmp.eq.s32.totalorder %s17, 0
    %p128 = por %p126, %p127
    %s129 = ssub.s32 %s11, %s18
    %p130 = scmp.eq.s32.totalorder %s129, 0
    %s132 = sadd.s32 %s131, 1
    %s133 = scalar_select %p130, %s131, %s132
    %p136 = pneg %p130
    %p137 = scmp.eq.s32.totalorder %s11, 1
    %p138 = por %p136, %p137
    %p139 = scmp.ne.s32.totalorder %s131, %s134
    %p140 = scmp.eq.s32.totalorder %s11, 0
    %p141 = por %p139, %p140
    %p142 = scmp.ne.s32.totalorder %s131, %s134
    %p143 = scmp.eq.s32.totalorder %s16, 1
    %p144 = por %p142, %p143
    %p145 = scmp.ne.s32.totalorder %s134, %s135
    %p146 = scmp.eq.s32.totalorder %s16, 0
    %p147 = por %p145, %p146
    %p148 = scmp.ne.s32.totalorder %s134, %s135
    %p149 = scmp.eq.s32.totalorder %s17, 1
    %p150 = por %p148, %p149
    %p152 = scmp.ne.s32.totalorder %s135, %s151
    %p153 = scmp.eq.s32.totalorder %s17, 0
    %p154 = por %p152, %p153
    %p155 = scmp.le.s32.totalorder 1, %s11
    %p156 = scmp.lt.s32.totalorder %s11, 3
    %p157 = pnand %p155, %p156
    %p158 = pneg %p157
    // Predicated region
    $region9: #{encoder_cnn_forward.1} parent=5 // pred_check
      _
    $region10: #{encoder_cnn_forward.1} parent=5 // pred_check_branch
      %160 = sbr.rel (%p157) target = $region12
    $region11: #{encoder_cnn_forward.1} parent=5 // pred_region
      %s161 = ssub.s32 %s11, 1
      // Predicated region
      $region13: #{encoder_cnn_forward.1} parent=11 // pred_check
        %p162 = pneg %p58
      $region14: #{encoder_cnn_forward.1} parent=11 // pred_check_branch
        %164 = sbr.rel (%p162) target = $region16
      $region15: #{encoder_cnn_forward.1} parent=11 // pred_region
        _
      $region16: #{encoder_cnn_forward.1} parent=11 // pred_fallthru
        _
      // Predicated region
      $region17: #{encoder_cnn_forward.1} parent=11 // pred_check
        %p165 = pneg %p79
      $region18: #{encoder_cnn_forward.1} parent=11 // pred_check_branch
        %167 = sbr.rel (%p165) target = $region20
      $region19: #{encoder_cnn_forward.1} parent=11 // pred_region
        _
      $region20: #{encoder_cnn_forward.1} parent=11 // pred_fallthru
        _
      // Predicated region
      $region21: #{encoder_cnn_forward.1} parent=11 // pred_check
        %p168 = pneg %p100
      $region22: #{encoder_cnn_forward.1} parent=11 // pred_check_branch
        %170 = sbr.rel (%p168) target = $region24
      $region23: #{encoder_cnn_forward.1} parent=11 // pred_region
        _
      $region24: #{encoder_cnn_forward.1} parent=11 // pred_fallthru
        _
      // Predicated region
      $region25: #{encoder_cnn_forward.1} parent=11 // pred_check
        %p171 = pneg %p121
      $region26: #{encoder_cnn_forward.1} parent=11 // pred_check_branch
        %173 = sbr.rel (%p171) target = $region28
      $region27: #{encoder_cnn_forward.1} parent=11 // pred_region
        _
      $region28: #{encoder_cnn_forward.1} parent=11 // pred_fallthru
        _
    $region12: #{encoder_cnn_forward.1} parent=5 // pred_fallthru
      _
    %p174 = scmp.lt.s32.totalorder %s11, 2
    // Predicated region
    $region29: #{encoder_cnn_forward.1} parent=5 // pred_check
      %p175 = pneg %p174
    $region30: #{encoder_cnn_forward.1} parent=5 // pred_check_branch
      %177 = sbr.rel (%p175) target = $region32
    $region31: #{encoder_cnn_forward.1} parent=5 // pred_region
      // Predicated region
      $region33: #{encoder_cnn_forward.1} parent=31 // pred_check
        %p178 = pneg %p31
      $region34: #{encoder_cnn_forward.1} parent=31 // pred_check_branch
        %180 = sbr.rel (%p178) target = $region36
      $region35: #{encoder_cnn_forward.1} parent=31 // pred_region
        %s181 = smul.u32 45, %s11
        %p182 = scmp.lt.s32.totalorder %s181, 89
        %s183 = scalar_select %p182, %s181, 89
        %s184 = smul.addr %s183, 4
        %s185 = scalar_lea.vmem %s0, %s184
        %s186 = smul.u32 45, %s11
      $region36: #{encoder_cnn_forward.1} parent=31 // pred_fallthru
        _
    $region32: #{encoder_cnn_forward.1} parent=5 // pred_fallthru
      _
    %p187 = scmp.le.s32.totalorder 1, %s11
    %p188 = scmp.lt.s32.totalorder %s11, 3
    %p189 = pnand %p187, %p188
    %p190 = pneg %p189
    // Predicated region
    $region37: #{encoder_cnn_forward.1} parent=5 // pred_check
      _
    $region38: #{encoder_cnn_forward.1} parent=5 // pred_check_branch
      %192 = sbr.rel (%p189) target = $region40
    $region39: #{encoder_cnn_forward.1} parent=5 // pred_region
      %s193 = ssub.s32 %s11, 1
      %s194 = smul.u32 45, %s16
      %p195 = scmp.lt.s32.totalorder %s194, 89
      %s196 = scalar_select %p195, %s194, 89
      %s197 = smul.addr %s196, 4
      %s198 = scalar_lea.vmem %s0, %s197
      %p199 = pneg %p37
      %p200 = pneg %p34
      %p201 = pneg %p58
      %p202 = pneg %p55
      %p203 = pneg %p79
      %p204 = pneg %p76
      %p205 = pneg %p100
      %p206 = pneg %p97
      %p207 = pneg %p121
      %p208 = pneg %p118
      %p209 = pneg %p147
      %p210 = pneg %p144
      %p211 = scmp.lt.s32.totalorder %s16, 1
      %s212 = scalar_select %p211, %s16, 1
      %s213 = scalar_lea.vmem %s5, %s212
      %s214 = smul.u32 45, %s16
      %p215 = scmp.lt.s32.totalorder %s214, 89
      %s216 = scalar_select %p215, %s214, 89
      %s217 = smul.addr %s216, 4
      %s218 = scalar_lea.vmem %s0, %s217
      %s219 = smul.u32 45, %s16
      %p220 = scmp.lt.s32.totalorder %s16, 1
      %s221 = scalar_select %p220, %s16, 1
      %s222 = scalar_lea.vmem %s5, %s221
      %vm224 = vcmask 1044032
      %225 = vst.msk [vmem:[#allocation2] sm:$0xf] %vm224, 0
      %226 = vst.msk [vmem:[#allocation2 + $0x4] sm:$0xf] %vm224, 0
      %227 = vst.msk [vmem:[#allocation2 + $0x8] sm:$0xf] %vm224, 0
      %228 = vst.msk [vmem:[#allocation2 + $0xc] sm:$0xf] %vm224, 0
      %229 = vst.msk [vmem:[#allocation2 + $0x10] sm:$0xf] %vm224, 0
      %230 = vst.msk [vmem:[#allocation2 + $0x14] sm:$0xf] %vm224, 0
      %231 = vst.msk [vmem:[#allocation2 + $0x18] sm:$0xf] %vm224, 0
      %232 = vst.msk [vmem:[#allocation2 + $0x1c] sm:$0xf] %vm224, 0
      %233 = vst.msk [vmem:[#allocation2 + $0x20] sm:$0xf] %vm224, 0
      %234 = vst.msk [vmem:[#allocation2 + $0x24] sm:$0xf] %vm224, 0
      %235 = vst.msk [vmem:[#allocation2 + $0x28] sm:$0xf] %vm224, 0
      %236 = vst.msk [vmem:[#allocation2 + $0x2c] sm:$0xf] %vm224, 0
      %237 = vst.msk [vmem:[#allocation2 + $0x30] sm:$0xf] %vm224, 0
      %238 = vst.msk [vmem:[#allocation2 + $0x34] sm:$0xf] %vm224, 0
      %239 = vst.msk [vmem:[#allocation2 + $0x38] sm:$0xf] %vm224, 0
      %240 = vst.msk [vmem:[#allocation2 + $0x3c] sm:$0xf] %vm224, 0
      %241 = vst.msk [vmem:[#allocation2 + $0x40] sm:$0xf] %vm224, 0
      %242 = vst.msk [vmem:[#allocation2 + $0x44] sm:$0xf] %vm224, 0
      %243 = vst.msk [vmem:[#allocation2 + $0x48] sm:$0xf] %vm224, 0
      %244 = vst.msk [vmem:[#allocation2 + $0x4c] sm:$0xf] %vm224, 0
      %245 = vst.msk [vmem:[#allocation2 + $0x50] sm:$0xf] %vm224, 0
      %246 = vst.msk [vmem:[#allocation2 + $0x54] sm:$0xf] %vm224, 0
      %247 = vst.msk [vmem:[#allocation2 + $0x58] sm:$0xf] %vm224, 0
      %248 = vst.msk [vmem:[#allocation2 + $0x5c] sm:$0xf] %vm224, 0
      %249 = vst.msk [vmem:[#allocation2 + $0x60] sm:$0xf] %vm224, 0
      %250 = vst.msk [vmem:[#allocation2 + $0x64] sm:$0xf] %vm224, 0
      %251 = vst.msk [vmem:[#allocation2 + $0x68] sm:$0xf] %vm224, 0
      %252 = vst.msk [vmem:[#allocation2 + $0x6c] sm:$0xf] %vm224, 0
      %253 = vst.msk [vmem:[#allocation2 + $0x70] sm:$0xf] %vm224, 0
      %254 = vst.msk [vmem:[#allocation2 + $0x74] sm:$0xf] %vm224, 0
      %255 = vst.msk [vmem:[#allocation2 + $0x78] sm:$0xf] %vm224, 0
      %256 = vst.msk [vmem:[#allocation2 + $0x7c] sm:$0xf] %vm224, 0
      %257 = vst.msk [vmem:[#allocation2 + $0x80] sm:$0xf] %vm224, 0
      %258 = vst.msk [vmem:[#allocation2 + $0x84] sm:$0xf] %vm224, 0
      %259 = vst.msk [vmem:[#allocation2 + $0x88] sm:$0xf] %vm224, 0
      %260 = vst.msk [vmem:[#allocation2 + $0x8c] sm:$0xf] %vm224, 0
      %v261 = vld [vmem:[%s218] sm:$0xf]
      %v262 = vld [vmem:[%s218 + $0x4] sm:$0xf]
      %v263 = vld [vmem:[%s218 + $0x8] sm:$0xf]
      %v264 = vld [vmem:[%s218 + $0xc] sm:$0xf]
      %v265 = vld [vmem:[%s218 + $0x10] sm:$0xf]
      %v266 = vld [vmem:[%s218 + $0x14] sm:$0xf]
      %v267 = vld [vmem:[%s218 + $0x18] sm:$0xf]
      %v268 = vld [vmem:[%s218 + $0x1c] sm:$0xf]
      %v269 = vld [vmem:[%s218 + $0x20] sm:$0xf]
      %v270 = vld [vmem:[%s218 + $0x24] sm:$0xf]
      %v271 = vld [vmem:[%s218 + $0x28] sm:$0xf]
      %v272 = vld [vmem:[%s218 + $0x2c] sm:$0xf]
      %v273 = vld [vmem:[%s218 + $0x30] sm:$0xf]
      %v274 = vld [vmem:[%s218 + $0x34] sm:$0xf]
      %v275 = vld [vmem:[%s218 + $0x38] sm:$0xf]
      %v276 = vld [vmem:[%s218 + $0x3c] sm:$0xf]
      %v277 = vld [vmem:[%s218 + $0x40] sm:$0xf]
      %v278 = vld [vmem:[%s218 + $0x44] sm:$0xf]
      %v279 = vld [vmem:[%s218 + $0x48] sm:$0xf]
      %v280 = vld [vmem:[%s218 + $0x4c] sm:$0xf]
      %v281 = vld [vmem:[%s218 + $0x50] sm:$0xf]
      %v282 = vld [vmem:[%s218 + $0x54] sm:$0xf]
      %v283 = vld [vmem:[%s218 + $0x58] sm:$0xf]
      %v284 = vld [vmem:[%s218 + $0x5c] sm:$0xf]
      %v285 = vld [vmem:[%s218 + $0x60] sm:$0xf]
      %v286 = vld [vmem:[%s218 + $0x64] sm:$0xf]
      %v287 = vld [vmem:[%s218 + $0x68] sm:$0xf]
      %v288 = vld [vmem:[%s218 + $0x6c] sm:$0xf]
      %v289 = vld [vmem:[%s218 + $0x70] sm:$0xf]
      %v290 = vld [vmem:[%s218 + $0x74] sm:$0xf]
      %v291 = vld [vmem:[%s218 + $0x78] sm:$0xf]
      %v292 = vld [vmem:[%s218 + $0x7c] sm:$0xf]
      %v293 = vld [vmem:[%s218 + $0x80] sm:$0xf]
      %v294 = vld [vmem:[%s218 + $0x84] sm:$0xf]
      %v295 = vld [vmem:[%s218 + $0x88] sm:$0xf]
      %v296 = vld [vmem:[%s218 + $0x8c] sm:$0xf]
      %vm297 = vcmask 60416
      %298 = vst.msk [vmem:[#allocation2] sm:$0xf] %vm297, %v261
      %299 = vst.msk [vmem:[#allocation2 + $0x4] sm:$0xf] %vm297, %v262
      %300 = vst.msk [vmem:[#allocation2 + $0x8] sm:$0xf] %vm297, %v263
      %301 = vst.msk [vmem:[#allocation2 + $0xc] sm:$0xf] %vm297, %v264
      %302 = vst.msk [vmem:[#allocation2 + $0x10] sm:$0xf] %vm297, %v265
      %303 = vst.msk [vmem:[#allocation2 + $0x14] sm:$0xf] %vm297, %v266
      %304 = vst.msk [vmem:[#allocation2 + $0x18] sm:$0xf] %vm297, %v267
      %305 = vst.msk [vmem:[#allocation2 + $0x1c] sm:$0xf] %vm297, %v268
      %306 = vst.msk [vmem:[#allocation2 + $0x20] sm:$0xf] %vm297, %v269
      %307 = vst.msk [vmem:[#allocation2 + $0x24] sm:$0xf] %vm297, %v270
      %308 = vst.msk [vmem:[#allocation2 + $0x28] sm:$0xf] %vm297, %v271
      %309 = vst.msk [vmem:[#allocation2 + $0x2c] sm:$0xf] %vm297, %v272
      %310 = vst.msk [vmem:[#allocation2 + $0x30] sm:$0xf] %vm297, %v273
      %311 = vst.msk [vmem:[#allocation2 + $0x34] sm:$0xf] %vm297, %v274
      %312 = vst.msk [vmem:[#allocation2 + $0x38] sm:$0xf] %vm297, %v275
      %313 = vst.msk [vmem:[#allocation2 + $0x3c] sm:$0xf] %vm297, %v276
      %314 = vst.msk [vmem:[#allocation2 + $0x40] sm:$0xf] %vm297, %v277
      %315 = vst.msk [vmem:[#allocation2 + $0x44] sm:$0xf] %vm297, %v278
      %316 = vst.msk [vmem:[#allocation2 + $0x48] sm:$0xf] %vm297, %v279
      %317 = vst.msk [vmem:[#allocation2 + $0x4c] sm:$0xf] %vm297, %v280
      %318 = vst.msk [vmem:[#allocation2 + $0x50] sm:$0xf] %vm297, %v281
      %319 = vst.msk [vmem:[#allocation2 + $0x54] sm:$0xf] %vm297, %v282
      %320 = vst.msk [vmem:[#allocation2 + $0x58] sm:$0xf] %vm297, %v283
      %321 = vst.msk [vmem:[#allocation2 + $0x5c] sm:$0xf] %vm297, %v284
      %322 = vst.msk [vmem:[#allocation2 + $0x60] sm:$0xf] %vm297, %v285
      %323 = vst.msk [vmem:[#allocation2 + $0x64] sm:$0xf] %vm297, %v286
      %324 = vst.msk [vmem:[#allocation2 + $0x68] sm:$0xf] %vm297, %v287
      %325 = vst.msk [vmem:[#allocation2 + $0x6c] sm:$0xf] %vm297, %v288
      %326 = vst.msk [vmem:[#allocation2 + $0x70] sm:$0xf] %vm297, %v289
      %327 = vst.msk [vmem:[#allocation2 + $0x74] sm:$0xf] %vm297, %v290
      %328 = vst.msk [vmem:[#allocation2 + $0x78] sm:$0xf] %vm297, %v291
      %329 = vst.msk [vmem:[#allocation2 + $0x7c] sm:$0xf] %vm297, %v292
      %330 = vst.msk [vmem:[#allocation2 + $0x80] sm:$0xf] %vm297, %v293
      %331 = vst.msk [vmem:[#allocation2 + $0x84] sm:$0xf] %vm297, %v294
      %332 = vst.msk [vmem:[#allocation2 + $0x88] sm:$0xf] %vm297, %v295
      %333 = vst.msk [vmem:[#allocation2 + $0x8c] sm:$0xf] %vm297, %v296
      %v334 = vld [vmem:[%s218] sm:$0xf]
      %v335 = vld [vmem:[%s218 + $0x4] sm:$0xf]
      %v336 = vld [vmem:[%s218 + $0x8] sm:$0xf]
      %v337 = vld [vmem:[%s218 + $0xc] sm:$0xf]
      %v338 = vld [vmem:[%s218 + $0x10] sm:$0xf]
      %v339 = vld [vmem:[%s218 + $0x14] sm:$0xf]
      %v340 = vld [vmem:[%s218 + $0x18] sm:$0xf]
      %v341 = vld [vmem:[%s218 + $0x1c] sm:$0xf]
      %v342 = vld [vmem:[%s218 + $0x20] sm:$0xf]
      %v343 = vld [vmem:[%s218 + $0x24] sm:$0xf]
      %v344 = vld [vmem:[%s218 + $0x28] sm:$0xf]
      %v345 = vld [vmem:[%s218 + $0x2c] sm:$0xf]
      %v346 = vld [vmem:[%s218 + $0x30] sm:$0xf]
      %v347 = vld [vmem:[%s218 + $0x34] sm:$0xf]
      %v348 = vld [vmem:[%s218 + $0x38] sm:$0xf]
      %v349 = vld [vmem:[%s218 + $0x3c] sm:$0xf]
      %v350 = vld [vmem:[%s218 + $0x40] sm:$0xf]
      %v351 = vld [vmem:[%s218 + $0x44] sm:$0xf]
      %v352 = vld [vmem:[%s218 + $0x48] sm:$0xf]
      %v353 = vld [vmem:[%s218 + $0x4c] sm:$0xf]
      %v354 = vld [vmem:[%s218 + $0x50] sm:$0xf]
      %v355 = vld [vmem:[%s218 + $0x54] sm:$0xf]
      %v356 = vld [vmem:[%s218 + $0x58] sm:$0xf]
      %v357 = vld [vmem:[%s218 + $0x5c] sm:$0xf]
      %v358 = vld [vmem:[%s218 + $0x60] sm:$0xf]
      %v359 = vld [vmem:[%s218 + $0x64] sm:$0xf]
      %v360 = vld [vmem:[%s218 + $0x68] sm:$0xf]
      %v361 = vld [vmem:[%s218 + $0x6c] sm:$0xf]
      %v362 = vld [vmem:[%s218 + $0x70] sm:$0xf]
      %v363 = vld [vmem:[%s218 + $0x74] sm:$0xf]
      %v364 = vld [vmem:[%s218 + $0x78] sm:$0xf]
      %v365 = vld [vmem:[%s218 + $0x7c] sm:$0xf]
      %v366 = vld [vmem:[%s218 + $0x80] sm:$0xf]
      %v367 = vld [vmem:[%s218 + $0x84] sm:$0xf]
      %v368 = vld [vmem:[%s218 + $0x88] sm:$0xf]
      %v369 = vld [vmem:[%s218 + $0x8c] sm:$0xf]
      %v370 = vld [vmem:[%s218 + $0x90] sm:$0x1]
      %vm371 = vsmask.f32 3328
      %vm372 = vsmask.f32 7440
      %vm373 = vmor %vm371, %vm372
      %v375 = vshrl.u32 %v334, 16
      %v377 = vrot.slane %v375, 4
      %v378 = vshll.u32 %v334, 16
      %v380 = vrot.slane %v378, 5
      %v381 = vor.u32 %v377, %v380
      %v382 = vrot.slane %v381, 4
      %v384 = vshll.u32 %v335, 16
      %v386 = vrot.slane %v384, 5
      %v387 = vsel %vm373, %v382, %v386
      %v388 = vshrl.u32 %v335, 16
      %v390 = vrot.slane %v388, 4
      %v391 = vor.u32 %v390, %v386
      %v392 = vrot.slane %v391, 4
      %v394 = vshll.u32 %v336, 16
      %v396 = vrot.slane %v394, 5
      %v397 = vsel %vm373, %v392, %v396
      %v398 = vshrl.u32 %v336, 16
      %v400 = vrot.slane %v398, 4
      %v401 = vor.u32 %v400, %v396
      %v402 = vrot.slane %v401, 4
      %v404 = vshll.u32 %v337, 16
      %v406 = vrot.slane %v404, 5
      %v407 = vsel %vm373, %v402, %v406
      %v408 = vshrl.u32 %v337, 16
      %v410 = vrot.slane %v408, 4
      %v411 = vor.u32 %v410, %v406
      %v412 = vrot.slane %v411, 4
      %v414 = vshll.u32 %v338, 16
      %v416 = vrot.slane %v414, 5
      %v417 = vsel %vm373, %v412, %v416
      %v418 = vshrl.u32 %v338, 16
      %v420 = vrot.slane %v418, 4
      %v421 = vor.u32 %v420, %v416
      %v422 = vrot.slane %v421, 4
      %v424 = vshll.u32 %v339, 16
      %v426 = vrot.slane %v424, 5
      %v427 = vsel %vm373, %v422, %v426
      %v428 = vshrl.u32 %v339, 16
      %v430 = vrot.slane %v428, 4
      %v431 = vor.u32 %v430, %v426
      %v432 = vrot.slane %v431, 4
      %v434 = vshll.u32 %v340, 16
      %v436 = vrot.slane %v434, 5
      %v437 = vsel %vm373, %v432, %v436
      %v438 = vshrl.u32 %v340, 16
      %v440 = vrot.slane %v438, 4
      %v441 = vor.u32 %v440, %v436
      %v442 = vrot.slane %v441, 4
      %v444 = vshll.u32 %v341, 16
      %v446 = vrot.slane %v444, 5
      %v447 = vsel %vm373, %v442, %v446
      %v448 = vshrl.u32 %v341, 16
      %v450 = vrot.slane %v448, 4
      %v451 = vor.u32 %v450, %v446
      %v452 = vrot.slane %v451, 4
      %v454 = vshll.u32 %v342, 16
      %v456 = vrot.slane %v454, 5
      %v457 = vsel %vm373, %v452, %v456
      %v458 = vshrl.u32 %v342, 16
      %v460 = vrot.slane %v458, 4
      %v461 = vor.u32 %v460, %v456
      %v462 = vrot.slane %v461, 4
      %v464 = vshll.u32 %v343, 16
      %v466 = vrot.slane %v464, 5
      %v467 = vsel %vm373, %v462, %v466
      %v468 = vshrl.u32 %v343, 16
      %v470 = vrot.slane %v468, 4
      %v471 = vor.u32 %v470, %v466
      %v472 = vrot.slane %v471, 4
      %v474 = vshll.u32 %v344, 16
      %v476 = vrot.slane %v474, 5
      %v477 = vsel %vm373, %v472, %v476
      %v478 = vshrl.u32 %v344, 16
      %v480 = vrot.slane %v478, 4
      %v481 = vor.u32 %v480, %v476
      %v482 = vrot.slane %v481, 4
      %v484 = vshll.u32 %v345, 16
      %v486 = vrot.slane %v484, 5
      %v487 = vsel %vm373, %v482, %v486
      %v488 = vshrl.u32 %v345, 16
      %v490 = vrot.slane %v488, 4
      %v491 = vor.u32 %v490, %v486
      %v492 = vrot.slane %v491, 4
      %v494 = vshll.u32 %v346, 16
      %v496 = vrot.slane %v494, 5
      %v497 = vsel %vm373, %v492, %v496
      %v498 = vshrl.u32 %v346, 16
      %v500 = vrot.slane %v498, 4
      %v501 = vor.u32 %v500, %v496
      %v502 = vrot.slane %v501, 4
      %v504 = vshll.u32 %v347, 16
      %v506 = vrot.slane %v504, 5
      %v507 = vsel %vm373, %v502, %v506
      %v508 = vshrl.u32 %v347, 16
      %v510 = vrot.slane %v508, 4
      %v511 = vor.u32 %v510, %v506
      %v512 = vrot.slane %v511, 4
      %v514 = vshll.u32 %v348, 16
      %v516 = vrot.slane %v514, 5
      %v517 = vsel %vm373, %v512, %v516
      %v518 = vshrl.u32 %v348, 16
      %v520 = vrot.slane %v518, 4
      %v521 = vor.u32 %v520, %v516
      %v522 = vrot.slane %v521, 4
      %v524 = vshll.u32 %v349, 16
      %v526 = vrot.slane %v524, 5
      %v527 = vsel %vm373, %v522, %v526
      %v528 = vshrl.u32 %v349, 16
      %v530 = vrot.slane %v528, 4
      %v531 = vor.u32 %v530, %v526
      %v532 = vrot.slane %v531, 4
      %v534 = vshll.u32 %v350, 16
      %v536 = vrot.slane %v534, 5
      %v537 = vsel %vm373, %v532, %v536
      %v538 = vshrl.u32 %v350, 16
      %v540 = vrot.slane %v538, 4
      %v541 = vor.u32 %v540, %v536
      %v542 = vrot.slane %v541, 4
      %v544 = vshll.u32 %v351, 16
      %v546 = vrot.slane %v544, 5
      %v547 = vsel %vm373, %v542, %v546
      %v548 = vshrl.u32 %v351, 16
      %v550 = vrot.slane %v548, 4
      %v551 = vor.u32 %v550, %v546
      %v552 = vrot.slane %v551, 4
      %v554 = vshll.u32 %v352, 16
      %v556 = vrot.slane %v554, 5
      %v557 = vsel %vm373, %v552, %v556
      %v558 = vshrl.u32 %v352, 16
      %v560 = vrot.slane %v558, 4
      %v561 = vor.u32 %v560, %v556
      %v562 = vrot.slane %v561, 4
      %v564 = vshll.u32 %v353, 16
      %v566 = vrot.slane %v564, 5
      %v567 = vsel %vm373, %v562, %v566
      %v568 = vshrl.u32 %v353, 16
      %v570 = vrot.slane %v568, 4
      %v571 = vor.u32 %v570, %v566
      %v572 = vrot.slane %v571, 4
      %v574 = vshll.u32 %v354, 16
      %v576 = vrot.slane %v574, 5
      %v577 = vsel %vm373, %v572, %v576
      %v578 = vshrl.u32 %v354, 16
      %v580 = vrot.slane %v578, 4
      %v581 = vor.u32 %v580, %v576
      %v582 = vrot.slane %v581, 4
      %v584 = vshll.u32 %v355, 16
      %v586 = vrot.slane %v584, 5
      %v587 = vsel %vm373, %v582, %v586
      %v588 = vshrl.u32 %v355, 16
      %v590 = vrot.slane %v588, 4
      %v591 = vor.u32 %v590, %v586
      %v592 = vrot.slane %v591, 4
      %v594 = vshll.u32 %v356, 16
      %v596 = vrot.slane %v594, 5
      %v597 = vsel %vm373, %v592, %v596
      %v598 = vshrl.u32 %v356, 16
      %v600 = vrot.slane %v598, 4
      %v601 = vor.u32 %v600, %v596
      %v602 = vrot.slane %v601, 4
      %v604 = vshll.u32 %v357, 16
      %v606 = vrot.slane %v604, 5
      %v607 = vsel %vm373, %v602, %v606
      %v608 = vshrl.u32 %v357, 16
      %v610 = vrot.slane %v608, 4
      %v611 = vor.u32 %v610, %v606
      %v612 = vrot.slane %v611, 4
      %v614 = vshll.u32 %v358, 16
      %v616 = vrot.slane %v614, 5
      %v617 = vsel %vm373, %v612, %v616
      %v618 = vshrl.u32 %v358, 16
      %v620 = vrot.slane %v618, 4
      %v621 = vor.u32 %v620, %v616
      %v622 = vrot.slane %v621, 4
      %v624 = vshll.u32 %v359, 16
      %v626 = vrot.slane %v624, 5
      %v627 = vsel %vm373, %v622, %v626
      %v628 = vshrl.u32 %v359, 16
      %v630 = vrot.slane %v628, 4
      %v631 = vor.u32 %v630, %v626
      %v632 = vrot.slane %v631, 4
      %v634 = vshll.u32 %v360, 16
      %v636 = vrot.slane %v634, 5
      %v637 = vsel %vm373, %v632, %v636
      %v638 = vshrl.u32 %v360, 16
      %v640 = vrot.slane %v638, 4
      %v641 = vor.u32 %v640, %v636
      %v642 = vrot.slane %v641, 4
      %v644 = vshll.u32 %v361, 16
      %v646 = vrot.slane %v644, 5
      %v647 = vsel %vm373, %v642, %v646
      %v648 = vshrl.u32 %v361, 16
      %v650 = vrot.slane %v648, 4
      %v651 = vor.u32 %v650, %v646
      %v652 = vrot.slane %v651, 4
      %v654 = vshll.u32 %v362, 16
      %v656 = vrot.slane %v654, 5
      %v657 = vsel %vm373, %v652, %v656
      %v658 = vshrl.u32 %v362, 16
      %v660 = vrot.slane %v658, 4
      %v661 = vor.u32 %v660, %v656
      %v662 = vrot.slane %v661, 4
      %v664 = vshll.u32 %v363, 16
      %v666 = vrot.slane %v664, 5
      %v667 = vsel %vm373, %v662, %v666
      %v668 = vshrl.u32 %v363, 16
      %v670 = vrot.slane %v668, 4
      %v671 = vor.u32 %v670, %v666
      %v672 = vrot.slane %v671, 4
      %v674 = vshll.u32 %v364, 16
      %v676 = vrot.slane %v674, 5
      %v677 = vsel %vm373, %v672, %v676
      %v678 = vshrl.u32 %v364, 16
      %v680 = vrot.slane %v678, 4
      %v681 = vor.u32 %v680, %v676
      %v682 = vrot.slane %v681, 4
      %v684 = vshll.u32 %v365, 16
      %v686 = vrot.slane %v684, 5
      %v687 = vsel %vm373, %v682, %v686
      %v688 = vshrl.u32 %v365, 16
      %v690 = vrot.slane %v688, 4
      %v691 = vor.u32 %v690, %v686
      %v692 = vrot.slane %v691, 4
      %v694 = vshll.u32 %v366, 16
      %v696 = vrot.slane %v694, 5
      %v697 = vsel %vm373, %v692, %v696
      %v698 = vshrl.u32 %v366, 16
      %v700 = vrot.slane %v698, 4
      %v701 = vor.u32 %v700, %v696
      %v702 = vrot.slane %v701, 4
      %v704 = vshll.u32 %v367, 16
      %v706 = vrot.slane %v704, 5
      %v707 = vsel %vm373, %v702, %v706
      %v708 = vshrl.u32 %v367, 16
      %v710 = vrot.slane %v708, 4
      %v711 = vor.u32 %v710, %v706
      %v712 = vrot.slane %v711, 4
      %v714 = vshll.u32 %v368, 16
      %v716 = vrot.slane %v714, 5
      %v717 = vsel %vm373, %v712, %v716
      %v718 = vshrl.u32 %v368, 16
      %v720 = vrot.slane %v718, 4
      %v721 = vor.u32 %v720, %v716
      %v722 = vrot.slane %v721, 4
      %v724 = vshll.u32 %v369, 16
      %v726 = vrot.slane %v724, 5
      %v727 = vsel %vm373, %v722, %v726
      %v728 = vshrl.u32 %v369, 16
      %v730 = vrot.slane %v728, 4
      %v731 = vor.u32 %v730, %v726
      %v732 = vrot.slane %v731, 4
      %v734 = vshll.u32 %v370, 16
      %v736 = vrot.slane %v734, 5
      %v737 = vsel %vm373, %v732, %v736
      %738 = vrot.lane.b32.xlu0 %v387, 8
      %v739 = vpop.permute.xlu0 %738
      %740 = vrot.lane.b32.xlu0 %v397, 8
      %v741 = vpop.permute.xlu0 %740
      %742 = vrot.lane.b32.xlu0 %v407, 8
      %v743 = vpop.permute.xlu0 %742
      %744 = vrot.lane.b32.xlu0 %v417, 8
      %v745 = vpop.permute.xlu0 %744
      %746 = vrot.lane.b32.xlu0 %v427, 8
      %v747 = vpop.permute.xlu0 %746
      %748 = vrot.lane.b32.xlu0 %v437, 8
      %v749 = vpop.permute.xlu0 %748
      %750 = vrot.lane.b32.xlu0 %v447, 8
      %v751 = vpop.permute.xlu0 %750
      %752 = vrot.lane.b32.xlu0 %v457, 8
      %v753 = vpop.permute.xlu0 %752
      %754 = vrot.lane.b32.xlu0 %v467, 8
      %v755 = vpop.permute.xlu0 %754
      %756 = vrot.lane.b32.xlu0 %v477, 8
      %v757 = vpop.permute.xlu0 %756
      %758 = vrot.lane.b32.xlu0 %v487, 8
      %v759 = vpop.permute.xlu0 %758
      %760 = vrot.lane.b32.xlu0 %v497, 8
      %v761 = vpop.permute.xlu0 %760
      %762 = vrot.lane.b32.xlu0 %v507, 8
      %v763 = vpop.permute.xlu0 %762
      %764 = vrot.lane.b32.xlu0 %v517, 8
      %v765 = vpop.permute.xlu0 %764
      %766 = vrot.lane.b32.xlu0 %v527, 8
      %v767 = vpop.permute.xlu0 %766
      %768 = vrot.lane.b32.xlu0 %v537, 8
      %v769 = vpop.permute.xlu0 %768
      %770 = vrot.lane.b32.xlu0 %v547, 8
      %v771 = vpop.permute.xlu0 %770
      %772 = vrot.lane.b32.xlu0 %v557, 8
      %v773 = vpop.permute.xlu0 %772
      %774 = vrot.lane.b32.xlu0 %v567, 8
      %v775 = vpop.permute.xlu0 %774
      %776 = vrot.lane.b32.xlu0 %v577, 8
      %v777 = vpop.permute.xlu0 %776
      %778 = vrot.lane.b32.xlu0 %v587, 8
      %v779 = vpop.permute.xlu0 %778
      %780 = vrot.lane.b32.xlu0 %v597, 8
      %v781 = vpop.permute.xlu0 %780
      %782 = vrot.lane.b32.xlu0 %v607, 8
      %v783 = vpop.permute.xlu0 %782
      %784 = vrot.lane.b32.xlu0 %v617, 8
      %v785 = vpop.permute.xlu0 %784
      %786 = vrot.lane.b32.xlu0 %v627, 8
      %v787 = vpop.permute.xlu0 %786
      %788 = vrot.lane.b32.xlu0 %v637, 8
      %v789 = vpop.permute.xlu0 %788
      %790 = vrot.lane.b32.xlu0 %v647, 8
      %v791 = vpop.permute.xlu0 %790
      %792 = vrot.lane.b32.xlu0 %v657, 8
      %v793 = vpop.permute.xlu0 %792
      %794 = vrot.lane.b32.xlu0 %v667, 8
      %v795 = vpop.permute.xlu0 %794
      %796 = vrot.lane.b32.xlu0 %v677, 8
      %v797 = vpop.permute.xlu0 %796
      %798 = vrot.lane.b32.xlu0 %v687, 8
      %v799 = vpop.permute.xlu0 %798
      %800 = vrot.lane.b32.xlu0 %v697, 8
      %v801 = vpop.permute.xlu0 %800
      %802 = vrot.lane.b32.xlu0 %v707, 8
      %v803 = vpop.permute.xlu0 %802
      %804 = vrot.lane.b32.xlu0 %v717, 8
      %v805 = vpop.permute.xlu0 %804
      %806 = vrot.lane.b32.xlu0 %v727, 8
      %v807 = vpop.permute.xlu0 %806
      %808 = vrot.lane.b32.xlu0 %v737, 8
      %v809 = vpop.permute.xlu0 %808
      %vm846 = vcmask 126016
      %847 = vst.msk [vmem:[#allocation2] sm:$0xf] %vm846, %v739
      %848 = vst.msk [vmem:[#allocation2 + $0x4] sm:$0xf] %vm846, %v741
      %849 = vst.msk [vmem:[#allocation2 + $0x8] sm:$0xf] %vm846, %v743
      %850 = vst.msk [vmem:[#allocation2 + $0xc] sm:$0xf] %vm846, %v745
      %851 = vst.msk [vmem:[#allocation2 + $0x10] sm:$0xf] %vm846, %v747
      %852 = vst.msk [vmem:[#allocation2 + $0x14] sm:$0xf] %vm846, %v749
      %853 = vst.msk [vmem:[#allocation2 + $0x18] sm:$0xf] %vm846, %v751
      %854 = vst.msk [vmem:[#allocation2 + $0x1c] sm:$0xf] %vm846, %v753
      %855 = vst.msk [vmem:[#allocation2 + $0x20] sm:$0xf] %vm846, %v755
      %856 = vst.msk [vmem:[#allocation2 + $0x24] sm:$0xf] %vm846, %v757
      %857 = vst.msk [vmem:[#allocation2 + $0x28] sm:$0xf] %vm846, %v759
      %858 = vst.msk [vmem:[#allocation2 + $0x2c] sm:$0xf] %vm846, %v761
      %859 = vst.msk [vmem:[#allocation2 + $0x30] sm:$0xf] %vm846, %v763
      %860 = vst.msk [vmem:[#allocation2 + $0x34] sm:$0xf] %vm846, %v765
      %861 = vst.msk [vmem:[#allocation2 + $0x38] sm:$0xf] %vm846, %v767
      %862 = vst.msk [vmem:[#allocation2 + $0x3c] sm:$0xf] %vm846, %v769
      %863 = vst.msk [vmem:[#allocation2 + $0x40] sm:$0xf] %vm846, %v771
      %864 = vst.msk [vmem:[#allocation2 + $0x44] sm:$0xf] %vm846, %v773
      %865 = vst.msk [vmem:[#allocation2 + $0x48] sm:$0xf] %vm846, %v775
      %866 = vst.msk [vmem:[#allocation2 + $0x4c] sm:$0xf] %vm846, %v777
      %867 = vst.msk [vmem:[#allocation2 + $0x50] sm:$0xf] %vm846, %v779
      %868 = vst.msk [vmem:[#allocation2 + $0x54] sm:$0xf] %vm846, %v781
      %869 = vst.msk [vmem:[#allocation2 + $0x58] sm:$0xf] %vm846, %v783
      %870 = vst.msk [vmem:[#allocation2 + $0x5c] sm:$0xf] %vm846, %v785
      %871 = vst.msk [vmem:[#allocation2 + $0x60] sm:$0xf] %vm846, %v787
      %872 = vst.msk [vmem:[#allocation2 + $0x64] sm:$0xf] %vm846, %v789
      %873 = vst.msk [vmem:[#allocation2 + $0x68] sm:$0xf] %vm846, %v791
      %874 = vst.msk [vmem:[#allocation2 + $0x6c] sm:$0xf] %vm846, %v793
      %875 = vst.msk [vmem:[#allocation2 + $0x70] sm:$0xf] %vm846, %v795
      %876 = vst.msk [vmem:[#allocation2 + $0x74] sm:$0xf] %vm846, %v797
      %877 = vst.msk [vmem:[#allocation2 + $0x78] sm:$0xf] %vm846, %v799
      %878 = vst.msk [vmem:[#allocation2 + $0x7c] sm:$0xf] %vm846, %v801
      %879 = vst.msk [vmem:[#allocation2 + $0x80] sm:$0xf] %vm846, %v803
      %880 = vst.msk [vmem:[#allocation2 + $0x84] sm:$0xf] %vm846, %v805
      %881 = vst.msk [vmem:[#allocation2 + $0x88] sm:$0xf] %vm846, %v807
      %882 = vst.msk [vmem:[#allocation2 + $0x8c] sm:$0xf] %vm846, %v809
      %v883 = vld [vmem:[%s218] sm:$0xe]
      %v884 = vld [vmem:[%s218 + $0x4] sm:$0xf]
      %v885 = vld [vmem:[%s218 + $0x8] sm:$0xf]
      %v886 = vld [vmem:[%s218 + $0xc] sm:$0xf]
      %v887 = vld [vmem:[%s218 + $0x10] sm:$0xf]
      %v888 = vld [vmem:[%s218 + $0x14] sm:$0xf]
      %v889 = vld [vmem:[%s218 + $0x18] sm:$0xf]
      %v890 = vld [vmem:[%s218 + $0x1c] sm:$0xf]
      %v891 = vld [vmem:[%s218 + $0x20] sm:$0xf]
      %v892 = vld [vmem:[%s218 + $0x24] sm:$0xf]
      %v893 = vld [vmem:[%s218 + $0x28] sm:$0xf]
      %v894 = vld [vmem:[%s218 + $0x2c] sm:$0xf]
      %v895 = vld [vmem:[%s218 + $0x30] sm:$0xf]
      %v896 = vld [vmem:[%s218 + $0x34] sm:$0xf]
      %v897 = vld [vmem:[%s218 + $0x38] sm:$0xf]
      %v898 = vld [vmem:[%s218 + $0x3c] sm:$0xf]
      %v899 = vld [vmem:[%s218 + $0x40] sm:$0xf]
      %v900 = vld [vmem:[%s218 + $0x44] sm:$0xf]
      %v901 = vld [vmem:[%s218 + $0x48] sm:$0xf]
      %v902 = vld [vmem:[%s218 + $0x4c] sm:$0xf]
      %v903 = vld [vmem:[%s218 + $0x50] sm:$0xf]
      %v904 = vld [vmem:[%s218 + $0x54] sm:$0xf]
      %v905 = vld [vmem:[%s218 + $0x58] sm:$0xf]
      %v906 = vld [vmem:[%s218 + $0x5c] sm:$0xf]
      %v907 = vld [vmem:[%s218 + $0x60] sm:$0xf]
      %v908 = vld [vmem:[%s218 + $0x64] sm:$0xf]
      %v909 = vld [vmem:[%s218 + $0x68] sm:$0xf]
      %v910 = vld [vmem:[%s218 + $0x6c] sm:$0xf]
      %v911 = vld [vmem:[%s218 + $0x70] sm:$0xf]
      %v912 = vld [vmem:[%s218 + $0x74] sm:$0xf]
      %v913 = vld [vmem:[%s218 + $0x78] sm:$0xf]
      %v914 = vld [vmem:[%s218 + $0x7c] sm:$0xf]
      %v915 = vld [vmem:[%s218 + $0x80] sm:$0xf]
      %v916 = vld [vmem:[%s218 + $0x84] sm:$0xf]
      %v917 = vld [vmem:[%s218 + $0x88] sm:$0xf]
      %v918 = vld [vmem:[%s218 + $0x8c] sm:$0xf]
      %v919 = vld [vmem:[%s218 + $0x90] sm:$0x1]
      %vm957 = vcmask 1042432
      %vm958 = vcmask 1046532
      %vm959 = vmor %vm957, %vm958
      %v960 = vrot.slane %v883, 5
      %v961 = vrot.slane %v960, 4
      %v962 = vrot.slane %v884, 5
      %v963 = vsel %vm959, %v961, %v962
      %v964 = vrot.slane %v962, 4
      %v965 = vrot.slane %v885, 5
      %v966 = vsel %vm959, %v964, %v965
      %v967 = vrot.slane %v965, 4
      %v968 = vrot.slane %v886, 5
      %v969 = vsel %vm959, %v967, %v968
      %v970 = vrot.slane %v968, 4
      %v971 = vrot.slane %v887, 5
      %v972 = vsel %vm959, %v970, %v971
      %v973 = vrot.slane %v971, 4
      %v974 = vrot.slane %v888, 5
      %v975 = vsel %vm959, %v973, %v974
      %v976 = vrot.slane %v974, 4
      %v977 = vrot.slane %v889, 5
      %v978 = vsel %vm959, %v976, %v977
      %v979 = vrot.slane %v977, 4
      %v980 = vrot.slane %v890, 5
      %v981 = vsel %vm959, %v979, %v980
      %v982 = vrot.slane %v980, 4
      %v983 = vrot.slane %v891, 5
      %v984 = vsel %vm959, %v982, %v983
      %v985 = vrot.slane %v983, 4
      %v986 = vrot.slane %v892, 5
      %v987 = vsel %vm959, %v985, %v986
      %v988 = vrot.slane %v986, 4
      %v989 = vrot.slane %v893, 5
      %v990 = vsel %vm959, %v988, %v989
      %v991 = vrot.slane %v989, 4
      %v992 = vrot.slane %v894, 5
      %v993 = vsel %vm959, %v991, %v992
      %v994 = vrot.slane %v992, 4
      %v995 = vrot.slane %v895, 5
      %v996 = vsel %vm959, %v994, %v995
      %v997 = vrot.slane %v995, 4
      %v998 = vrot.slane %v896, 5
      %v999 = vsel %vm959, %v997, %v998
      %v1000 = vrot.slane %v998, 4
      %v1001 = vrot.slane %v897, 5
      %v1002 = vsel %vm959, %v1000, %v1001
      %v1003 = vrot.slane %v1001, 4
      %v1004 = vrot.slane %v898, 5
      %v1005 = vsel %vm959, %v1003, %v1004
      %v1006 = vrot.slane %v1004, 4
      %v1007 = vrot.slane %v899, 5
      %v1008 = vsel %vm959, %v1006, %v1007
      %v1009 = vrot.slane %v1007, 4
      %v1010 = vrot.slane %v900, 5
      %v1011 = vsel %vm959, %v1009, %v1010
      %v1012 = vrot.slane %v1010, 4
      %v1013 = vrot.slane %v901, 5
      %v1014 = vsel %vm959, %v1012, %v1013
      %v1015 = vrot.slane %v1013, 4
      %v1016 = vrot.slane %v902, 5
      %v1017 = vsel %vm959, %v1015, %v1016
      %v1018 = vrot.slane %v1016, 4
      %v1019 = vrot.slane %v903, 5
      %v1020 = vsel %vm959, %v1018, %v1019
      %v1021 = vrot.slane %v1019, 4
      %v1022 = vrot.slane %v904, 5
      %v1023 = vsel %vm959, %v1021, %v1022
      %v1024 = vrot.slane %v1022, 4
      %v1025 = vrot.slane %v905, 5
      %v1026 = vsel %vm959, %v1024, %v1025
      %v1027 = vrot.slane %v1025, 4
      %v1028 = vrot.slane %v906, 5
      %v1029 = vsel %vm959, %v1027, %v1028
      %v1030 = vrot.slane %v1028, 4
      %v1031 = vrot.slane %v907, 5
      %v1032 = vsel %vm959, %v1030, %v1031
      %v1033 = vrot.slane %v1031, 4
      %v1034 = vrot.slane %v908, 5
      %v1035 = vsel %vm959, %v1033, %v1034
      %v1036 = vrot.slane %v1034, 4
      %v1037 = vrot.slane %v909, 5
      %v1038 = vsel %vm959, %v1036, %v1037
      %v1039 = vrot.slane %v1037, 4
      %v1040 = vrot.slane %v910, 5
      %v1041 = vsel %vm959, %v1039, %v1040
      %v1042 = vrot.slane %v1040, 4
      %v1043 = vrot.slane %v911, 5
      %v1044 = vsel %vm959, %v1042, %v1043
      %v1045 = vrot.slane %v1043, 4
      %v1046 = vrot.slane %v912, 5
      %v1047 = vsel %vm959, %v1045, %v1046
      %v1048 = vrot.slane %v1046, 4
      %v1049 = vrot.slane %v913, 5
      %v1050 = vsel %vm959, %v1048, %v1049
      %v1051 = vrot.slane %v1049, 4
      %v1052 = vrot.slane %v914, 5
      %v1053 = vsel %vm959, %v1051, %v1052
      %v1054 = vrot.slane %v1052, 4
      %v1055 = vrot.slane %v915, 5
      %v1056 = vsel %vm959, %v1054, %v1055
      %v1057 = vrot.slane %v1055, 4
      %v1058 = vrot.slane %v916, 5
      %v1059 = vsel %vm959, %v1057, %v1058
      %v1060 = vrot.slane %v1058, 4
      %v1061 = vrot.slane %v917, 5
      %v1062 = vsel %vm959, %v1060, %v1061
      %v1063 = vrot.slane %v1061, 4
      %v1064 = vrot.slane %v918, 5
      %v1065 = vsel %vm959, %v1063, %v1064
      %v1066 = vrot.slane %v1064, 4
      %v1067 = vrot.slane %v919, 5
      %v1068 = vsel %vm959, %v1066, %v1067
      %1069 = vrot.lane.b32.xlu0 %v963, 16
      %v1070 = vpop.permute.xlu0 %1069
      %1071 = vrot.lane.b32.xlu0 %v966, 16
      %v1072 = vpop.permute.xlu0 %1071
      %1073 = vrot.lane.b32.xlu0 %v969, 16
      %v1074 = vpop.permute.xlu0 %1073
      %1075 = vrot.lane.b32.xlu0 %v972, 16
      %v1076 = vpop.permute.xlu0 %1075
      %1077 = vrot.lane.b32.xlu0 %v975, 16
      %v1078 = vpop.permute.xlu0 %1077
      %1079 = vrot.lane.b32.xlu0 %v978, 16
      %v1080 = vpop.permute.xlu0 %1079
      %1081 = vrot.lane.b32.xlu0 %v981, 16
      %v1082 = vpop.permute.xlu0 %1081
      %1083 = vrot.lane.b32.xlu0 %v984, 16
      %v1084 = vpop.permute.xlu0 %1083
      %1085 = vrot.lane.b32.xlu0 %v987, 16
      %v1086 = vpop.permute.xlu0 %1085
      %1087 = vrot.lane.b32.xlu0 %v990, 16
      %v1088 = vpop.permute.xlu0 %1087
      %1089 = vrot.lane.b32.xlu0 %v993, 16
      %v1090 = vpop.permute.xlu0 %1089
      %1091 = vrot.lane.b32.xlu0 %v996, 16
      %v1092 = vpop.permute.xlu0 %1091
      %1093 = vrot.lane.b32.xlu0 %v999, 16
      %v1094 = vpop.permute.xlu0 %1093
      %1095 = vrot.lane.b32.xlu0 %v1002, 16
      %v1096 = vpop.permute.xlu0 %1095
      %1097 = vrot.lane.b32.xlu0 %v1005, 16
      %v1098 = vpop.permute.xlu0 %1097
      %1099 = vrot.lane.b32.xlu0 %v1008, 16
      %v1100 = vpop.permute.xlu0 %1099
      %1101 = vrot.lane.b32.xlu0 %v1011, 16
      %v1102 = vpop.permute.xlu0 %1101
      %1103 = vrot.lane.b32.xlu0 %v1014, 16
      %v1104 = vpop.permute.xlu0 %1103
      %1105 = vrot.lane.b32.xlu0 %v1017, 16
      %v1106 = vpop.permute.xlu0 %1105
      %1107 = vrot.lane.b32.xlu0 %v1020, 16
      %v1108 = vpop.permute.xlu0 %1107
      %1109 = vrot.lane.b32.xlu0 %v1023, 16
      %v1110 = vpop.permute.xlu0 %1109
      %1111 = vrot.lane.b32.xlu0 %v1026, 16
      %v1112 = vpop.permute.xlu0 %1111
      %1113 = vrot.lane.b32.xlu0 %v1029, 16
      %v1114 = vpop.permute.xlu0 %1113
      %1115 = vrot.lane.b32.xlu0 %v1032, 16
      %v1116 = vpop.permute.xlu0 %1115
      %1117 = vrot.lane.b32.xlu0 %v1035, 16
      %v1118 = vpop.permute.xlu0 %1117
      %1119 = vrot.lane.b32.xlu0 %v1038, 16
      %v1120 = vpop.permute.xlu0 %1119
      %1121 = vrot.lane.b32.xlu0 %v1041, 16
      %v1122 = vpop.permute.xlu0 %1121
      %1123 = vrot.lane.b32.xlu0 %v1044, 16
      %v1124 = vpop.permute.xlu0 %1123
      %1125 = vrot.lane.b32.xlu0 %v1047, 16
      %v1126 = vpop.permute.xlu0 %1125
      %1127 = vrot.lane.b32.xlu0 %v1050, 16
      %v1128 = vpop.permute.xlu0 %1127
      %1129 = vrot.lane.b32.xlu0 %v1053, 16
      %v1130 = vpop.permute.xlu0 %1129
      %1131 = vrot.lane.b32.xlu0 %v1056, 16
      %v1132 = vpop.permute.xlu0 %1131
      %1133 = vrot.lane.b32.xlu0 %v1059, 16
      %v1134 = vpop.permute.xlu0 %1133
      %1135 = vrot.lane.b32.xlu0 %v1062, 16
      %v1136 = vpop.permute.xlu0 %1135
      %1137 = vrot.lane.b32.xlu0 %v1065, 16
      %v1138 = vpop.permute.xlu0 %1137
      %1139 = vrot.lane.b32.xlu0 %v1068, 16
      %v1140 = vpop.permute.xlu0 %1139
      %vm1177 = vcmask 191616
      %1178 = vst.msk [vmem:[#allocation2] sm:$0xf] %vm1177, %v1070
      %1179 = vst.msk [vmem:[#allocation2 + $0x4] sm:$0xf] %vm1177, %v1072
      %1180 = vst.msk [vmem:[#allocation2 + $0x8] sm:$0xf] %vm1177, %v1074
      %1181 = vst.msk [vmem:[#allocation2 + $0xc] sm:$0xf] %vm1177, %v1076
      %1182 = vst.msk [vmem:[#allocation2 + $0x10] sm:$0xf] %vm1177, %v1078
      %1183 = vst.msk [vmem:[#allocation2 + $0x14] sm:$0xf] %vm1177, %v1080
      %1184 = vst.msk [vmem:[#allocation2 + $0x18] sm:$0xf] %vm1177, %v1082
      %1185 = vst.msk [vmem:[#allocation2 + $0x1c] sm:$0xf] %vm1177, %v1084
      %1186 = vst.msk [vmem:[#allocation2 + $0x20] sm:$0xf] %vm1177, %v1086
      %1187 = vst.msk [vmem:[#allocation2 + $0x24] sm:$0xf] %vm1177, %v1088
      %1188 = vst.msk [vmem:[#allocation2 + $0x28] sm:$0xf] %vm1177, %v1090
      %1189 = vst.msk [vmem:[#allocation2 + $0x2c] sm:$0xf] %vm1177, %v1092
      %1190 = vst.msk [vmem:[#allocation2 + $0x30] sm:$0xf] %vm1177, %v1094
      %1191 = vst.msk [vmem:[#allocation2 + $0x34] sm:$0xf] %vm1177, %v1096
      %1192 = vst.msk [vmem:[#allocation2 + $0x38] sm:$0xf] %vm1177, %v1098
      %1193 = vst.msk [vmem:[#allocation2 + $0x3c] sm:$0xf] %vm1177, %v1100
      %1194 = vst.msk [vmem:[#allocation2 + $0x40] sm:$0xf] %vm1177, %v1102
      %1195 = vst.msk [vmem:[#allocation2 + $0x44] sm:$0xf] %vm1177, %v1104
      %1196 = vst.msk [vmem:[#allocation2 + $0x48] sm:$0xf] %vm1177, %v1106
      %1197 = vst.msk [vmem:[#allocation2 + $0x4c] sm:$0xf] %vm1177, %v1108
      %1198 = vst.msk [vmem:[#allocation2 + $0x50] sm:$0xf] %vm1177, %v1110
      %1199 = vst.msk [vmem:[#allocation2 + $0x54] sm:$0xf] %vm1177, %v1112
      %1200 = vst.msk [vmem:[#allocation2 + $0x58] sm:$0xf] %vm1177, %v1114
      %1201 = vst.msk [vmem:[#allocation2 + $0x5c] sm:$0xf] %vm1177, %v1116
      %1202 = vst.msk [vmem:[#allocation2 + $0x60] sm:$0xf] %vm1177, %v1118
      %1203 = vst.msk [vmem:[#allocation2 + $0x64] sm:$0xf] %vm1177, %v1120
      %1204 = vst.msk [vmem:[#allocation2 + $0x68] sm:$0xf] %vm1177, %v1122
      %1205 = vst.msk [vmem:[#allocation2 + $0x6c] sm:$0xf] %vm1177, %v1124
      %1206 = vst.msk [vmem:[#allocation2 + $0x70] sm:$0xf] %vm1177, %v1126
      %1207 = vst.msk [vmem:[#allocation2 + $0x74] sm:$0xf] %vm1177, %v1128
      %1208 = vst.msk [vmem:[#allocation2 + $0x78] sm:$0xf] %vm1177, %v1130
      %1209 = vst.msk [vmem:[#allocation2 + $0x7c] sm:$0xf] %vm1177, %v1132
      %1210 = vst.msk [vmem:[#allocation2 + $0x80] sm:$0xf] %vm1177, %v1134
      %1211 = vst.msk [vmem:[#allocation2 + $0x84] sm:$0xf] %vm1177, %v1136
      %1212 = vst.msk [vmem:[#allocation2 + $0x88] sm:$0xf] %vm1177, %v1138
      %1213 = vst.msk [vmem:[#allocation2 + $0x8c] sm:$0xf] %vm1177, %v1140
      %v1214 = vld [vmem:[%s218 + $0x8] sm:$0xe]
      %v1215 = vld [vmem:[%s218 + $0xc] sm:$0xf]
      %v1216 = vld [vmem:[%s218 + $0x10] sm:$0xf]
      %v1217 = vld [vmem:[%s218 + $0x14] sm:$0xf]
      %v1218 = vld [vmem:[%s218 + $0x18] sm:$0xf]
      %v1219 = vld [vmem:[%s218 + $0x1c] sm:$0xf]
      %v1220 = vld [vmem:[%s218 + $0x20] sm:$0xf]
      %v1221 = vld [vmem:[%s218 + $0x24] sm:$0xf]
      %v1222 = vld [vmem:[%s218 + $0x28] sm:$0xf]
      %v1223 = vld [vmem:[%s218 + $0x2c] sm:$0xf]
      %v1224 = vld [vmem:[%s218 + $0x30] sm:$0xf]
      %v1225 = vld [vmem:[%s218 + $0x34] sm:$0xf]
      %v1226 = vld [vmem:[%s218 + $0x38] sm:$0xf]
      %v1227 = vld [vmem:[%s218 + $0x3c] sm:$0xf]
      %v1228 = vld [vmem:[%s218 + $0x40] sm:$0xf]
      %v1229 = vld [vmem:[%s218 + $0x44] sm:$0xf]
      %v1230 = vld [vmem:[%s218 + $0x48] sm:$0xf]
      %v1231 = vld [vmem:[%s218 + $0x4c] sm:$0xf]
      %v1232 = vld [vmem:[%s218 + $0x50] sm:$0xf]
      %v1233 = vld [vmem:[%s218 + $0x54] sm:$0xf]
      %v1234 = vld [vmem:[%s218 + $0x58] sm:$0xf]
      %v1235 = vld [vmem:[%s218 + $0x5c] sm:$0xf]
      %v1236 = vld [vmem:[%s218 + $0x60] sm:$0xf]
      %v1237 = vld [vmem:[%s218 + $0x64] sm:$0xf]
      %v1238 = vld [vmem:[%s218 + $0x68] sm:$0xf]
      %v1239 = vld [vmem:[%s218 + $0x6c] sm:$0xf]
      %v1240 = vld [vmem:[%s218 + $0x70] sm:$0xf]
      %v1241 = vld [vmem:[%s218 + $0x74] sm:$0xf]
      %v1242 = vld [vmem:[%s218 + $0x78] sm:$0xf]
      %v1243 = vld [vmem:[%s218 + $0x7c] sm:$0xf]
      %v1244 = vld [vmem:[%s218 + $0x80] sm:$0xf]
      %v1245 = vld [vmem:[%s218 + $0x84] sm:$0xf]
      %v1246 = vld [vmem:[%s218 + $0x88] sm:$0xf]
      %v1247 = vld [vmem:[%s218 + $0x8c] sm:$0xf]
      %v1248 = vld [vmem:[%s218 + $0x90] sm:$0xf]
      %v1249 = vld [vmem:[%s218 + $0x94] sm:$0xf]
      %v1250 = vld [vmem:[%s218 + $0x98] sm:$0x1]
      %v1288 = vrot.slane %v1214, 5
      %v1289 = vrot.slane %v1288, 4
      %v1290 = vrot.slane %v1215, 5
      %v1291 = vsel %vm959, %v1289, %v1290
      %v1292 = vrot.slane %v1290, 4
      %v1293 = vrot.slane %v1216, 5
      %v1294 = vsel %vm959, %v1292, %v1293
      %v1295 = vrot.slane %v1293, 4
      %v1296 = vrot.slane %v1217, 5
      %v1297 = vsel %vm959, %v1295, %v1296
      %v1298 = vrot.slane %v1296, 4
      %v1299 = vrot.slane %v1218, 5
      %v1300 = vsel %vm959, %v1298, %v1299
      %v1301 = vrot.slane %v1299, 4
      %v1302 = vrot.slane %v1219, 5
      %v1303 = vsel %vm959, %v1301, %v1302
      %v1304 = vrot.slane %v1302, 4
      %v1305 = vrot.slane %v1220, 5
      %v1306 = vsel %vm959, %v1304, %v1305
      %v1307 = vrot.slane %v1305, 4
      %v1308 = vrot.slane %v1221, 5
      %v1309 = vsel %vm959, %v1307, %v1308
      %v1310 = vrot.slane %v1308, 4
      %v1311 = vrot.slane %v1222, 5
      %v1312 = vsel %vm959, %v1310, %v1311
      %v1313 = vrot.slane %v1311, 4
      %v1314 = vrot.slane %v1223, 5
      %v1315 = vsel %vm959, %v1313, %v1314
      %v1316 = vrot.slane %v1314, 4
      %v1317 = vrot.slane %v1224, 5
      %v1318 = vsel %vm959, %v1316, %v1317
      %v1319 = vrot.slane %v1317, 4
      %v1320 = vrot.slane %v1225, 5
      %v1321 = vsel %vm959, %v1319, %v1320
      %v1322 = vrot.slane %v1320, 4
      %v1323 = vrot.slane %v1226, 5
      %v1324 = vsel %vm959, %v1322, %v1323
      %v1325 = vrot.slane %v1323, 4
      %v1326 = vrot.slane %v1227, 5
      %v1327 = vsel %vm959, %v1325, %v1326
      %v1328 = vrot.slane %v1326, 4
      %v1329 = vrot.slane %v1228, 5
      %v1330 = vsel %vm959, %v1328, %v1329
      %v1331 = vrot.slane %v1329, 4
      %v1332 = vrot.slane %v1229, 5
      %v1333 = vsel %vm959, %v1331, %v1332
      %v1334 = vrot.slane %v1332, 4
      %v1335 = vrot.slane %v1230, 5
      %v1336 = vsel %vm959, %v1334, %v1335
      %v1337 = vrot.slane %v1335, 4
      %v1338 = vrot.slane %v1231, 5
      %v1339 = vsel %vm959, %v1337, %v1338
      %v1340 = vrot.slane %v1338, 4
      %v1341 = vrot.slane %v1232, 5
      %v1342 = vsel %vm959, %v1340, %v1341
      %v1343 = vrot.slane %v1341, 4
      %v1344 = vrot.slane %v1233, 5
      %v1345 = vsel %vm959, %v1343, %v1344
      %v1346 = vrot.slane %v1344, 4
      %v1347 = vrot.slane %v1234, 5
      %v1348 = vsel %vm959, %v1346, %v1347
      %v1349 = vrot.slane %v1347, 4
      %v1350 = vrot.slane %v1235, 5
      %v1351 = vsel %vm959, %v1349, %v1350
      %v1352 = vrot.slane %v1350, 4
      %v1353 = vrot.slane %v1236, 5
      %v1354 = vsel %vm959, %v1352, %v1353
      %v1355 = vrot.slane %v1353, 4
      %v1356 = vrot.slane %v1237, 5
      %v1357 = vsel %vm959, %v1355, %v1356
      %v1358 = vrot.slane %v1356, 4
      %v1359 = vrot.slane %v1238, 5
      %v1360 = vsel %vm959, %v1358, %v1359
      %v1361 = vrot.slane %v1359, 4
      %v1362 = vrot.slane %v1239, 5
      %v1363 = vsel %vm959, %v1361, %v1362
      %v1364 = vrot.slane %v1362, 4
      %v1365 = vrot.slane %v1240, 5
      %v1366 = vsel %vm959, %v1364, %v1365
      %v1367 = vrot.slane %v1365, 4
      %v1368 = vrot.slane %v1241, 5
      %v1369 = vsel %vm959, %v1367, %v1368
      %v1370 = vrot.slane %v1368, 4
      %v1371 = vrot.slane %v1242, 5
      %v1372 = vsel %vm959, %v1370, %v1371
      %v1373 = vrot.slane %v1371, 4
      %v1374 = vrot.slane %v1243, 5
      %v1375 = vsel %vm959, %v1373, %v1374
      %v1376 = vrot.slane %v1374, 4
      %v1377 = vrot.slane %v1244, 5
      %v1378 = vsel %vm959, %v1376, %v1377
      %v1379 = vrot.slane %v1377, 4
      %v1380 = vrot.slane %v1245, 5
      %v1381 = vsel %vm959, %v1379, %v1380
      %v1382 = vrot.slane %v1380, 4
      %v1383 = vrot.slane %v1246, 5
      %v1384 = vsel %vm959, %v1382, %v1383
      %v1385 = vrot.slane %v1383, 4
      %v1386 = vrot.slane %v1247, 5
      %v1387 = vsel %vm959, %v1385, %v1386
      %v1388 = vrot.slane %v1386, 4
      %v1389 = vrot.slane %v1248, 5
      %v1390 = vsel %vm959, %v1388, %v1389
      %v1391 = vrot.slane %v1389, 4
      %v1392 = vrot.slane %v1249, 5
      %v1393 = vsel %vm959, %v1391, %v1392
      %v1394 = vrot.slane %v1392, 4
      %v1395 = vrot.slane %v1250, 5
      %v1396 = vsel %vm959, %v1394, %v1395
      %1397 = vrot.lane.b32.xlu0 %v1291, 24
      %v1398 = vpop.permute.xlu0 %1397
      %1399 = vrot.lane.b32.xlu0 %v1294, 24
      %v1400 = vpop.permute.xlu0 %1399
      %1401 = vrot.lane.b32.xlu0 %v1297, 24
      %v1402 = vpop.permute.xlu0 %1401
      %1403 = vrot.lane.b32.xlu0 %v1300, 24
      %v1404 = vpop.permute.xlu0 %1403
      %1405 = vrot.lane.b32.xlu0 %v1303, 24
      %v1406 = vpop.permute.xlu0 %1405
      %1407 = vrot.lane.b32.xlu0 %v1306, 24
      %v1408 = vpop.permute.xlu0 %1407
      %1409 = vrot.lane.b32.xlu0 %v1309, 24
      %v1410 = vpop.permute.xlu0 %1409
      %1411 = vrot.lane.b32.xlu0 %v1312, 24
      %v1412 = vpop.permute.xlu0 %1411
      %1413 = vrot.lane.b32.xlu0 %v1315, 24
      %v1414 = vpop.permute.xlu0 %1413
      %1415 = vrot.lane.b32.xlu0 %v1318, 24
      %v1416 = vpop.permute.xlu0 %1415
      %1417 = vrot.lane.b32.xlu0 %v1321, 24
      %v1418 = vpop.permute.xlu0 %1417
      %1419 = vrot.lane.b32.xlu0 %v1324, 24
      %v1420 = vpop.permute.xlu0 %1419
      %1421 = vrot.lane.b32.xlu0 %v1327, 24
      %v1422 = vpop.permute.xlu0 %1421
      %1423 = vrot.lane.b32.xlu0 %v1330, 24
      %v1424 = vpop.permute.xlu0 %1423
      %1425 = vrot.lane.b32.xlu0 %v1333, 24
      %v1426 = vpop.permute.xlu0 %1425
      %1427 = vrot.lane.b32.xlu0 %v1336, 24
      %v1428 = vpop.permute.xlu0 %1427
      %1429 = vrot.lane.b32.xlu0 %v1339, 24
      %v1430 = vpop.permute.xlu0 %1429
      %1431 = vrot.lane.b32.xlu0 %v1342, 24
      %v1432 = vpop.permute.xlu0 %1431
      %1433 = vrot.lane.b32.xlu0 %v1345, 24
      %v1434 = vpop.permute.xlu0 %1433
      %1435 = vrot.lane.b32.xlu0 %v1348, 24
      %v1436 = vpop.permute.xlu0 %1435
      %1437 = vrot.lane.b32.xlu0 %v1351, 24
      %v1438 = vpop.permute.xlu0 %1437
      %1439 = vrot.lane.b32.xlu0 %v1354, 24
      %v1440 = vpop.permute.xlu0 %1439
      %1441 = vrot.lane.b32.xlu0 %v1357, 24
      %v1442 = vpop.permute.xlu0 %1441
      %1443 = vrot.lane.b32.xlu0 %v1360, 24
      %v1444 = vpop.permute.xlu0 %1443
      %1445 = vrot.lane.b32.xlu0 %v1363, 24
      %v1446 = vpop.permute.xlu0 %1445
      %1447 = vrot.lane.b32.xlu0 %v1366, 24
      %v1448 = vpop.permute.xlu0 %1447
      %1449 = vrot.lane.b32.xlu0 %v1369, 24
      %v1450 = vpop.permute.xlu0 %1449
      %1451 = vrot.lane.b32.xlu0 %v1372, 24
      %v1452 = vpop.permute.xlu0 %1451
      %1453 = vrot.lane.b32.xlu0 %v1375, 24
      %v1454 = vpop.permute.xlu0 %1453
      %1455 = vrot.lane.b32.xlu0 %v1378, 24
      %v1456 = vpop.permute.xlu0 %1455
      %1457 = vrot.lane.b32.xlu0 %v1381, 24
      %v1458 = vpop.permute.xlu0 %1457
      %1459 = vrot.lane.b32.xlu0 %v1384, 24
      %v1460 = vpop.permute.xlu0 %1459
      %1461 = vrot.lane.b32.xlu0 %v1387, 24
      %v1462 = vpop.permute.xlu0 %1461
      %1463 = vrot.lane.b32.xlu0 %v1390, 24
      %v1464 = vpop.permute.xlu0 %1463
      %1465 = vrot.lane.b32.xlu0 %v1393, 24
      %v1466 = vpop.permute.xlu0 %1465
      %1467 = vrot.lane.b32.xlu0 %v1396, 24
      %v1468 = vpop.permute.xlu0 %1467
      %vm1505 = vcmask 257216
      %1506 = vst.msk [vmem:[#allocation2] sm:$0xf] %vm1505, %v1398
      %1507 = vst.msk [vmem:[#allocation2 + $0x4] sm:$0xf] %vm1505, %v1400
      %1508 = vst.msk [vmem:[#allocation2 + $0x8] sm:$0xf] %vm1505, %v1402
      %1509 = vst.msk [vmem:[#allocation2 + $0xc] sm:$0xf] %vm1505, %v1404
      %1510 = vst.msk [vmem:[#allocation2 + $0x10] sm:$0xf] %vm1505, %v1406
      %1511 = vst.msk [vmem:[#allocation2 + $0x14] sm:$0xf] %vm1505, %v1408
      %1512 = vst.msk [vmem:[#allocation2 + $0x18] sm:$0xf] %vm1505, %v1410
      %1513 = vst.msk [vmem:[#allocation2 + $0x1c] sm:$0xf] %vm1505, %v1412
      %1514 = vst.msk [vmem:[#allocation2 + $0x20] sm:$0xf] %vm1505, %v1414
      %1515 = vst.msk [vmem:[#allocation2 + $0x24] sm:$0xf] %vm1505, %v1416
      %1516 = vst.msk [vmem:[#allocation2 + $0x28] sm:$0xf] %vm1505, %v1418
      %1517 = vst.msk [vmem:[#allocation2 + $0x2c] sm:$0xf] %vm1505, %v1420
      %1518 = vst.msk [vmem:[#allocation2 + $0x30] sm:$0xf] %vm1505, %v1422
      %1519 = vst.msk [vmem:[#allocation2 + $0x34] sm:$0xf] %vm1505, %v1424
      %1520 = vst.msk [vmem:[#allocation2 + $0x38] sm:$0xf] %vm1505, %v1426
      %1521 = vst.msk [vmem:[#allocation2 + $0x3c] sm:$0xf] %vm1505, %v1428
      %1522 = vst.msk [vmem:[#allocation2 + $0x40] sm:$0xf] %vm1505, %v1430
      %1523 = vst.msk [vmem:[#allocation2 + $0x44] sm:$0xf] %vm1505, %v1432
      %1524 = vst.msk [vmem:[#allocation2 + $0x48] sm:$0xf] %vm1505, %v1434
      %1525 = vst.msk [vmem:[#allocation2 + $0x4c] sm:$0xf] %vm1505, %v1436
      %1526 = vst.msk [vmem:[#allocation2 + $0x50] sm:$0xf] %vm1505, %v1438
      %1527 = vst.msk [vmem:[#allocation2 + $0x54] sm:$0xf] %vm1505, %v1440
      %1528 = vst.msk [vmem:[#allocation2 + $0x58] sm:$0xf] %vm1505, %v1442
      %1529 = vst.msk [vmem:[#allocation2 + $0x5c] sm:$0xf] %vm1505, %v1444
      %1530 = vst.msk [vmem:[#allocation2 + $0x60] sm:$0xf] %vm1505, %v1446
      %1531 = vst.msk [vmem:[#allocation2 + $0x64] sm:$0xf] %vm1505, %v1448
      %1532 = vst.msk [vmem:[#allocation2 + $0x68] sm:$0xf] %vm1505, %v1450
      %1533 = vst.msk [vmem:[#allocation2 + $0x6c] sm:$0xf] %vm1505, %v1452
      %1534 = vst.msk [vmem:[#allocation2 + $0x70] sm:$0xf] %vm1505, %v1454
      %1535 = vst.msk [vmem:[#allocation2 + $0x74] sm:$0xf] %vm1505, %v1456
      %1536 = vst.msk [vmem:[#allocation2 + $0x78] sm:$0xf] %vm1505, %v1458
      %1537 = vst.msk [vmem:[#allocation2 + $0x7c] sm:$0xf] %vm1505, %v1460
      %1538 = vst.msk [vmem:[#allocation2 + $0x80] sm:$0xf] %vm1505, %v1462
      %1539 = vst.msk [vmem:[#allocation2 + $0x84] sm:$0xf] %vm1505, %v1464
      %1540 = vst.msk [vmem:[#allocation2 + $0x88] sm:$0xf] %vm1505, %v1466
      %1541 = vst.msk [vmem:[#allocation2 + $0x8c] sm:$0xf] %vm1505, %v1468
      %v1542 = vld [vmem:[%s218 + $0x8] sm:$0xe]
      %v1543 = vld [vmem:[%s218 + $0xc] sm:$0xf]
      %v1544 = vld [vmem:[%s218 + $0x10] sm:$0xf]
      %v1545 = vld [vmem:[%s218 + $0x14] sm:$0xf]
      %v1546 = vld [vmem:[%s218 + $0x18] sm:$0xf]
      %v1547 = vld [vmem:[%s218 + $0x1c] sm:$0xf]
      %v1548 = vld [vmem:[%s218 + $0x20] sm:$0xf]
      %v1549 = vld [vmem:[%s218 + $0x24] sm:$0xf]
      %v1550 = vld [vmem:[%s218 + $0x28] sm:$0xf]
      %v1551 = vld [vmem:[%s218 + $0x2c] sm:$0xf]
      %v1552 = vld [vmem:[%s218 + $0x30] sm:$0xf]
      %v1553 = vld [vmem:[%s218 + $0x34] sm:$0xf]
      %v1554 = vld [vmem:[%s218 + $0x38] sm:$0xf]
      %v1555 = vld [vmem:[%s218 + $0x3c] sm:$0xf]
      %v1556 = vld [vmem:[%s218 + $0x40] sm:$0xf]
      %v1557 = vld [vmem:[%s218 + $0x44] sm:$0xf]
      %v1558 = vld [vmem:[%s218 + $0x48] sm:$0xf]
      %v1559 = vld [vmem:[%s218 + $0x4c] sm:$0xf]
      %v1560 = vld [vmem:[%s218 + $0x50] sm:$0xf]
      %v1561 = vld [vmem:[%s218 + $0x54] sm:$0xf]
      %v1562 = vld [vmem:[%s218 + $0x58] sm:$0xf]
      %v1563 = vld [vmem:[%s218 + $0x5c] sm:$0xf]
      %v1564 = vld [vmem:[%s218 + $0x60] sm:$0xf]
      %v1565 = vld [vmem:[%s218 + $0x64] sm:$0xf]
      %v1566 = vld [vmem:[%s218 + $0x68] sm:$0xf]
      %v1567 = vld [vmem:[%s218 + $0x6c] sm:$0xf]
      %v1568 = vld [vmem:[%s218 + $0x70] sm:$0xf]
      %v1569 = vld [vmem:[%s218 + $0x74] sm:$0xf]
      %v1570 = vld [vmem:[%s218 + $0x78] sm:$0xf]
      %v1571 = vld [vmem:[%s218 + $0x7c] sm:$0xf]
      %v1572 = vld [vmem:[%s218 + $0x80] sm:$0xf]
      %v1573 = vld [vmem:[%s218 + $0x84] sm:$0xf]
      %v1574 = vld [vmem:[%s218 + $0x88] sm:$0xf]
      %v1575 = vld [vmem:[%s218 + $0x8c] sm:$0xf]
      %v1576 = vld [vmem:[%s218 + $0x90] sm:$0xf]
      %v1577 = vld [vmem:[%s218 + $0x94] sm:$0xf]
      %v1578 = vld [vmem:[%s218 + $0x98] sm:$0x3]
      %vm1579 = vsmask.f32 2304
      %vm1580 = vsmask.f32 6416
      %vm1581 = vmor %vm1579, %vm1580
      %v1583 = vshrl.u32 %v1542, 16
      %v1585 = vrot.slane %v1583, 5
      %v1586 = vshll.u32 %v1542, 16
      %v1588 = vrot.slane %v1586, 6
      %v1589 = vor.u32 %v1585, %v1588
      %v1590 = vrot.slane %v1589, 4
      %v1592 = vshrl.u32 %v1543, 16
      %v1594 = vrot.slane %v1592, 5
      %v1595 = vshll.u32 %v1543, 16
      %v1597 = vrot.slane %v1595, 6
      %v1598 = vor.u32 %v1594, %v1597
      %v1599 = vsel %vm1581, %v1590, %v1598
      %v1600 = vrot.slane %v1598, 4
      %v1602 = vshrl.u32 %v1544, 16
      %v1604 = vrot.slane %v1602, 5
      %v1605 = vshll.u32 %v1544, 16
      %v1607 = vrot.slane %v1605, 6
      %v1608 = vor.u32 %v1604, %v1607
      %v1609 = vsel %vm1581, %v1600, %v1608
      %v1610 = vrot.slane %v1608, 4
      %v1612 = vshrl.u32 %v1545, 16
      %v1614 = vrot.slane %v1612, 5
      %v1615 = vshll.u32 %v1545, 16
      %v1617 = vrot.slane %v1615, 6
      %v1618 = vor.u32 %v1614, %v1617
      %v1619 = vsel %vm1581, %v1610, %v1618
      %v1620 = vrot.slane %v1618, 4
      %v1622 = vshrl.u32 %v1546, 16
      %v1624 = vrot.slane %v1622, 5
      %v1625 = vshll.u32 %v1546, 16
      %v1627 = vrot.slane %v1625, 6
      %v1628 = vor.u32 %v1624, %v1627
      %v1629 = vsel %vm1581, %v1620, %v1628
      %v1630 = vrot.slane %v1628, 4
      %v1632 = vshrl.u32 %v1547, 16
      %v1634 = vrot.slane %v1632, 5
      %v1635 = vshll.u32 %v1547, 16
      %v1637 = vrot.slane %v1635, 6
      %v1638 = vor.u32 %v1634, %v1637
      %v1639 = vsel %vm1581, %v1630, %v1638
      %v1640 = vrot.slane %v1638, 4
      %v1642 = vshrl.u32 %v1548, 16
      %v1644 = vrot.slane %v1642, 5
      %v1645 = vshll.u32 %v1548, 16
      %v1647 = vrot.slane %v1645, 6
      %v1648 = vor.u32 %v1644, %v1647
      %v1649 = vsel %vm1581, %v1640, %v1648
      %v1650 = vrot.slane %v1648, 4
      %v1652 = vshrl.u32 %v1549, 16
      %v1654 = vrot.slane %v1652, 5
      %v1655 = vshll.u32 %v1549, 16
      %v1657 = vrot.slane %v1655, 6
      %v1658 = vor.u32 %v1654, %v1657
      %v1659 = vsel %vm1581, %v1650, %v1658
      %v1660 = vrot.slane %v1658, 4
      %v1662 = vshrl.u32 %v1550, 16
      %v1664 = vrot.slane %v1662, 5
      %v1665 = vshll.u32 %v1550, 16
      %v1667 = vrot.slane %v1665, 6
      %v1668 = vor.u32 %v1664, %v1667
      %v1669 = vsel %vm1581, %v1660, %v1668
      %v1670 = vrot.slane %v1668, 4
      %v1672 = vshrl.u32 %v1551, 16
      %v1674 = vrot.slane %v1672, 5
      %v1675 = vshll.u32 %v1551, 16
      %v1677 = vrot.slane %v1675, 6
      %v1678 = vor.u32 %v1674, %v1677
      %v1679 = vsel %vm1581, %v1670, %v1678
      %v1680 = vrot.slane %v1678, 4
      %v1682 = vshrl.u32 %v1552, 16
      %v1684 = vrot.slane %v1682, 5
      %v1685 = vshll.u32 %v1552, 16
      %v1687 = vrot.slane %v1685, 6
      %v1688 = vor.u32 %v1684, %v1687
      %v1689 = vsel %vm1581, %v1680, %v1688
      %v1690 = vrot.slane %v1688, 4
      %v1692 = vshrl.u32 %v1553, 16
      %v1694 = vrot.slane %v1692, 5
      %v1695 = vshll.u32 %v1553, 16
      %v1697 = vrot.slane %v1695, 6
      %v1698 = vor.u32 %v1694, %v1697
      %v1699 = vsel %vm1581, %v1690, %v1698
      %v1700 = vrot.slane %v1698, 4
      %v1702 = vshrl.u32 %v1554, 16
      %v1704 = vrot.slane %v1702, 5
      %v1705 = vshll.u32 %v1554, 16
      %v1707 = vrot.slane %v1705, 6
      %v1708 = vor.u32 %v1704, %v1707
      %v1709 = vsel %vm1581, %v1700, %v1708
      %v1710 = vrot.slane %v1708, 4
      %v1712 = vshrl.u32 %v1555, 16
      %v1714 = vrot.slane %v1712, 5
      %v1715 = vshll.u32 %v1555, 16
      %v1717 = vrot.slane %v1715, 6
      %v1718 = vor.u32 %v1714, %v1717
      %v1719 = vsel %vm1581, %v1710, %v1718
      %v1720 = vrot.slane %v1718, 4
      %v1722 = vshrl.u32 %v1556, 16
      %v1724 = vrot.slane %v1722, 5
      %v1725 = vshll.u32 %v1556, 16
      %v1727 = vrot.slane %v1725, 6
      %v1728 = vor.u32 %v1724, %v1727
      %v1729 = vsel %vm1581, %v1720, %v1728
      %v1730 = vrot.slane %v1728, 4
      %v1732 = vshrl.u32 %v1557, 16
      %v1734 = vrot.slane %v1732, 5
      %v1735 = vshll.u32 %v1557, 16
      %v1737 = vrot.slane %v1735, 6
      %v1738 = vor.u32 %v1734, %v1737
      %v1739 = vsel %vm1581, %v1730, %v1738
      %v1740 = vrot.slane %v1738, 4
      %v1742 = vshrl.u32 %v1558, 16
      %v1744 = vrot.slane %v1742, 5
      %v1745 = vshll.u32 %v1558, 16
      %v1747 = vrot.slane %v1745, 6
      %v1748 = vor.u32 %v1744, %v1747
      %v1749 = vsel %vm1581, %v1740, %v1748
      %v1750 = vrot.slane %v1748, 4
      %v1752 = vshrl.u32 %v1559, 16
      %v1754 = vrot.slane %v1752, 5
      %v1755 = vshll.u32 %v1559, 16
      %v1757 = vrot.slane %v1755, 6
      %v1758 = vor.u32 %v1754, %v1757
      %v1759 = vsel %vm1581, %v1750, %v1758
      %v1760 = vrot.slane %v1758, 4
      %v1762 = vshrl.u32 %v1560, 16
      %v1764 = vrot.slane %v1762, 5
      %v1765 = vshll.u32 %v1560, 16
      %v1767 = vrot.slane %v1765, 6
      %v1768 = vor.u32 %v1764, %v1767
      %v1769 = vsel %vm1581, %v1760, %v1768
      %v1770 = vrot.slane %v1768, 4
      %v1772 = vshrl.u32 %v1561, 16
      %v1774 = vrot.slane %v1772, 5
      %v1775 = vshll.u32 %v1561, 16
      %v1777 = vrot.slane %v1775, 6
      %v1778 = vor.u32 %v1774, %v1777
      %v1779 = vsel %vm1581, %v1770, %v1778
      %v1780 = vrot.slane %v1778, 4
      %v1782 = vshrl.u32 %v1562, 16
      %v1784 = vrot.slane %v1782, 5
      %v1785 = vshll.u32 %v1562, 16
      %v1787 = vrot.slane %v1785, 6
      %v1788 = vor.u32 %v1784, %v1787
      %v1789 = vsel %vm1581, %v1780, %v1788
      %v1790 = vrot.slane %v1788, 4
      %v1792 = vshrl.u32 %v1563, 16
      %v1794 = vrot.slane %v1792, 5
      %v1795 = vshll.u32 %v1563, 16
      %v1797 = vrot.slane %v1795, 6
      %v1798 = vor.u32 %v1794, %v1797
      %v1799 = vsel %vm1581, %v1790, %v1798
      %v1800 = vrot.slane %v1798, 4
      %v1802 = vshrl.u32 %v1564, 16
      %v1804 = vrot.slane %v1802, 5
      %v1805 = vshll.u32 %v1564, 16
      %v1807 = vrot.slane %v1805, 6
      %v1808 = vor.u32 %v1804, %v1807
      %v1809 = vsel %vm1581, %v1800, %v1808
      %v1810 = vrot.slane %v1808, 4
      %v1812 = vshrl.u32 %v1565, 16
      %v1814 = vrot.slane %v1812, 5
      %v1815 = vshll.u32 %v1565, 16
      %v1817 = vrot.slane %v1815, 6
      %v1818 = vor.u32 %v1814, %v1817
      %v1819 = vsel %vm1581, %v1810, %v1818
      %v1820 = vrot.slane %v1818, 4
      %v1822 = vshrl.u32 %v1566, 16
      %v1824 = vrot.slane %v1822, 5
      %v1825 = vshll.u32 %v1566, 16
      %v1827 = vrot.slane %v1825, 6
      %v1828 = vor.u32 %v1824, %v1827
      %v1829 = vsel %vm1581, %v1820, %v1828
      %v1830 = vrot.slane %v1828, 4
      %v1832 = vshrl.u32 %v1567, 16
      %v1834 = vrot.slane %v1832, 5
      %v1835 = vshll.u32 %v1567, 16
      %v1837 = vrot.slane %v1835, 6
      %v1838 = vor.u32 %v1834, %v1837
      %v1839 = vsel %vm1581, %v1830, %v1838
      %v1840 = vrot.slane %v1838, 4
      %v1842 = vshrl.u32 %v1568, 16
      %v1844 = vrot.slane %v1842, 5
      %v1845 = vshll.u32 %v1568, 16
      %v1847 = vrot.slane %v1845, 6
      %v1848 = vor.u32 %v1844, %v1847
      %v1849 = vsel %vm1581, %v1840, %v1848
      %v1850 = vrot.slane %v1848, 4
      %v1852 = vshrl.u32 %v1569, 16
      %v1854 = vrot.slane %v1852, 5
      %v1855 = vshll.u32 %v1569, 16
      %v1857 = vrot.slane %v1855, 6
      %v1858 = vor.u32 %v1854, %v1857
      %v1859 = vsel %vm1581, %v1850, %v1858
      %v1860 = vrot.slane %v1858, 4
      %v1862 = vshrl.u32 %v1570, 16
      %v1864 = vrot.slane %v1862, 5
      %v1865 = vshll.u32 %v1570, 16
      %v1867 = vrot.slane %v1865, 6
      %v1868 = vor.u32 %v1864, %v1867
      %v1869 = vsel %vm1581, %v1860, %v1868
      %v1870 = vrot.slane %v1868, 4
      %v1872 = vshrl.u32 %v1571, 16
      %v1874 = vrot.slane %v1872, 5
      %v1875 = vshll.u32 %v1571, 16
      %v1877 = vrot.slane %v1875, 6
      %v1878 = vor.u32 %v1874, %v1877
      %v1879 = vsel %vm1581, %v1870, %v1878
      %v1880 = vrot.slane %v1878, 4
      %v1882 = vshrl.u32 %v1572, 16
      %v1884 = vrot.slane %v1882, 5
      %v1885 = vshll.u32 %v1572, 16
      %v1887 = vrot.slane %v1885, 6
      %v1888 = vor.u32 %v1884, %v1887
      %v1889 = vsel %vm1581, %v1880, %v1888
      %v1890 = vrot.slane %v1888, 4
      %v1892 = vshrl.u32 %v1573, 16
      %v1894 = vrot.slane %v1892, 5
      %v1895 = vshll.u32 %v1573, 16
      %v1897 = vrot.slane %v1895, 6
      %v1898 = vor.u32 %v1894, %v1897
      %v1899 = vsel %vm1581, %v1890, %v1898
      %v1900 = vrot.slane %v1898, 4
      %v1902 = vshrl.u32 %v1574, 16
      %v1904 = vrot.slane %v1902, 5
      %v1905 = vshll.u32 %v1574, 16
      %v1907 = vrot.slane %v1905, 6
      %v1908 = vor.u32 %v1904, %v1907
      %v1909 = vsel %vm1581, %v1900, %v1908
      %v1910 = vrot.slane %v1908, 4
      %v1912 = vshrl.u32 %v1575, 16
      %v1914 = vrot.slane %v1912, 5
      %v1915 = vshll.u32 %v1575, 16
      %v1917 = vrot.slane %v1915, 6
      %v1918 = vor.u32 %v1914, %v1917
      %v1919 = vsel %vm1581, %v1910, %v1918
      %v1920 = vrot.slane %v1918, 4
      %v1922 = vshrl.u32 %v1576, 16
      %v1924 = vrot.slane %v1922, 5
      %v1925 = vshll.u32 %v1576, 16
      %v1927 = vrot.slane %v1925, 6
      %v1928 = vor.u32 %v1924, %v1927
      %v1929 = vsel %vm1581, %v1920, %v1928
      %v1930 = vrot.slane %v1928, 4
      %v1932 = vshrl.u32 %v1577, 16
      %v1934 = vrot.slane %v1932, 5
      %v1935 = vshll.u32 %v1577, 16
      %v1937 = vrot.slane %v1935, 6
      %v1938 = vor.u32 %v1934, %v1937
      %v1939 = vsel %vm1581, %v1930, %v1938
      %v1940 = vrot.slane %v1938, 4
      %v1942 = vshrl.u32 %v1578, 16
      %v1944 = vrot.slane %v1942, 5
      %v1945 = vshll.u32 %v1578, 16
      %v1947 = vrot.slane %v1945, 6
      %v1948 = vor.u32 %v1944, %v1947
      %v1949 = vsel %vm1581, %v1940, %v1948
      %1950 = vrot.lane.b32.xlu0 %v1599, 32
      %v1951 = vpop.permute.xlu0 %1950
      %1952 = vrot.lane.b32.xlu0 %v1609, 32
      %v1953 = vpop.permute.xlu0 %1952
      %1954 = vrot.lane.b32.xlu0 %v1619, 32
      %v1955 = vpop.permute.xlu0 %1954
      %1956 = vrot.lane.b32.xlu0 %v1629, 32
      %v1957 = vpop.permute.xlu0 %1956
      %1958 = vrot.lane.b32.xlu0 %v1639, 32
      %v1959 = vpop.permute.xlu0 %1958
      %1960 = vrot.lane.b32.xlu0 %v1649, 32
      %v1961 = vpop.permute.xlu0 %1960
      %1962 = vrot.lane.b32.xlu0 %v1659, 32
      %v1963 = vpop.permute.xlu0 %1962
      %1964 = vrot.lane.b32.xlu0 %v1669, 32
      %v1965 = vpop.permute.xlu0 %1964
      %1966 = vrot.lane.b32.xlu0 %v1679, 32
      %v1967 = vpop.permute.xlu0 %1966
      %1968 = vrot.lane.b32.xlu0 %v1689, 32
      %v1969 = vpop.permute.xlu0 %1968
      %1970 = vrot.lane.b32.xlu0 %v1699, 32
      %v1971 = vpop.permute.xlu0 %1970
      %1972 = vrot.lane.b32.xlu0 %v1709, 32
      %v1973 = vpop.permute.xlu0 %1972
      %1974 = vrot.lane.b32.xlu0 %v1719, 32
      %v1975 = vpop.permute.xlu0 %1974
      %1976 = vrot.lane.b32.xlu0 %v1729, 32
      %v1977 = vpop.permute.xlu0 %1976
      %1978 = vrot.lane.b32.xlu0 %v1739, 32
      %v1979 = vpop.permute.xlu0 %1978
      %1980 = vrot.lane.b32.xlu0 %v1749, 32
      %v1981 = vpop.permute.xlu0 %1980
      %1982 = vrot.lane.b32.xlu0 %v1759, 32
      %v1983 = vpop.permute.xlu0 %1982
      %1984 = vrot.lane.b32.xlu0 %v1769, 32
      %v1985 = vpop.permute.xlu0 %1984
      %1986 = vrot.lane.b32.xlu0 %v1779, 32
      %v1987 = vpop.permute.xlu0 %1986
      %1988 = vrot.lane.b32.xlu0 %v1789, 32
      %v1989 = vpop.permute.xlu0 %1988
      %1990 = vrot.lane.b32.xlu0 %v1799, 32
      %v1991 = vpop.permute.xlu0 %1990
      %1992 = vrot.lane.b32.xlu0 %v1809, 32
      %v1993 = vpop.permute.xlu0 %1992
      %1994 = vrot.lane.b32.xlu0 %v1819, 32
      %v1995 = vpop.permute.xlu0 %1994
      %1996 = vrot.lane.b32.xlu0 %v1829, 32
      %v1997 = vpop.permute.xlu0 %1996
      %1998 = vrot.lane.b32.xlu0 %v1839, 32
      %v1999 = vpop.permute.xlu0 %1998
      %2000 = vrot.lane.b32.xlu0 %v1849, 32
      %v2001 = vpop.permute.xlu0 %2000
      %2002 = vrot.lane.b32.xlu0 %v1859, 32
      %v2003 = vpop.permute.xlu0 %2002
      %2004 = vrot.lane.b32.xlu0 %v1869, 32
      %v2005 = vpop.permute.xlu0 %2004
      %2006 = vrot.lane.b32.xlu0 %v1879, 32
      %v2007 = vpop.permute.xlu0 %2006
      %2008 = vrot.lane.b32.xlu0 %v1889, 32
      %v2009 = vpop.permute.xlu0 %2008
      %2010 = vrot.lane.b32.xlu0 %v1899, 32
      %v2011 = vpop.permute.xlu0 %2010
      %2012 = vrot.lane.b32.xlu0 %v1909, 32
      %v2013 = vpop.permute.xlu0 %2012
      %2014 = vrot.lane.b32.xlu0 %v1919, 32
      %v2015 = vpop.permute.xlu0 %2014
      %2016 = vrot.lane.b32.xlu0 %v1929, 32
      %v2017 = vpop.permute.xlu0 %2016
      %2018 = vrot.lane.b32.xlu0 %v1939, 32
      %v2019 = vpop.permute.xlu0 %2018
      %2020 = vrot.lane.b32.xlu0 %v1949, 32
      %v2021 = vpop.permute.xlu0 %2020
      %vm2058 = vcmask 322816
      %2059 = vst.msk [vmem:[#allocation2] sm:$0xf] %vm2058, %v1951
      %2060 = vst.msk [vmem:[#allocation2 + $0x4] sm:$0xf] %vm2058, %v1953
      %2061 = vst.msk [vmem:[#allocation2 + $0x8] sm:$0xf] %vm2058, %v1955
      %2062 = vst.msk [vmem:[#allocation2 + $0xc] sm:$0xf] %vm2058, %v1957
      %2063 = vst.msk [vmem:[#allocation2 + $0x10] sm:$0xf] %vm2058, %v1959
      %2064 = vst.msk [vmem:[#allocation2 + $0x14] sm:$0xf] %vm2058, %v1961
      %2065 = vst.msk [vmem:[#allocation2 + $0x18] sm:$0xf] %vm2058, %v1963
      %2066 = vst.msk [vmem:[#allocation2 + $0x1c] sm:$0xf] %vm2058, %v1965
      %2067 = vst.msk [vmem:[#allocation2 + $0x20] sm:$0xf] %vm2058, %v1967
      %2068 = vst.msk [vmem:[#allocation2 + $0x24] sm:$0xf] %vm2058, %v1969
      %2069 = vst.msk [vmem:[#allocation2 + $0x28] sm:$0xf] %vm2058, %v1971
      %2070 = vst.msk [vmem:[#allocation2 + $0x2c] sm:$0xf] %vm2058, %v1973
      %2071 = vst.msk [vmem:[#allocation2 + $0x30] sm:$0xf] %vm2058, %v1975
      %2072 = vst.msk [vmem:[#allocation2 + $0x34] sm:$0xf] %vm2058, %v1977
      %2073 = vst.msk [vmem:[#allocation2 + $0x38] sm:$0xf] %vm2058, %v1979
      %2074 = vst.msk [vmem:[#allocation2 + $0x3c] sm:$0xf] %vm2058, %v1981
      %2075 = vst.msk [vmem:[#allocation2 + $0x40] sm:$0xf] %vm2058, %v1983
      %2076 = vst.msk [vmem:[#allocation2 + $0x44] sm:$0xf] %vm2058, %v1985
      %2077 = vst.msk [vmem:[#allocation2 + $0x48] sm:$0xf] %vm2058, %v1987
      %2078 = vst.msk [vmem:[#allocation2 + $0x4c] sm:$0xf] %vm2058, %v1989
      %2079 = vst.msk [vmem:[#allocation2 + $0x50] sm:$0xf] %vm2058, %v1991
      %2080 = vst.msk [vmem:[#allocation2 + $0x54] sm:$0xf] %vm2058, %v1993
      %2081 = vst.msk [vmem:[#allocation2 + $0x58] sm:$0xf] %vm2058, %v1995
      %2082 = vst.msk [vmem:[#allocation2 + $0x5c] sm:$0xf] %vm2058, %v1997
      %2083 = vst.msk [vmem:[#allocation2 + $0x60] sm:$0xf] %vm2058, %v1999
      %2084 = vst.msk [vmem:[#allocation2 + $0x64] sm:$0xf] %vm2058, %v2001
      %2085 = vst.msk [vmem:[#allocation2 + $0x68] sm:$0xf] %vm2058, %v2003
      %2086 = vst.msk [vmem:[#allocation2 + $0x6c] sm:$0xf] %vm2058, %v2005
      %2087 = vst.msk [vmem:[#allocation2 + $0x70] sm:$0xf] %vm2058, %v2007
      %2088 = vst.msk [vmem:[#allocation2 + $0x74] sm:$0xf] %vm2058, %v2009
      %2089 = vst.msk [vmem:[#allocation2 + $0x78] sm:$0xf] %vm2058, %v2011
      %2090 = vst.msk [vmem:[#allocation2 + $0x7c] sm:$0xf] %vm2058, %v2013
      %2091 = vst.msk [vmem:[#allocation2 + $0x80] sm:$0xf] %vm2058, %v2015
      %2092 = vst.msk [vmem:[#allocation2 + $0x84] sm:$0xf] %vm2058, %v2017
      %2093 = vst.msk [vmem:[#allocation2 + $0x88] sm:$0xf] %vm2058, %v2019
      %2094 = vst.msk [vmem:[#allocation2 + $0x8c] sm:$0xf] %vm2058, %v2021
      %v2095 = vld [vmem:[%s218 + $0x8] sm:$0xc]
      %v2096 = vld [vmem:[%s218 + $0xc] sm:$0xf]
      %v2097 = vld [vmem:[%s218 + $0x10] sm:$0xf]
      %v2098 = vld [vmem:[%s218 + $0x14] sm:$0xf]
      %v2099 = vld [vmem:[%s218 + $0x18] sm:$0xf]
      %v2100 = vld [vmem:[%s218 + $0x1c] sm:$0xf]
      %v2101 = vld [vmem:[%s218 + $0x20] sm:$0xf]
      %v2102 = vld [vmem:[%s218 + $0x24] sm:$0xf]
      %v2103 = vld [vmem:[%s218 + $0x28] sm:$0xf]
      %v2104 = vld [vmem:[%s218 + $0x2c] sm:$0xf]
      %v2105 = vld [vmem:[%s218 + $0x30] sm:$0xf]
      %v2106 = vld [vmem:[%s218 + $0x34] sm:$0xf]
      %v2107 = vld [vmem:[%s218 + $0x38] sm:$0xf]
      %v2108 = vld [vmem:[%s218 + $0x3c] sm:$0xf]
      %v2109 = vld [vmem:[%s218 + $0x40] sm:$0xf]
      %v2110 = vld [vmem:[%s218 + $0x44] sm:$0xf]
      %v2111 = vld [vmem:[%s218 + $0x48] sm:$0xf]
      %v2112 = vld [vmem:[%s218 + $0x4c] sm:$0xf]
      %v2113 = vld [vmem:[%s218 + $0x50] sm:$0xf]
      %v2114 = vld [vmem:[%s218 + $0x54] sm:$0xf]
      %v2115 = vld [vmem:[%s218 + $0x58] sm:$0xf]
      %v2116 = vld [vmem:[%s218 + $0x5c] sm:$0xf]
      %v2117 = vld [vmem:[%s218 + $0x60] sm:$0xf]
      %v2118 = vld [vmem:[%s218 + $0x64] sm:$0xf]
      %v2119 = vld [vmem:[%s218 + $0x68] sm:$0xf]
      %v2120 = vld [vmem:[%s218 + $0x6c] sm:$0xf]
      %v2121 = vld [vmem:[%s218 + $0x70] sm:$0xf]
      %v2122 = vld [vmem:[%s218 + $0x74] sm:$0xf]
      %v2123 = vld [vmem:[%s218 + $0x78] sm:$0xf]
      %v2124 = vld [vmem:[%s218 + $0x7c] sm:$0xf]
      %v2125 = vld [vmem:[%s218 + $0x80] sm:$0xf]
      %v2126 = vld [vmem:[%s218 + $0x84] sm:$0xf]
      %v2127 = vld [vmem:[%s218 + $0x88] sm:$0xf]
      %v2128 = vld [vmem:[%s218 + $0x8c] sm:$0xf]
      %v2129 = vld [vmem:[%s218 + $0x90] sm:$0xf]
      %v2130 = vld [vmem:[%s218 + $0x94] sm:$0xf]
      %v2131 = vld [vmem:[%s218 + $0x98] sm:$0x3]
      %vm2169 = vcmask 1041408
      %vm2170 = vcmask 1045508
      %vm2171 = vmor %vm2169, %vm2170
      %v2172 = vrot.slane %v2095, 6
      %v2173 = vrot.slane %v2172, 4
      %v2174 = vrot.slane %v2096, 6
      %v2175 = vsel %vm2171, %v2173, %v2174
      %v2176 = vrot.slane %v2174, 4
      %v2177 = vrot.slane %v2097, 6
      %v2178 = vsel %vm2171, %v2176, %v2177
      %v2179 = vrot.slane %v2177, 4
      %v2180 = vrot.slane %v2098, 6
      %v2181 = vsel %vm2171, %v2179, %v2180
      %v2182 = vrot.slane %v2180, 4
      %v2183 = vrot.slane %v2099, 6
      %v2184 = vsel %vm2171, %v2182, %v2183
      %v2185 = vrot.slane %v2183, 4
      %v2186 = vrot.slane %v2100, 6
      %v2187 = vsel %vm2171, %v2185, %v2186
      %v2188 = vrot.slane %v2186, 4
      %v2189 = vrot.slane %v2101, 6
      %v2190 = vsel %vm2171, %v2188, %v2189
      %v2191 = vrot.slane %v2189, 4
      %v2192 = vrot.slane %v2102, 6
      %v2193 = vsel %vm2171, %v2191, %v2192
      %v2194 = vrot.slane %v2192, 4
      %v2195 = vrot.slane %v2103, 6
      %v2196 = vsel %vm2171, %v2194, %v2195
      %v2197 = vrot.slane %v2195, 4
      %v2198 = vrot.slane %v2104, 6
      %v2199 = vsel %vm2171, %v2197, %v2198
      %v2200 = vrot.slane %v2198, 4
      %v2201 = vrot.slane %v2105, 6
      %v2202 = vsel %vm2171, %v2200, %v2201
      %v2203 = vrot.slane %v2201, 4
      %v2204 = vrot.slane %v2106, 6
      %v2205 = vsel %vm2171, %v2203, %v2204
      %v2206 = vrot.slane %v2204, 4
      %v2207 = vrot.slane %v2107, 6
      %v2208 = vsel %vm2171, %v2206, %v2207
      %v2209 = vrot.slane %v2207, 4
      %v2210 = vrot.slane %v2108, 6
      %v2211 = vsel %vm2171, %v2209, %v2210
      %v2212 = vrot.slane %v2210, 4
      %v2213 = vrot.slane %v2109, 6
      %v2214 = vsel %vm2171, %v2212, %v2213
      %v2215 = vrot.slane %v2213, 4
      %v2216 = vrot.slane %v2110, 6
      %v2217 = vsel %vm2171, %v2215, %v2216
      %v2218 = vrot.slane %v2216, 4
      %v2219 = vrot.slane %v2111, 6
      %v2220 = vsel %vm2171, %v2218, %v2219
      %v2221 = vrot.slane %v2219, 4
      %v2222 = vrot.slane %v2112, 6
      %v2223 = vsel %vm2171, %v2221, %v2222
      %v2224 = vrot.slane %v2222, 4
      %v2225 = vrot.slane %v2113, 6
      %v2226 = vsel %vm2171, %v2224, %v2225
      %v2227 = vrot.slane %v2225, 4
      %v2228 = vrot.slane %v2114, 6
      %v2229 = vsel %vm2171, %v2227, %v2228
      %v2230 = vrot.slane %v2228, 4
      %v2231 = vrot.slane %v2115, 6
      %v2232 = vsel %vm2171, %v2230, %v2231
      %v2233 = vrot.slane %v2231, 4
      %v2234 = vrot.slane %v2116, 6
      %v2235 = vsel %vm2171, %v2233, %v2234
      %v2236 = vrot.slane %v2234, 4
      %v2237 = vrot.slane %v2117, 6
      %v2238 = vsel %vm2171, %v2236, %v2237
      %v2239 = vrot.slane %v2237, 4
      %v2240 = vrot.slane %v2118, 6
      %v2241 = vsel %vm2171, %v2239, %v2240
      %v2242 = vrot.slane %v2240, 4
      %v2243 = vrot.slane %v2119, 6
      %v2244 = vsel %vm2171, %v2242, %v2243
      %v2245 = vrot.slane %v2243, 4
      %v2246 = vrot.slane %v2120, 6
      %v2247 = vsel %vm2171, %v2245, %v2246
      %v2248 = vrot.slane %v2246, 4
      %v2249 = vrot.slane %v2121, 6
      %v2250 = vsel %vm2171, %v2248, %v2249
      %v2251 = vrot.slane %v2249, 4
      %v2252 = vrot.slane %v2122, 6
      %v2253 = vsel %vm2171, %v2251, %v2252
      %v2254 = vrot.slane %v2252, 4
      %v2255 = vrot.slane %v2123, 6
      %v2256 = vsel %vm2171, %v2254, %v2255
      %v2257 = vrot.slane %v2255, 4
      %v2258 = vrot.slane %v2124, 6
      %v2259 = vsel %vm2171, %v2257, %v2258
      %v2260 = vrot.slane %v2258, 4
      %v2261 = vrot.slane %v2125, 6
      %v2262 = vsel %vm2171, %v2260, %v2261
      %v2263 = vrot.slane %v2261, 4
      %v2264 = vrot.slane %v2126, 6
      %v2265 = vsel %vm2171, %v2263, %v2264
      %v2266 = vrot.slane %v2264, 4
      %v2267 = vrot.slane %v2127, 6
      %v2268 = vsel %vm2171, %v2266, %v2267
      %v2269 = vrot.slane %v2267, 4
      %v2270 = vrot.slane %v2128, 6
      %v2271 = vsel %vm2171, %v2269, %v2270
      %v2272 = vrot.slane %v2270, 4
      %v2273 = vrot.slane %v2129, 6
      %v2274 = vsel %vm2171, %v2272, %v2273
      %v2275 = vrot.slane %v2273, 4
      %v2276 = vrot.slane %v2130, 6
      %v2277 = vsel %vm2171, %v2275, %v2276
      %v2278 = vrot.slane %v2276, 4
      %v2279 = vrot.slane %v2131, 6
      %v2280 = vsel %vm2171, %v2278, %v2279
      %2281 = vrot.lane.b32.xlu0 %v2175, 40
      %v2282 = vpop.permute.xlu0 %2281
      %2283 = vrot.lane.b32.xlu0 %v2178, 40
      %v2284 = vpop.permute.xlu0 %2283
      %2285 = vrot.lane.b32.xlu0 %v2181, 40
      %v2286 = vpop.permute.xlu0 %2285
      %2287 = vrot.lane.b32.xlu0 %v2184, 40
      %v2288 = vpop.permute.xlu0 %2287
      %2289 = vrot.lane.b32.xlu0 %v2187, 40
      %v2290 = vpop.permute.xlu0 %2289
      %2291 = vrot.lane.b32.xlu0 %v2190, 40
      %v2292 = vpop.permute.xlu0 %2291
      %2293 = vrot.lane.b32.xlu0 %v2193, 40
      %v2294 = vpop.permute.xlu0 %2293
      %2295 = vrot.lane.b32.xlu0 %v2196, 40
      %v2296 = vpop.permute.xlu0 %2295
      %2297 = vrot.lane.b32.xlu0 %v2199, 40
      %v2298 = vpop.permute.xlu0 %2297
      %2299 = vrot.lane.b32.xlu0 %v2202, 40
      %v2300 = vpop.permute.xlu0 %2299
      %2301 = vrot.lane.b32.xlu0 %v2205, 40
      %v2302 = vpop.permute.xlu0 %2301
      %2303 = vrot.lane.b32.xlu0 %v2208, 40
      %v2304 = vpop.permute.xlu0 %2303
      %2305 = vrot.lane.b32.xlu0 %v2211, 40
      %v2306 = vpop.permute.xlu0 %2305
      %2307 = vrot.lane.b32.xlu0 %v2214, 40
      %v2308 = vpop.permute.xlu0 %2307
      %2309 = vrot.lane.b32.xlu0 %v2217, 40
      %v2310 = vpop.permute.xlu0 %2309
      %2311 = vrot.lane.b32.xlu0 %v2220, 40
      %v2312 = vpop.permute.xlu0 %2311
      %2313 = vrot.lane.b32.xlu0 %v2223, 40
      %v2314 = vpop.permute.xlu0 %2313
      %2315 = vrot.lane.b32.xlu0 %v2226, 40
      %v2316 = vpop.permute.xlu0 %2315
      %2317 = vrot.lane.b32.xlu0 %v2229, 40
      %v2318 = vpop.permute.xlu0 %2317
      %2319 = vrot.lane.b32.xlu0 %v2232, 40
      %v2320 = vpop.permute.xlu0 %2319
      %2321 = vrot.lane.b32.xlu0 %v2235, 40
      %v2322 = vpop.permute.xlu0 %2321
      %2323 = vrot.lane.b32.xlu0 %v2238, 40
      %v2324 = vpop.permute.xlu0 %2323
      %2325 = vrot.lane.b32.xlu0 %v2241, 40
      %v2326 = vpop.permute.xlu0 %2325
      %2327 = vrot.lane.b32.xlu0 %v2244, 40
      %v2328 = vpop.permute.xlu0 %2327
      %2329 = vrot.lane.b32.xlu0 %v2247, 40
      %v2330 = vpop.permute.xlu0 %2329
      %2331 = vrot.lane.b32.xlu0 %v2250, 40
      %v2332 = vpop.permute.xlu0 %2331
      %2333 = vrot.lane.b32.xlu0 %v2253, 40
      %v2334 = vpop.permute.xlu0 %2333
      %2335 = vrot.lane.b32.xlu0 %v2256, 40
      %v2336 = vpop.permute.xlu0 %2335
      %2337 = vrot.lane.b32.xlu0 %v2259, 40
      %v2338 = vpop.permute.xlu0 %2337
      %2339 = vrot.lane.b32.xlu0 %v2262, 40
      %v2340 = vpop.permute.xlu0 %2339
      %2341 = vrot.lane.b32.xlu0 %v2265, 40
      %v2342 = vpop.permute.xlu0 %2341
      %2343 = vrot.lane.b32.xlu0 %v2268, 40
      %v2344 = vpop.permute.xlu0 %2343
      %2345 = vrot.lane.b32.xlu0 %v2271, 40
      %v2346 = vpop.permute.xlu0 %2345
      %2347 = vrot.lane.b32.xlu0 %v2274, 40
      %v2348 = vpop.permute.xlu0 %2347
      %2349 = vrot.lane.b32.xlu0 %v2277, 40
      %v2350 = vpop.permute.xlu0 %2349
      %2351 = vrot.lane.b32.xlu0 %v2280, 40
      %v2352 = vpop.permute.xlu0 %2351
      %vm2389 = vcmask 388416
      %2390 = vst.msk [vmem:[#allocation2] sm:$0xf] %vm2389, %v2282
      %2391 = vst.msk [vmem:[#allocation2 + $0x4] sm:$0xf] %vm2389, %v2284
      %2392 = vst.msk [vmem:[#allocation2 + $0x8] sm:$0xf] %vm2389, %v2286
      %2393 = vst.msk [vmem:[#allocation2 + $0xc] sm:$0xf] %vm2389, %v2288
      %2394 = vst.msk [vmem:[#allocation2 + $0x10] sm:$0xf] %vm2389, %v2290
      %2395 = vst.msk [vmem:[#allocation2 + $0x14] sm:$0xf] %vm2389, %v2292
      %2396 = vst.msk [vmem:[#allocation2 + $0x18] sm:$0xf] %vm2389, %v2294
      %2397 = vst.msk [vmem:[#allocation2 + $0x1c] sm:$0xf] %vm2389, %v2296
      %2398 = vst.msk [vmem:[#allocation2 + $0x20] sm:$0xf] %vm2389, %v2298
      %2399 = vst.msk [vmem:[#allocation2 + $0x24] sm:$0xf] %vm2389, %v2300
      %2400 = vst.msk [vmem:[#allocation2 + $0x28] sm:$0xf] %vm2389, %v2302
      %2401 = vst.msk [vmem:[#allocation2 + $0x2c] sm:$0xf] %vm2389, %v2304
      %2402 = vst.msk [vmem:[#allocation2 + $0x30] sm:$0xf] %vm2389, %v2306
      %2403 = vst.msk [vmem:[#allocation2 + $0x34] sm:$0xf] %vm2389, %v2308
      %2404 = vst.msk [vmem:[#allocation2 + $0x38] sm:$0xf] %vm2389, %v2310
      %2405 = vst.msk [vmem:[#allocation2 + $0x3c] sm:$0xf] %vm2389, %v2312
      %2406 = vst.msk [vmem:[#allocation2 + $0x40] sm:$0xf] %vm2389, %v2314
      %2407 = vst.msk [vmem:[#allocation2 + $0x44] sm:$0xf] %vm2389, %v2316
      %2408 = vst.msk [vmem:[#allocation2 + $0x48] sm:$0xf] %vm2389, %v2318
      %2409 = vst.msk [vmem:[#allocation2 + $0x4c] sm:$0xf] %vm2389, %v2320
      %2410 = vst.msk [vmem:[#allocation2 + $0x50] sm:$0xf] %vm2389, %v2322
      %2411 = vst.msk [vmem:[#allocation2 + $0x54] sm:$0xf] %vm2389, %v2324
      %2412 = vst.msk [vmem:[#allocation2 + $0x58] sm:$0xf] %vm2389, %v2326
      %2413 = vst.msk [vmem:[#allocation2 + $0x5c] sm:$0xf] %vm2389, %v2328
      %2414 = vst.msk [vmem:[#allocation2 + $0x60] sm:$0xf] %vm2389, %v2330
      %2415 = vst.msk [vmem:[#allocation2 + $0x64] sm:$0xf] %vm2389, %v2332
      %2416 = vst.msk [vmem:[#allocation2 + $0x68] sm:$0xf] %vm2389, %v2334
      %2417 = vst.msk [vmem:[#allocation2 + $0x6c] sm:$0xf] %vm2389, %v2336
      %2418 = vst.msk [vmem:[#allocation2 + $0x70] sm:$0xf] %vm2389, %v2338
      %2419 = vst.msk [vmem:[#allocation2 + $0x74] sm:$0xf] %vm2389, %v2340
      %2420 = vst.msk [vmem:[#allocation2 + $0x78] sm:$0xf] %vm2389, %v2342
      %2421 = vst.msk [vmem:[#allocation2 + $0x7c] sm:$0xf] %vm2389, %v2344
      %2422 = vst.msk [vmem:[#allocation2 + $0x80] sm:$0xf] %vm2389, %v2346
      %2423 = vst.msk [vmem:[#allocation2 + $0x84] sm:$0xf] %vm2389, %v2348
      %2424 = vst.msk [vmem:[#allocation2 + $0x88] sm:$0xf] %vm2389, %v2350
      %2425 = vst.msk [vmem:[#allocation2 + $0x8c] sm:$0xf] %vm2389, %v2352
      %v2426 = vld [vmem:[%s218 + $0x10] sm:$0xc]
      %v2427 = vld [vmem:[%s218 + $0x14] sm:$0xf]
      %v2428 = vld [vmem:[%s218 + $0x18] sm:$0xf]
      %v2429 = vld [vmem:[%s218 + $0x1c] sm:$0xf]
      %v2430 = vld [vmem:[%s218 + $0x20] sm:$0xf]
      %v2431 = vld [vmem:[%s218 + $0x24] sm:$0xf]
      %v2432 = vld [vmem:[%s218 + $0x28] sm:$0xf]
      %v2433 = vld [vmem:[%s218 + $0x2c] sm:$0xf]
      %v2434 = vld [vmem:[%s218 + $0x30] sm:$0xf]
      %v2435 = vld [vmem:[%s218 + $0x34] sm:$0xf]
      %v2436 = vld [vmem:[%s218 + $0x38] sm:$0xf]
      %v2437 = vld [vmem:[%s218 + $0x3c] sm:$0xf]
      %v2438 = vld [vmem:[%s218 + $0x40] sm:$0xf]
      %v2439 = vld [vmem:[%s218 + $0x44] sm:$0xf]
      %v2440 = vld [vmem:[%s218 + $0x48] sm:$0xf]
      %v2441 = vld [vmem:[%s218 + $0x4c] sm:$0xf]
      %v2442 = vld [vmem:[%s218 + $0x50] sm:$0xf]
      %v2443 = vld [vmem:[%s218 + $0x54] sm:$0xf]
      %v2444 = vld [vmem:[%s218 + $0x58] sm:$0xf]
      %v2445 = vld [vmem:[%s218 + $0x5c] sm:$0xf]
      %v2446 = vld [vmem:[%s218 + $0x60] sm:$0xf]
      %v2447 = vld [vmem:[%s218 + $0x64] sm:$0xf]
      %v2448 = vld [vmem:[%s218 + $0x68] sm:$0xf]
      %v2449 = vld [vmem:[%s218 + $0x6c] sm:$0xf]
      %v2450 = vld [vmem:[%s218 + $0x70] sm:$0xf]
      %v2451 = vld [vmem:[%s218 + $0x74] sm:$0xf]
      %v2452 = vld [vmem:[%s218 + $0x78] sm:$0xf]
      %v2453 = vld [vmem:[%s218 + $0x7c] sm:$0xf]
      %v2454 = vld [vmem:[%s218 + $0x80] sm:$0xf]
      %v2455 = vld [vmem:[%s218 + $0x84] sm:$0xf]
      %v2456 = vld [vmem:[%s218 + $0x88] sm:$0xf]
      %v2457 = vld [vmem:[%s218 + $0x8c] sm:$0xf]
      %v2458 = vld [vmem:[%s218 + $0x90] sm:$0xf]
      %v2459 = vld [vmem:[%s218 + $0x94] sm:$0xf]
      %v2460 = vld [vmem:[%s218 + $0x98] sm:$0xf]
      %v2461 = vld [vmem:[%s218 + $0x9c] sm:$0xf]
      %v2462 = vld [vmem:[%s218 + $0xa0] sm:$0x3]
      %v2500 = vrot.slane %v2426, 6
      %v2501 = vrot.slane %v2500, 4
      %v2502 = vrot.slane %v2427, 6
      %v2503 = vsel %vm2171, %v2501, %v2502
      %v2504 = vrot.slane %v2502, 4
      %v2505 = vrot.slane %v2428, 6
      %v2506 = vsel %vm2171, %v2504, %v2505
      %v2507 = vrot.slane %v2505, 4
      %v2508 = vrot.slane %v2429, 6
      %v2509 = vsel %vm2171, %v2507, %v2508
      %v2510 = vrot.slane %v2508, 4
      %v2511 = vrot.slane %v2430, 6
      %v2512 = vsel %vm2171, %v2510, %v2511
      %v2513 = vrot.slane %v2511, 4
      %v2514 = vrot.slane %v2431, 6
      %v2515 = vsel %vm2171, %v2513, %v2514
      %v2516 = vrot.slane %v2514, 4
      %v2517 = vrot.slane %v2432, 6
      %v2518 = vsel %vm2171, %v2516, %v2517
      %v2519 = vrot.slane %v2517, 4
      %v2520 = vrot.slane %v2433, 6
      %v2521 = vsel %vm2171, %v2519, %v2520
      %v2522 = vrot.slane %v2520, 4
      %v2523 = vrot.slane %v2434, 6
      %v2524 = vsel %vm2171, %v2522, %v2523
      %v2525 = vrot.slane %v2523, 4
      %v2526 = vrot.slane %v2435, 6
      %v2527 = vsel %vm2171, %v2525, %v2526
      %v2528 = vrot.slane %v2526, 4
      %v2529 = vrot.slane %v2436, 6
      %v2530 = vsel %vm2171, %v2528, %v2529
      %v2531 = vrot.slane %v2529, 4
      %v2532 = vrot.slane %v2437, 6
      %v2533 = vsel %vm2171, %v2531, %v2532
      %v2534 = vrot.slane %v2532, 4
      %v2535 = vrot.slane %v2438, 6
      %v2536 = vsel %vm2171, %v2534, %v2535
      %v2537 = vrot.slane %v2535, 4
      %v2538 = vrot.slane %v2439, 6
      %v2539 = vsel %vm2171, %v2537, %v2538
      %v2540 = vrot.slane %v2538, 4
      %v2541 = vrot.slane %v2440, 6
      %v2542 = vsel %vm2171, %v2540, %v2541
      %v2543 = vrot.slane %v2541, 4
      %v2544 = vrot.slane %v2441, 6
      %v2545 = vsel %vm2171, %v2543, %v2544
      %v2546 = vrot.slane %v2544, 4
      %v2547 = vrot.slane %v2442, 6
      %v2548 = vsel %vm2171, %v2546, %v2547
      %v2549 = vrot.slane %v2547, 4
      %v2550 = vrot.slane %v2443, 6
      %v2551 = vsel %vm2171, %v2549, %v2550
      %v2552 = vrot.slane %v2550, 4
      %v2553 = vrot.slane %v2444, 6
      %v2554 = vsel %vm2171, %v2552, %v2553
      %v2555 = vrot.slane %v2553, 4
      %v2556 = vrot.slane %v2445, 6
      %v2557 = vsel %vm2171, %v2555, %v2556
      %v2558 = vrot.slane %v2556, 4
      %v2559 = vrot.slane %v2446, 6
      %v2560 = vsel %vm2171, %v2558, %v2559
      %v2561 = vrot.slane %v2559, 4
      %v2562 = vrot.slane %v2447, 6
      %v2563 = vsel %vm2171, %v2561, %v2562
      %v2564 = vrot.slane %v2562, 4
      %v2565 = vrot.slane %v2448, 6
      %v2566 = vsel %vm2171, %v2564, %v2565
      %v2567 = vrot.slane %v2565, 4
      %v2568 = vrot.slane %v2449, 6
      %v2569 = vsel %vm2171, %v2567, %v2568
      %v2570 = vrot.slane %v2568, 4
      %v2571 = vrot.slane %v2450, 6
      %v2572 = vsel %vm2171, %v2570, %v2571
      %v2573 = vrot.slane %v2571, 4
      %v2574 = vrot.slane %v2451, 6
      %v2575 = vsel %vm2171, %v2573, %v2574
      %v2576 = vrot.slane %v2574, 4
      %v2577 = vrot.slane %v2452, 6
      %v2578 = vsel %vm2171, %v2576, %v2577
      %v2579 = vrot.slane %v2577, 4
      %v2580 = vrot.slane %v2453, 6
      %v2581 = vsel %vm2171, %v2579, %v2580
      %v2582 = vrot.slane %v2580, 4
      %v2583 = vrot.slane %v2454, 6
      %v2584 = vsel %vm2171, %v2582, %v2583
      %v2585 = vrot.slane %v2583, 4
      %v2586 = vrot.slane %v2455, 6
      %v2587 = vsel %vm2171, %v2585, %v2586
      %v2588 = vrot.slane %v2586, 4
      %v2589 = vrot.slane %v2456, 6
      %v2590 = vsel %vm2171, %v2588, %v2589
      %v2591 = vrot.slane %v2589, 4
      %v2592 = vrot.slane %v2457, 6
      %v2593 = vsel %vm2171, %v2591, %v2592
      %v2594 = vrot.slane %v2592, 4
      %v2595 = vrot.slane %v2458, 6
      %v2596 = vsel %vm2171, %v2594, %v2595
      %v2597 = vrot.slane %v2595, 4
      %v2598 = vrot.slane %v2459, 6
      %v2599 = vsel %vm2171, %v2597, %v2598
      %v2600 = vrot.slane %v2598, 4
      %v2601 = vrot.slane %v2460, 6
      %v2602 = vsel %vm2171, %v2600, %v2601
      %v2603 = vrot.slane %v2601, 4
      %v2604 = vrot.slane %v2461, 6
      %v2605 = vsel %vm2171, %v2603, %v2604
      %v2606 = vrot.slane %v2604, 4
      %v2607 = vrot.slane %v2462, 6
      %v2608 = vsel %vm2171, %v2606, %v2607
      %2609 = vrot.lane.b32.xlu0 %v2503, 48
      %v2610 = vpop.permute.xlu0 %2609
      %2611 = vrot.lane.b32.xlu0 %v2506, 48
      %v2612 = vpop.permute.xlu0 %2611
      %2613 = vrot.lane.b32.xlu0 %v2509, 48
      %v2614 = vpop.permute.xlu0 %2613
      %2615 = vrot.lane.b32.xlu0 %v2512, 48
      %v2616 = vpop.permute.xlu0 %2615
      %2617 = vrot.lane.b32.xlu0 %v2515, 48
      %v2618 = vpop.permute.xlu0 %2617
      %2619 = vrot.lane.b32.xlu0 %v2518, 48
      %v2620 = vpop.permute.xlu0 %2619
      %2621 = vrot.lane.b32.xlu0 %v2521, 48
      %v2622 = vpop.permute.xlu0 %2621
      %2623 = vrot.lane.b32.xlu0 %v2524, 48
      %v2624 = vpop.permute.xlu0 %2623
      %2625 = vrot.lane.b32.xlu0 %v2527, 48
      %v2626 = vpop.permute.xlu0 %2625
      %2627 = vrot.lane.b32.xlu0 %v2530, 48
      %v2628 = vpop.permute.xlu0 %2627
      %2629 = vrot.lane.b32.xlu0 %v2533, 48
      %v2630 = vpop.permute.xlu0 %2629
      %2631 = vrot.lane.b32.xlu0 %v2536, 48
      %v2632 = vpop.permute.xlu0 %2631
      %2633 = vrot.lane.b32.xlu0 %v2539, 48
      %v2634 = vpop.permute.xlu0 %2633
      %2635 = vrot.lane.b32.xlu0 %v2542, 48
      %v2636 = vpop.permute.xlu0 %2635
      %2637 = vrot.lane.b32.xlu0 %v2545, 48
      %v2638 = vpop.permute.xlu0 %2637
      %2639 = vrot.lane.b32.xlu0 %v2548, 48
      %v2640 = vpop.permute.xlu0 %2639
      %2641 = vrot.lane.b32.xlu0 %v2551, 48
      %v2642 = vpop.permute.xlu0 %2641
      %2643 = vrot.lane.b32.xlu0 %v2554, 48
      %v2644 = vpop.permute.xlu0 %2643
      %2645 = vrot.lane.b32.xlu0 %v2557, 48
      %v2646 = vpop.permute.xlu0 %2645
      %2647 = vrot.lane.b32.xlu0 %v2560, 48
      %v2648 = vpop.permute.xlu0 %2647
      %2649 = vrot.lane.b32.xlu0 %v2563, 48
      %v2650 = vpop.permute.xlu0 %2649
      %2651 = vrot.lane.b32.xlu0 %v2566, 48
      %v2652 = vpop.permute.xlu0 %2651
      %2653 = vrot.lane.b32.xlu0 %v2569, 48
      %v2654 = vpop.permute.xlu0 %2653
      %2655 = vrot.lane.b32.xlu0 %v2572, 48
      %v2656 = vpop.permute.xlu0 %2655
      %2657 = vrot.lane.b32.xlu0 %v2575, 48
      %v2658 = vpop.permute.xlu0 %2657
      %2659 = vrot.lane.b32.xlu0 %v2578, 48
      %v2660 = vpop.permute.xlu0 %2659
      %2661 = vrot.lane.b32.xlu0 %v2581, 48
      %v2662 = vpop.permute.xlu0 %2661
      %2663 = vrot.lane.b32.xlu0 %v2584, 48
      %v2664 = vpop.permute.xlu0 %2663
      %2665 = vrot.lane.b32.xlu0 %v2587, 48
      %v2666 = vpop.permute.xlu0 %2665
      %2667 = vrot.lane.b32.xlu0 %v2590, 48
      %v2668 = vpop.permute.xlu0 %2667
      %2669 = vrot.lane.b32.xlu0 %v2593, 48
      %v2670 = vpop.permute.xlu0 %2669
      %2671 = vrot.lane.b32.xlu0 %v2596, 48
      %v2672 = vpop.permute.xlu0 %2671
      %2673 = vrot.lane.b32.xlu0 %v2599, 48
      %v2674 = vpop.permute.xlu0 %2673
      %2675 = vrot.lane.b32.xlu0 %v2602, 48
      %v2676 = vpop.permute.xlu0 %2675
      %2677 = vrot.lane.b32.xlu0 %v2605, 48
      %v2678 = vpop.permute.xlu0 %2677
      %2679 = vrot.lane.b32.xlu0 %v2608, 48
      %v2680 = vpop.permute.xlu0 %2679
      %vm2717 = vcmask 454016
      %2718 = vst.msk [vmem:[#allocation2] sm:$0xf] %vm2717, %v2610
      %2719 = vst.msk [vmem:[#allocation2 + $0x4] sm:$0xf] %vm2717, %v2612
      %2720 = vst.msk [vmem:[#allocation2 + $0x8] sm:$0xf] %vm2717, %v2614
      %2721 = vst.msk [vmem:[#allocation2 + $0xc] sm:$0xf] %vm2717, %v2616
      %2722 = vst.msk [vmem:[#allocation2 + $0x10] sm:$0xf] %vm2717, %v2618
      %2723 = vst.msk [vmem:[#allocation2 + $0x14] sm:$0xf] %vm2717, %v2620
      %2724 = vst.msk [vmem:[#allocation2 + $0x18] sm:$0xf] %vm2717, %v2622
      %2725 = vst.msk [vmem:[#allocation2 + $0x1c] sm:$0xf] %vm2717, %v2624
      %2726 = vst.msk [vmem:[#allocation2 + $0x20] sm:$0xf] %vm2717, %v2626
      %2727 = vst.msk [vmem:[#allocation2 + $0x24] sm:$0xf] %vm2717, %v2628
      %2728 = vst.msk [vmem:[#allocation2 + $0x28] sm:$0xf] %vm2717, %v2630
      %2729 = vst.msk [vmem:[#allocation2 + $0x2c] sm:$0xf] %vm2717, %v2632
      %2730 = vst.msk [vmem:[#allocation2 + $0x30] sm:$0xf] %vm2717, %v2634
      %2731 = vst.msk [vmem:[#allocation2 + $0x34] sm:$0xf] %vm2717, %v2636
      %2732 = vst.msk [vmem:[#allocation2 + $0x38] sm:$0xf] %vm2717, %v2638
      %2733 = vst.msk [vmem:[#allocation2 + $0x3c] sm:$0xf] %vm2717, %v2640
      %2734 = vst.msk [vmem:[#allocation2 + $0x40] sm:$0xf] %vm2717, %v2642
      %2735 = vst.msk [vmem:[#allocation2 + $0x44] sm:$0xf] %vm2717, %v2644
      %2736 = vst.msk [vmem:[#allocation2 + $0x48] sm:$0xf] %vm2717, %v2646
      %2737 = vst.msk [vmem:[#allocation2 + $0x4c] sm:$0xf] %vm2717, %v2648
      %2738 = vst.msk [vmem:[#allocation2 + $0x50] sm:$0xf] %vm2717, %v2650
      %2739 = vst.msk [vmem:[#allocation2 + $0x54] sm:$0xf] %vm2717, %v2652
      %2740 = vst.msk [vmem:[#allocation2 + $0x58] sm:$0xf] %vm2717, %v2654
      %2741 = vst.msk [vmem:[#allocation2 + $0x5c] sm:$0xf] %vm2717, %v2656
      %2742 = vst.msk [vmem:[#allocation2 + $0x60] sm:$0xf] %vm2717, %v2658
      %2743 = vst.msk [vmem:[#allocation2 + $0x64] sm:$0xf] %vm2717, %v2660
      %2744 = vst.msk [vmem:[#allocation2 + $0x68] sm:$0xf] %vm2717, %v2662
      %2745 = vst.msk [vmem:[#allocation2 + $0x6c] sm:$0xf] %vm2717, %v2664
      %2746 = vst.msk [vmem:[#allocation2 + $0x70] sm:$0xf] %vm2717, %v2666
      %2747 = vst.msk [vmem:[#allocation2 + $0x74] sm:$0xf] %vm2717, %v2668
      %2748 = vst.msk [vmem:[#allocation2 + $0x78] sm:$0xf] %vm2717, %v2670
      %2749 = vst.msk [vmem:[#allocation2 + $0x7c] sm:$0xf] %vm2717, %v2672
      %2750 = vst.msk [vmem:[#allocation2 + $0x80] sm:$0xf] %vm2717, %v2674
      %2751 = vst.msk [vmem:[#allocation2 + $0x84] sm:$0xf] %vm2717, %v2676
      %2752 = vst.msk [vmem:[#allocation2 + $0x88] sm:$0xf] %vm2717, %v2678
      %2753 = vst.msk [vmem:[#allocation2 + $0x8c] sm:$0xf] %vm2717, %v2680
      %v2754 = vld [vmem:[%s218 + $0x10] sm:$0xc]
      %v2755 = vld [vmem:[%s218 + $0x14] sm:$0xf]
      %v2756 = vld [vmem:[%s218 + $0x18] sm:$0xf]
      %v2757 = vld [vmem:[%s218 + $0x1c] sm:$0xf]
      %v2758 = vld [vmem:[%s218 + $0x20] sm:$0xf]
      %v2759 = vld [vmem:[%s218 + $0x24] sm:$0xf]
      %v2760 = vld [vmem:[%s218 + $0x28] sm:$0xf]
      %v2761 = vld [vmem:[%s218 + $0x2c] sm:$0xf]
      %v2762 = vld [vmem:[%s218 + $0x30] sm:$0xf]
      %v2763 = vld [vmem:[%s218 + $0x34] sm:$0xf]
      %v2764 = vld [vmem:[%s218 + $0x38] sm:$0xf]
      %v2765 = vld [vmem:[%s218 + $0x3c] sm:$0xf]
      %v2766 = vld [vmem:[%s218 + $0x40] sm:$0xf]
      %v2767 = vld [vmem:[%s218 + $0x44] sm:$0xf]
      %v2768 = vld [vmem:[%s218 + $0x48] sm:$0xf]
      %v2769 = vld [vmem:[%s218 + $0x4c] sm:$0xf]
      %v2770 = vld [vmem:[%s218 + $0x50] sm:$0xf]
      %v2771 = vld [vmem:[%s218 + $0x54] sm:$0xf]
      %v2772 = vld [vmem:[%s218 + $0x58] sm:$0xf]
      %v2773 = vld [vmem:[%s218 + $0x5c] sm:$0xf]
      %v2774 = vld [vmem:[%s218 + $0x60] sm:$0xf]
      %v2775 = vld [vmem:[%s218 + $0x64] sm:$0xf]
      %v2776 = vld [vmem:[%s218 + $0x68] sm:$0xf]
      %v2777 = vld [vmem:[%s218 + $0x6c] sm:$0xf]
      %v2778 = vld [vmem:[%s218 + $0x70] sm:$0xf]
      %v2779 = vld [vmem:[%s218 + $0x74] sm:$0xf]
      %v2780 = vld [vmem:[%s218 + $0x78] sm:$0xf]
      %v2781 = vld [vmem:[%s218 + $0x7c] sm:$0xf]
      %v2782 = vld [vmem:[%s218 + $0x80] sm:$0xf]
      %v2783 = vld [vmem:[%s218 + $0x84] sm:$0xf]
      %v2784 = vld [vmem:[%s218 + $0x88] sm:$0xf]
      %v2785 = vld [vmem:[%s218 + $0x8c] sm:$0xf]
      %v2786 = vld [vmem:[%s218 + $0x90] sm:$0xf]
      %v2787 = vld [vmem:[%s218 + $0x94] sm:$0xf]
      %v2788 = vld [vmem:[%s218 + $0x98] sm:$0xf]
      %v2789 = vld [vmem:[%s218 + $0x9c] sm:$0xf]
      %v2790 = vld [vmem:[%s218 + $0xa0] sm:$0x7]
      %vm2791 = vsmask.f32 1280
      %vm2792 = vsmask.f32 5392
      %vm2793 = vmor %vm2791, %vm2792
      %v2795 = vshrl.u32 %v2754, 16
      %v2797 = vrot.slane %v2795, 6
      %v2798 = vshll.u32 %v2754, 16
      %v2800 = vrot.slane %v2798, 7
      %v2801 = vor.u32 %v2797, %v2800
      %v2802 = vrot.slane %v2801, 4
      %v2804 = vshrl.u32 %v2755, 16
      %v2806 = vrot.slane %v2804, 6
      %v2807 = vshll.u32 %v2755, 16
      %v2809 = vrot.slane %v2807, 7
      %v2810 = vor.u32 %v2806, %v2809
      %v2811 = vsel %vm2793, %v2802, %v2810
      %v2812 = vrot.slane %v2810, 4
      %v2814 = vshrl.u32 %v2756, 16
      %v2816 = vrot.slane %v2814, 6
      %v2817 = vshll.u32 %v2756, 16
      %v2819 = vrot.slane %v2817, 7
      %v2820 = vor.u32 %v2816, %v2819
      %v2821 = vsel %vm2793, %v2812, %v2820
      %v2822 = vrot.slane %v2820, 4
      %v2824 = vshrl.u32 %v2757, 16
      %v2826 = vrot.slane %v2824, 6
      %v2827 = vshll.u32 %v2757, 16
      %v2829 = vrot.slane %v2827, 7
      %v2830 = vor.u32 %v2826, %v2829
      %v2831 = vsel %vm2793, %v2822, %v2830
      %v2832 = vrot.slane %v2830, 4
      %v2834 = vshrl.u32 %v2758, 16
      %v2836 = vrot.slane %v2834, 6
      %v2837 = vshll.u32 %v2758, 16
      %v2839 = vrot.slane %v2837, 7
      %v2840 = vor.u32 %v2836, %v2839
      %v2841 = vsel %vm2793, %v2832, %v2840
      %v2842 = vrot.slane %v2840, 4
      %v2844 = vshrl.u32 %v2759, 16
      %v2846 = vrot.slane %v2844, 6
      %v2847 = vshll.u32 %v2759, 16
      %v2849 = vrot.slane %v2847, 7
      %v2850 = vor.u32 %v2846, %v2849
      %v2851 = vsel %vm2793, %v2842, %v2850
      %v2852 = vrot.slane %v2850, 4
      %v2854 = vshrl.u32 %v2760, 16
      %v2856 = vrot.slane %v2854, 6
      %v2857 = vshll.u32 %v2760, 16
      %v2859 = vrot.slane %v2857, 7
      %v2860 = vor.u32 %v2856, %v2859
      %v2861 = vsel %vm2793, %v2852, %v2860
      %v2862 = vrot.slane %v2860, 4
      %v2864 = vshrl.u32 %v2761, 16
      %v2866 = vrot.slane %v2864, 6
      %v2867 = vshll.u32 %v2761, 16
      %v2869 = vrot.slane %v2867, 7
      %v2870 = vor.u32 %v2866, %v2869
      %v2871 = vsel %vm2793, %v2862, %v2870
      %v2872 = vrot.slane %v2870, 4
      %v2874 = vshrl.u32 %v2762, 16
      %v2876 = vrot.slane %v2874, 6
      %v2877 = vshll.u32 %v2762, 16
      %v2879 = vrot.slane %v2877, 7
      %v2880 = vor.u32 %v2876, %v2879
      %v2881 = vsel %vm2793, %v2872, %v2880
      %v2882 = vrot.slane %v2880, 4
      %v2884 = vshrl.u32 %v2763, 16
      %v2886 = vrot.slane %v2884, 6
      %v2887 = vshll.u32 %v2763, 16
      %v2889 = vrot.slane %v2887, 7
      %v2890 = vor.u32 %v2886, %v2889
      %v2891 = vsel %vm2793, %v2882, %v2890
      %v2892 = vrot.slane %v2890, 4
      %v2894 = vshrl.u32 %v2764, 16
      %v2896 = vrot.slane %v2894, 6
      %v2897 = vshll.u32 %v2764, 16
      %v2899 = vrot.slane %v2897, 7
      %v2900 = vor.u32 %v2896, %v2899
      %v2901 = vsel %vm2793, %v2892, %v2900
      %v2902 = vrot.slane %v2900, 4
      %v2904 = vshrl.u32 %v2765, 16
      %v2906 = vrot.slane %v2904, 6
      %v2907 = vshll.u32 %v2765, 16
      %v2909 = vrot.slane %v2907, 7
      %v2910 = vor.u32 %v2906, %v2909
      %v2911 = vsel %vm2793, %v2902, %v2910
      %v2912 = vrot.slane %v2910, 4
      %v2914 = vshrl.u32 %v2766, 16
      %v2916 = vrot.slane %v2914, 6
      %v2917 = vshll.u32 %v2766, 16
      %v2919 = vrot.slane %v2917, 7
      %v2920 = vor.u32 %v2916, %v2919
      %v2921 = vsel %vm2793, %v2912, %v2920
      %v2922 = vrot.slane %v2920, 4
      %v2924 = vshrl.u32 %v2767, 16
      %v2926 = vrot.slane %v2924, 6
      %v2927 = vshll.u32 %v2767, 16
      %v2929 = vrot.slane %v2927, 7
      %v2930 = vor.u32 %v2926, %v2929
      %v2931 = vsel %vm2793, %v2922, %v2930
      %v2932 = vrot.slane %v2930, 4
      %v2934 = vshrl.u32 %v2768, 16
      %v2936 = vrot.slane %v2934, 6
      %v2937 = vshll.u32 %v2768, 16
      %v2939 = vrot.slane %v2937, 7
      %v2940 = vor.u32 %v2936, %v2939
      %v2941 = vsel %vm2793, %v2932, %v2940
      %v2942 = vrot.slane %v2940, 4
      %v2944 = vshrl.u32 %v2769, 16
      %v2946 = vrot.slane %v2944, 6
      %v2947 = vshll.u32 %v2769, 16
      %v2949 = vrot.slane %v2947, 7
      %v2950 = vor.u32 %v2946, %v2949
      %v2951 = vsel %vm2793, %v2942, %v2950
      %v2952 = vrot.slane %v2950, 4
      %v2954 = vshrl.u32 %v2770, 16
      %v2956 = vrot.slane %v2954, 6
      %v2957 = vshll.u32 %v2770, 16
      %v2959 = vrot.slane %v2957, 7
      %v2960 = vor.u32 %v2956, %v2959
      %v2961 = vsel %vm2793, %v2952, %v2960
      %v2962 = vrot.slane %v2960, 4
      %v2964 = vshrl.u32 %v2771, 16
      %v2966 = vrot.slane %v2964, 6
      %v2967 = vshll.u32 %v2771, 16
      %v2969 = vrot.slane %v2967, 7
      %v2970 = vor.u32 %v2966, %v2969
      %v2971 = vsel %vm2793, %v2962, %v2970
      %v2972 = vrot.slane %v2970, 4
      %v2974 = vshrl.u32 %v2772, 16
      %v2976 = vrot.slane %v2974, 6
      %v2977 = vshll.u32 %v2772, 16
      %v2979 = vrot.slane %v2977, 7
      %v2980 = vor.u32 %v2976, %v2979
      %v2981 = vsel %vm2793, %v2972, %v2980
      %v2982 = vrot.slane %v2980, 4
      %v2984 = vshrl.u32 %v2773, 16
      %v2986 = vrot.slane %v2984, 6
      %v2987 = vshll.u32 %v2773, 16
      %v2989 = vrot.slane %v2987, 7
      %v2990 = vor.u32 %v2986, %v2989
      %v2991 = vsel %vm2793, %v2982, %v2990
      %v2992 = vrot.slane %v2990, 4
      %v2994 = vshrl.u32 %v2774, 16
      %v2996 = vrot.slane %v2994, 6
      %v2997 = vshll.u32 %v2774, 16
      %v2999 = vrot.slane %v2997, 7
      %v3000 = vor.u32 %v2996, %v2999
      %v3001 = vsel %vm2793, %v2992, %v3000
      %v3002 = vrot.slane %v3000, 4
      %v3004 = vshrl.u32 %v2775, 16
      %v3006 = vrot.slane %v3004, 6
      %v3007 = vshll.u32 %v2775, 16
      %v3009 = vrot.slane %v3007, 7
      %v3010 = vor.u32 %v3006, %v3009
      %v3011 = vsel %vm2793, %v3002, %v3010
      %v3012 = vrot.slane %v3010, 4
      %v3014 = vshrl.u32 %v2776, 16
      %v3016 = vrot.slane %v3014, 6
      %v3017 = vshll.u32 %v2776, 16
      %v3019 = vrot.slane %v3017, 7
      %v3020 = vor.u32 %v3016, %v3019
      %v3021 = vsel %vm2793, %v3012, %v3020
      %v3022 = vrot.slane %v3020, 4
      %v3024 = vshrl.u32 %v2777, 16
      %v3026 = vrot.slane %v3024, 6
      %v3027 = vshll.u32 %v2777, 16
      %v3029 = vrot.slane %v3027, 7
      %v3030 = vor.u32 %v3026, %v3029
      %v3031 = vsel %vm2793, %v3022, %v3030
      %v3032 = vrot.slane %v3030, 4
      %v3034 = vshrl.u32 %v2778, 16
      %v3036 = vrot.slane %v3034, 6
      %v3037 = vshll.u32 %v2778, 16
      %v3039 = vrot.slane %v3037, 7
      %v3040 = vor.u32 %v3036, %v3039
      %v3041 = vsel %vm2793, %v3032, %v3040
      %v3042 = vrot.slane %v3040, 4
      %v3044 = vshrl.u32 %v2779, 16
      %v3046 = vrot.slane %v3044, 6
      %v3047 = vshll.u32 %v2779, 16
      %v3049 = vrot.slane %v3047, 7
      %v3050 = vor.u32 %v3046, %v3049
      %v3051 = vsel %vm2793, %v3042, %v3050
      %v3052 = vrot.slane %v3050, 4
      %v3054 = vshrl.u32 %v2780, 16
      %v3056 = vrot.slane %v3054, 6
      %v3057 = vshll.u32 %v2780, 16
      %v3059 = vrot.slane %v3057, 7
      %v3060 = vor.u32 %v3056, %v3059
      %v3061 = vsel %vm2793, %v3052, %v3060
      %v3062 = vrot.slane %v3060, 4
      %v3064 = vshrl.u32 %v2781, 16
      %v3066 = vrot.slane %v3064, 6
      %v3067 = vshll.u32 %v2781, 16
      %v3069 = vrot.slane %v3067, 7
      %v3070 = vor.u32 %v3066, %v3069
      %v3071 = vsel %vm2793, %v3062, %v3070
      %v3072 = vrot.slane %v3070, 4
      %v3074 = vshrl.u32 %v2782, 16
      %v3076 = vrot.slane %v3074, 6
      %v3077 = vshll.u32 %v2782, 16
      %v3079 = vrot.slane %v3077, 7
      %v3080 = vor.u32 %v3076, %v3079
      %v3081 = vsel %vm2793, %v3072, %v3080
      %v3082 = vrot.slane %v3080, 4
      %v3084 = vshrl.u32 %v2783, 16
      %v3086 = vrot.slane %v3084, 6
      %v3087 = vshll.u32 %v2783, 16
      %v3089 = vrot.slane %v3087, 7
      %v3090 = vor.u32 %v3086, %v3089
      %v3091 = vsel %vm2793, %v3082, %v3090
      %v3092 = vrot.slane %v3090, 4
      %v3094 = vshrl.u32 %v2784, 16
      %v3096 = vrot.slane %v3094, 6
      %v3097 = vshll.u32 %v2784, 16
      %v3099 = vrot.slane %v3097, 7
      %v3100 = vor.u32 %v3096, %v3099
      %v3101 = vsel %vm2793, %v3092, %v3100
      %v3102 = vrot.slane %v3100, 4
      %v3104 = vshrl.u32 %v2785, 16
      %v3106 = vrot.slane %v3104, 6
      %v3107 = vshll.u32 %v2785, 16
      %v3109 = vrot.slane %v3107, 7
      %v3110 = vor.u32 %v3106, %v3109
      %v3111 = vsel %vm2793, %v3102, %v3110
      %v3112 = vrot.slane %v3110, 4
      %v3114 = vshrl.u32 %v2786, 16
      %v3116 = vrot.slane %v3114, 6
      %v3117 = vshll.u32 %v2786, 16
      %v3119 = vrot.slane %v3117, 7
      %v3120 = vor.u32 %v3116, %v3119
      %v3121 = vsel %vm2793, %v3112, %v3120
      %v3122 = vrot.slane %v3120, 4
      %v3124 = vshrl.u32 %v2787, 16
      %v3126 = vrot.slane %v3124, 6
      %v3127 = vshll.u32 %v2787, 16
      %v3129 = vrot.slane %v3127, 7
      %v3130 = vor.u32 %v3126, %v3129
      %v3131 = vsel %vm2793, %v3122, %v3130
      %v3132 = vrot.slane %v3130, 4
      %v3134 = vshrl.u32 %v2788, 16
      %v3136 = vrot.slane %v3134, 6
      %v3137 = vshll.u32 %v2788, 16
      %v3139 = vrot.slane %v3137, 7
      %v3140 = vor.u32 %v3136, %v3139
      %v3141 = vsel %vm2793, %v3132, %v3140
      %v3142 = vrot.slane %v3140, 4
      %v3144 = vshrl.u32 %v2789, 16
      %v3146 = vrot.slane %v3144, 6
      %v3147 = vshll.u32 %v2789, 16
      %v3149 = vrot.slane %v3147, 7
      %v3150 = vor.u32 %v3146, %v3149
      %v3151 = vsel %vm2793, %v3142, %v3150
      %v3152 = vrot.slane %v3150, 4
      %v3154 = vshrl.u32 %v2790, 16
      %v3156 = vrot.slane %v3154, 6
      %v3157 = vshll.u32 %v2790, 16
      %v3159 = vrot.slane %v3157, 7
      %v3160 = vor.u32 %v3156, %v3159
      %v3161 = vsel %vm2793, %v3152, %v3160
      %3162 = vrot.lane.b32.xlu0 %v2811, 56
      %v3163 = vpop.permute.xlu0 %3162
      %3164 = vrot.lane.b32.xlu0 %v2821, 56
      %v3165 = vpop.permute.xlu0 %3164
      %3166 = vrot.lane.b32.xlu0 %v2831, 56
      %v3167 = vpop.permute.xlu0 %3166
      %3168 = vrot.lane.b32.xlu0 %v2841, 56
      %v3169 = vpop.permute.xlu0 %3168
      %3170 = vrot.lane.b32.xlu0 %v2851, 56
      %v3171 = vpop.permute.xlu0 %3170
      %3172 = vrot.lane.b32.xlu0 %v2861, 56
      %v3173 = vpop.permute.xlu0 %3172
      %3174 = vrot.lane.b32.xlu0 %v2871, 56
      %v3175 = vpop.permute.xlu0 %3174
      %3176 = vrot.lane.b32.xlu0 %v2881, 56
      %v3177 = vpop.permute.xlu0 %3176
      %3178 = vrot.lane.b32.xlu0 %v2891, 56
      %v3179 = vpop.permute.xlu0 %3178
      %3180 = vrot.lane.b32.xlu0 %v2901, 56
      %v3181 = vpop.permute.xlu0 %3180
      %3182 = vrot.lane.b32.xlu0 %v2911, 56
      %v3183 = vpop.permute.xlu0 %3182
      %3184 = vrot.lane.b32.xlu0 %v2921, 56
      %v3185 = vpop.permute.xlu0 %3184
      %3186 = vrot.lane.b32.xlu0 %v2931, 56
      %v3187 = vpop.permute.xlu0 %3186
      %3188 = vrot.lane.b32.xlu0 %v2941, 56
      %v3189 = vpop.permute.xlu0 %3188
      %3190 = vrot.lane.b32.xlu0 %v2951, 56
      %v3191 = vpop.permute.xlu0 %3190
      %3192 = vrot.lane.b32.xlu0 %v2961, 56
      %v3193 = vpop.permute.xlu0 %3192
      %3194 = vrot.lane.b32.xlu0 %v2971, 56
      %v3195 = vpop.permute.xlu0 %3194
      %3196 = vrot.lane.b32.xlu0 %v2981, 56
      %v3197 = vpop.permute.xlu0 %3196
      %3198 = vrot.lane.b32.xlu0 %v2991, 56
      %v3199 = vpop.permute.xlu0 %3198
      %3200 = vrot.lane.b32.xlu0 %v3001, 56
      %v3201 = vpop.permute.xlu0 %3200
      %3202 = vrot.lane.b32.xlu0 %v3011, 56
      %v3203 = vpop.permute.xlu0 %3202
      %3204 = vrot.lane.b32.xlu0 %v3021, 56
      %v3205 = vpop.permute.xlu0 %3204
      %3206 = vrot.lane.b32.xlu0 %v3031, 56
      %v3207 = vpop.permute.xlu0 %3206
      %3208 = vrot.lane.b32.xlu0 %v3041, 56
      %v3209 = vpop.permute.xlu0 %3208
      %3210 = vrot.lane.b32.xlu0 %v3051, 56
      %v3211 = vpop.permute.xlu0 %3210
      %3212 = vrot.lane.b32.xlu0 %v3061, 56
      %v3213 = vpop.permute.xlu0 %3212
      %3214 = vrot.lane.b32.xlu0 %v3071, 56
      %v3215 = vpop.permute.xlu0 %3214
      %3216 = vrot.lane.b32.xlu0 %v3081, 56
      %v3217 = vpop.permute.xlu0 %3216
      %3218 = vrot.lane.b32.xlu0 %v3091, 56
      %v3219 = vpop.permute.xlu0 %3218
      %3220 = vrot.lane.b32.xlu0 %v3101, 56
      %v3221 = vpop.permute.xlu0 %3220
      %3222 = vrot.lane.b32.xlu0 %v3111, 56
      %v3223 = vpop.permute.xlu0 %3222
      %3224 = vrot.lane.b32.xlu0 %v3121, 56
      %v3225 = vpop.permute.xlu0 %3224
      %3226 = vrot.lane.b32.xlu0 %v3131, 56
      %v3227 = vpop.permute.xlu0 %3226
      %3228 = vrot.lane.b32.xlu0 %v3141, 56
      %v3229 = vpop.permute.xlu0 %3228
      %3230 = vrot.lane.b32.xlu0 %v3151, 56
      %v3231 = vpop.permute.xlu0 %3230
      %3232 = vrot.lane.b32.xlu0 %v3161, 56
      %v3233 = vpop.permute.xlu0 %3232
      %vm3270 = vcmask 519616
      %3271 = vst.msk [vmem:[#allocation2] sm:$0xf] %vm3270, %v3163
      %3272 = vst.msk [vmem:[#allocation2 + $0x4] sm:$0xf] %vm3270, %v3165
      %3273 = vst.msk [vmem:[#allocation2 + $0x8] sm:$0xf] %vm3270, %v3167
      %3274 = vst.msk [vmem:[#allocation2 + $0xc] sm:$0xf] %vm3270, %v3169
      %3275 = vst.msk [vmem:[#allocation2 + $0x10] sm:$0xf] %vm3270, %v3171
      %3276 = vst.msk [vmem:[#allocation2 + $0x14] sm:$0xf] %vm3270, %v3173
      %3277 = vst.msk [vmem:[#allocation2 + $0x18] sm:$0xf] %vm3270, %v3175
      %3278 = vst.msk [vmem:[#allocation2 + $0x1c] sm:$0xf] %vm3270, %v3177
      %3279 = vst.msk [vmem:[#allocation2 + $0x20] sm:$0xf] %vm3270, %v3179
      %3280 = vst.msk [vmem:[#allocation2 + $0x24] sm:$0xf] %vm3270, %v3181
      %3281 = vst.msk [vmem:[#allocation2 + $0x28] sm:$0xf] %vm3270, %v3183
      %3282 = vst.msk [vmem:[#allocation2 + $0x2c] sm:$0xf] %vm3270, %v3185
      %3283 = vst.msk [vmem:[#allocation2 + $0x30] sm:$0xf] %vm3270, %v3187
      %3284 = vst.msk [vmem:[#allocation2 + $0x34] sm:$0xf] %vm3270, %v3189
      %3285 = vst.msk [vmem:[#allocation2 + $0x38] sm:$0xf] %vm3270, %v3191
      %3286 = vst.msk [vmem:[#allocation2 + $0x3c] sm:$0xf] %vm3270, %v3193
      %3287 = vst.msk [vmem:[#allocation2 + $0x40] sm:$0xf] %vm3270, %v3195
      %3288 = vst.msk [vmem:[#allocation2 + $0x44] sm:$0xf] %vm3270, %v3197
      %3289 = vst.msk [vmem:[#allocation2 + $0x48] sm:$0xf] %vm3270, %v3199
      %3290 = vst.msk [vmem:[#allocation2 + $0x4c] sm:$0xf] %vm3270, %v3201
      %3291 = vst.msk [vmem:[#allocation2 + $0x50] sm:$0xf] %vm3270, %v3203
      %3292 = vst.msk [vmem:[#allocation2 + $0x54] sm:$0xf] %vm3270, %v3205
      %3293 = vst.msk [vmem:[#allocation2 + $0x58] sm:$0xf] %vm3270, %v3207
      %3294 = vst.msk [vmem:[#allocation2 + $0x5c] sm:$0xf] %vm3270, %v3209
      %3295 = vst.msk [vmem:[#allocation2 + $0x60] sm:$0xf] %vm3270, %v3211
      %3296 = vst.msk [vmem:[#allocation2 + $0x64] sm:$0xf] %vm3270, %v3213
      %3297 = vst.msk [vmem:[#allocation2 + $0x68] sm:$0xf] %vm3270, %v3215
      %3298 = vst.msk [vmem:[#allocation2 + $0x6c] sm:$0xf] %vm3270, %v3217
      %3299 = vst.msk [vmem:[#allocation2 + $0x70] sm:$0xf] %vm3270, %v3219
      %3300 = vst.msk [vmem:[#allocation2 + $0x74] sm:$0xf] %vm3270, %v3221
      %3301 = vst.msk [vmem:[#allocation2 + $0x78] sm:$0xf] %vm3270, %v3223
      %3302 = vst.msk [vmem:[#allocation2 + $0x7c] sm:$0xf] %vm3270, %v3225
      %3303 = vst.msk [vmem:[#allocation2 + $0x80] sm:$0xf] %vm3270, %v3227
      %3304 = vst.msk [vmem:[#allocation2 + $0x84] sm:$0xf] %vm3270, %v3229
      %3305 = vst.msk [vmem:[#allocation2 + $0x88] sm:$0xf] %vm3270, %v3231
      %3306 = vst.msk [vmem:[#allocation2 + $0x8c] sm:$0xf] %vm3270, %v3233
      %v3307 = vld [vmem:[%s218 + $0x10] sm:$0x8]
      %v3308 = vld [vmem:[%s218 + $0x14] sm:$0xf]
      %v3309 = vld [vmem:[%s218 + $0x18] sm:$0xf]
      %v3310 = vld [vmem:[%s218 + $0x1c] sm:$0xf]
      %v3311 = vld [vmem:[%s218 + $0x20] sm:$0xf]
      %v3312 = vld [vmem:[%s218 + $0x24] sm:$0xf]
      %v3313 = vld [vmem:[%s218 + $0x28] sm:$0xf]
      %v3314 = vld [vmem:[%s218 + $0x2c] sm:$0xf]
      %v3315 = vld [vmem:[%s218 + $0x30] sm:$0xf]
      %v3316 = vld [vmem:[%s218 + $0x34] sm:$0xf]
      %v3317 = vld [vmem:[%s218 + $0x38] sm:$0xf]
      %v3318 = vld [vmem:[%s218 + $0x3c] sm:$0xf]
      %v3319 = vld [vmem:[%s218 + $0x40] sm:$0xf]
      %v3320 = vld [vmem:[%s218 + $0x44] sm:$0xf]
      %v3321 = vld [vmem:[%s218 + $0x48] sm:$0xf]
      %v3322 = vld [vmem:[%s218 + $0x4c] sm:$0xf]
      %v3323 = vld [vmem:[%s218 + $0x50] sm:$0xf]
      %v3324 = vld [vmem:[%s218 + $0x54] sm:$0xf]
      %v3325 = vld [vmem:[%s218 + $0x58] sm:$0xf]
      %v3326 = vld [vmem:[%s218 + $0x5c] sm:$0xf]
      %v3327 = vld [vmem:[%s218 + $0x60] sm:$0xf]
      %v3328 = vld [vmem:[%s218 + $0x64] sm:$0xf]
      %v3329 = vld [vmem:[%s218 + $0x68] sm:$0xf]
      %v3330 = vld [vmem:[%s218 + $0x6c] sm:$0xf]
      %v3331 = vld [vmem:[%s218 + $0x70] sm:$0xf]
      %v3332 = vld [vmem:[%s218 + $0x74] sm:$0xf]
      %v3333 = vld [vmem:[%s218 + $0x78] sm:$0xf]
      %v3334 = vld [vmem:[%s218 + $0x7c] sm:$0xf]
      %v3335 = vld [vmem:[%s218 + $0x80] sm:$0xf]
      %v3336 = vld [vmem:[%s218 + $0x84] sm:$0xf]
      %v3337 = vld [vmem:[%s218 + $0x88] sm:$0xf]
      %v3338 = vld [vmem:[%s218 + $0x8c] sm:$0xf]
      %v3339 = vld [vmem:[%s218 + $0x90] sm:$0xf]
      %v3340 = vld [vmem:[%s218 + $0x94] sm:$0xf]
      %v3341 = vld [vmem:[%s218 + $0x98] sm:$0xf]
      %v3342 = vld [vmem:[%s218 + $0x9c] sm:$0xf]
      %v3343 = vld [vmem:[%s218 + $0xa0] sm:$0x7]
      %vm3381 = vcmask 1040384
      %vm3382 = vcmask 1044484
      %vm3383 = vmor %vm3381, %vm3382
      %v3384 = vrot.slane %v3307, 7
      %v3385 = vrot.slane %v3384, 4
      %v3386 = vrot.slane %v3308, 7
      %v3387 = vsel %vm3383, %v3385, %v3386
      %v3388 = vrot.slane %v3386, 4
      %v3389 = vrot.slane %v3309, 7
      %v3390 = vsel %vm3383, %v3388, %v3389
      %v3391 = vrot.slane %v3389, 4
      %v3392 = vrot.slane %v3310, 7
      %v3393 = vsel %vm3383, %v3391, %v3392
      %v3394 = vrot.slane %v3392, 4
      %v3395 = vrot.slane %v3311, 7
      %v3396 = vsel %vm3383, %v3394, %v3395
      %v3397 = vrot.slane %v3395, 4
      %v3398 = vrot.slane %v3312, 7
      %v3399 = vsel %vm3383, %v3397, %v3398
      %v3400 = vrot.slane %v3398, 4
      %v3401 = vrot.slane %v3313, 7
      %v3402 = vsel %vm3383, %v3400, %v3401
      %v3403 = vrot.slane %v3401, 4
      %v3404 = vrot.slane %v3314, 7
      %v3405 = vsel %vm3383, %v3403, %v3404
      %v3406 = vrot.slane %v3404, 4
      %v3407 = vrot.slane %v3315, 7
      %v3408 = vsel %vm3383, %v3406, %v3407
      %v3409 = vrot.slane %v3407, 4
      %v3410 = vrot.slane %v3316, 7
      %v3411 = vsel %vm3383, %v3409, %v3410
      %v3412 = vrot.slane %v3410, 4
      %v3413 = vrot.slane %v3317, 7
      %v3414 = vsel %vm3383, %v3412, %v3413
      %v3415 = vrot.slane %v3413, 4
      %v3416 = vrot.slane %v3318, 7
      %v3417 = vsel %vm3383, %v3415, %v3416
      %v3418 = vrot.slane %v3416, 4
      %v3419 = vrot.slane %v3319, 7
      %v3420 = vsel %vm3383, %v3418, %v3419
      %v3421 = vrot.slane %v3419, 4
      %v3422 = vrot.slane %v3320, 7
      %v3423 = vsel %vm3383, %v3421, %v3422
      %v3424 = vrot.slane %v3422, 4
      %v3425 = vrot.slane %v3321, 7
      %v3426 = vsel %vm3383, %v3424, %v3425
      %v3427 = vrot.slane %v3425, 4
      %v3428 = vrot.slane %v3322, 7
      %v3429 = vsel %vm3383, %v3427, %v3428
      %v3430 = vrot.slane %v3428, 4
      %v3431 = vrot.slane %v3323, 7
      %v3432 = vsel %vm3383, %v3430, %v3431
      %v3433 = vrot.slane %v3431, 4
      %v3434 = vrot.slane %v3324, 7
      %v3435 = vsel %vm3383, %v3433, %v3434
      %v3436 = vrot.slane %v3434, 4
      %v3437 = vrot.slane %v3325, 7
      %v3438 = vsel %vm3383, %v3436, %v3437
      %v3439 = vrot.slane %v3437, 4
      %v3440 = vrot.slane %v3326, 7
      %v3441 = vsel %vm3383, %v3439, %v3440
      %v3442 = vrot.slane %v3440, 4
      %v3443 = vrot.slane %v3327, 7
      %v3444 = vsel %vm3383, %v3442, %v3443
      %v3445 = vrot.slane %v3443, 4
      %v3446 = vrot.slane %v3328, 7
      %v3447 = vsel %vm3383, %v3445, %v3446
      %v3448 = vrot.slane %v3446, 4
      %v3449 = vrot.slane %v3329, 7
      %v3450 = vsel %vm3383, %v3448, %v3449
      %v3451 = vrot.slane %v3449, 4
      %v3452 = vrot.slane %v3330, 7
      %v3453 = vsel %vm3383, %v3451, %v3452
      %v3454 = vrot.slane %v3452, 4
      %v3455 = vrot.slane %v3331, 7
      %v3456 = vsel %vm3383, %v3454, %v3455
      %v3457 = vrot.slane %v3455, 4
      %v3458 = vrot.slane %v3332, 7
      %v3459 = vsel %vm3383, %v3457, %v3458
      %v3460 = vrot.slane %v3458, 4
      %v3461 = vrot.slane %v3333, 7
      %v3462 = vsel %vm3383, %v3460, %v3461
      %v3463 = vrot.slane %v3461, 4
      %v3464 = vrot.slane %v3334, 7
      %v3465 = vsel %vm3383, %v3463, %v3464
      %v3466 = vrot.slane %v3464, 4
      %v3467 = vrot.slane %v3335, 7
      %v3468 = vsel %vm3383, %v3466, %v3467
      %v3469 = vrot.slane %v3467, 4
      %v3470 = vrot.slane %v3336, 7
      %v3471 = vsel %vm3383, %v3469, %v3470
      %v3472 = vrot.slane %v3470, 4
      %v3473 = vrot.slane %v3337, 7
      %v3474 = vsel %vm3383, %v3472, %v3473
      %v3475 = vrot.slane %v3473, 4
      %v3476 = vrot.slane %v3338, 7
      %v3477 = vsel %vm3383, %v3475, %v3476
      %v3478 = vrot.slane %v3476, 4
      %v3479 = vrot.slane %v3339, 7
      %v3480 = vsel %vm3383, %v3478, %v3479
      %v3481 = vrot.slane %v3479, 4
      %v3482 = vrot.slane %v3340, 7
      %v3483 = vsel %vm3383, %v3481, %v3482
      %v3484 = vrot.slane %v3482, 4
      %v3485 = vrot.slane %v3341, 7
      %v3486 = vsel %vm3383, %v3484, %v3485
      %v3487 = vrot.slane %v3485, 4
      %v3488 = vrot.slane %v3342, 7
      %v3489 = vsel %vm3383, %v3487, %v3488
      %v3490 = vrot.slane %v3488, 4
      %v3491 = vrot.slane %v3343, 7
      %v3492 = vsel %vm3383, %v3490, %v3491
      %3493 = vrot.lane.b32.xlu0 %v3387, 64
      %v3494 = vpop.permute.xlu0 %3493
      %3495 = vrot.lane.b32.xlu0 %v3390, 64
      %v3496 = vpop.permute.xlu0 %3495
      %3497 = vrot.lane.b32.xlu0 %v3393, 64
      %v3498 = vpop.permute.xlu0 %3497
      %3499 = vrot.lane.b32.xlu0 %v3396, 64
      %v3500 = vpop.permute.xlu0 %3499
      %3501 = vrot.lane.b32.xlu0 %v3399, 64
      %v3502 = vpop.permute.xlu0 %3501
      %3503 = vrot.lane.b32.xlu0 %v3402, 64
      %v3504 = vpop.permute.xlu0 %3503
      %3505 = vrot.lane.b32.xlu0 %v3405, 64
      %v3506 = vpop.permute.xlu0 %3505
      %3507 = vrot.lane.b32.xlu0 %v3408, 64
      %v3508 = vpop.permute.xlu0 %3507
      %3509 = vrot.lane.b32.xlu0 %v3411, 64
      %v3510 = vpop.permute.xlu0 %3509
      %3511 = vrot.lane.b32.xlu0 %v3414, 64
      %v3512 = vpop.permute.xlu0 %3511
      %3513 = vrot.lane.b32.xlu0 %v3417, 64
      %v3514 = vpop.permute.xlu0 %3513
      %3515 = vrot.lane.b32.xlu0 %v3420, 64
      %v3516 = vpop.permute.xlu0 %3515
      %3517 = vrot.lane.b32.xlu0 %v3423, 64
      %v3518 = vpop.permute.xlu0 %3517
      %3519 = vrot.lane.b32.xlu0 %v3426, 64
      %v3520 = vpop.permute.xlu0 %3519
      %3521 = vrot.lane.b32.xlu0 %v3429, 64
      %v3522 = vpop.permute.xlu0 %3521
      %3523 = vrot.lane.b32.xlu0 %v3432, 64
      %v3524 = vpop.permute.xlu0 %3523
      %3525 = vrot.lane.b32.xlu0 %v3435, 64
      %v3526 = vpop.permute.xlu0 %3525
      %3527 = vrot.lane.b32.xlu0 %v3438, 64
      %v3528 = vpop.permute.xlu0 %3527
      %3529 = vrot.lane.b32.xlu0 %v3441, 64
      %v3530 = vpop.permute.xlu0 %3529
      %3531 = vrot.lane.b32.xlu0 %v3444, 64
      %v3532 = vpop.permute.xlu0 %3531
      %3533 = vrot.lane.b32.xlu0 %v3447, 64
      %v3534 = vpop.permute.xlu0 %3533
      %3535 = vrot.lane.b32.xlu0 %v3450, 64
      %v3536 = vpop.permute.xlu0 %3535
      %3537 = vrot.lane.b32.xlu0 %v3453, 64
      %v3538 = vpop.permute.xlu0 %3537
      %3539 = vrot.lane.b32.xlu0 %v3456, 64
      %v3540 = vpop.permute.xlu0 %3539
      %3541 = vrot.lane.b32.xlu0 %v3459, 64
      %v3542 = vpop.permute.xlu0 %3541
      %3543 = vrot.lane.b32.xlu0 %v3462, 64
      %v3544 = vpop.permute.xlu0 %3543
      %3545 = vrot.lane.b32.xlu0 %v3465, 64
      %v3546 = vpop.permute.xlu0 %3545
      %3547 = vrot.lane.b32.xlu0 %v3468, 64
      %v3548 = vpop.permute.xlu0 %3547
      %3549 = vrot.lane.b32.xlu0 %v3471, 64
      %v3550 = vpop.permute.xlu0 %3549
      %3551 = vrot.lane.b32.xlu0 %v3474, 64
      %v3552 = vpop.permute.xlu0 %3551
      %3553 = vrot.lane.b32.xlu0 %v3477, 64
      %v3554 = vpop.permute.xlu0 %3553
      %3555 = vrot.lane.b32.xlu0 %v3480, 64
      %v3556 = vpop.permute.xlu0 %3555
      %3557 = vrot.lane.b32.xlu0 %v3483, 64
      %v3558 = vpop.permute.xlu0 %3557
      %3559 = vrot.lane.b32.xlu0 %v3486, 64
      %v3560 = vpop.permute.xlu0 %3559
      %3561 = vrot.lane.b32.xlu0 %v3489, 64
      %v3562 = vpop.permute.xlu0 %3561
      %3563 = vrot.lane.b32.xlu0 %v3492, 64
      %v3564 = vpop.permute.xlu0 %3563
      %vm3601 = vcmask 585216
      %3602 = vst.msk [vmem:[#allocation2] sm:$0xf] %vm3601, %v3494
      %3603 = vst.msk [vmem:[#allocation2 + $0x4] sm:$0xf] %vm3601, %v3496
      %3604 = vst.msk [vmem:[#allocation2 + $0x8] sm:$0xf] %vm3601, %v3498
      %3605 = vst.msk [vmem:[#allocation2 + $0xc] sm:$0xf] %vm3601, %v3500
      %3606 = vst.msk [vmem:[#allocation2 + $0x10] sm:$0xf] %vm3601, %v3502
      %3607 = vst.msk [vmem:[#allocation2 + $0x14] sm:$0xf] %vm3601, %v3504
      %3608 = vst.msk [vmem:[#allocation2 + $0x18] sm:$0xf] %vm3601, %v3506
      %3609 = vst.msk [vmem:[#allocation2 + $0x1c] sm:$0xf] %vm3601, %v3508
      %3610 = vst.msk [vmem:[#allocation2 + $0x20] sm:$0xf] %vm3601, %v3510
      %3611 = vst.msk [vmem:[#allocation2 + $0x24] sm:$0xf] %vm3601, %v3512
      %3612 = vst.msk [vmem:[#allocation2 + $0x28] sm:$0xf] %vm3601, %v3514
      %3613 = vst.msk [vmem:[#allocation2 + $0x2c] sm:$0xf] %vm3601, %v3516
      %3614 = vst.msk [vmem:[#allocation2 + $0x30] sm:$0xf] %vm3601, %v3518
      %3615 = vst.msk [vmem:[#allocation2 + $0x34] sm:$0xf] %vm3601, %v3520
      %3616 = vst.msk [vmem:[#allocation2 + $0x38] sm:$0xf] %vm3601, %v3522
      %3617 = vst.msk [vmem:[#allocation2 + $0x3c] sm:$0xf] %vm3601, %v3524
      %3618 = vst.msk [vmem:[#allocation2 + $0x40] sm:$0xf] %vm3601, %v3526
      %3619 = vst.msk [vmem:[#allocation2 + $0x44] sm:$0xf] %vm3601, %v3528
      %3620 = vst.msk [vmem:[#allocation2 + $0x48] sm:$0xf] %vm3601, %v3530
      %3621 = vst.msk [vmem:[#allocation2 + $0x4c] sm:$0xf] %vm3601, %v3532
      %3622 = vst.msk [vmem:[#allocation2 + $0x50] sm:$0xf] %vm3601, %v3534
      %3623 = vst.msk [vmem:[#allocation2 + $0x54] sm:$0xf] %vm3601, %v3536
      %3624 = vst.msk [vmem:[#allocation2 + $0x58] sm:$0xf] %vm3601, %v3538
      %3625 = vst.msk [vmem:[#allocation2 + $0x5c] sm:$0xf] %vm3601, %v3540
      %3626 = vst.msk [vmem:[#allocation2 + $0x60] sm:$0xf] %vm3601, %v3542
      %3627 = vst.msk [vmem:[#allocation2 + $0x64] sm:$0xf] %vm3601, %v3544
      %3628 = vst.msk [vmem:[#allocation2 + $0x68] sm:$0xf] %vm3601, %v3546
      %3629 = vst.msk [vmem:[#allocation2 + $0x6c] sm:$0xf] %vm3601, %v3548
      %3630 = vst.msk [vmem:[#allocation2 + $0x70] sm:$0xf] %vm3601, %v3550
      %3631 = vst.msk [vmem:[#allocation2 + $0x74] sm:$0xf] %vm3601, %v3552
      %3632 = vst.msk [vmem:[#allocation2 + $0x78] sm:$0xf] %vm3601, %v3554
      %3633 = vst.msk [vmem:[#allocation2 + $0x7c] sm:$0xf] %vm3601, %v3556
      %3634 = vst.msk [vmem:[#allocation2 + $0x80] sm:$0xf] %vm3601, %v3558
      %3635 = vst.msk [vmem:[#allocation2 + $0x84] sm:$0xf] %vm3601, %v3560
      %3636 = vst.msk [vmem:[#allocation2 + $0x88] sm:$0xf] %vm3601, %v3562
      %3637 = vst.msk [vmem:[#allocation2 + $0x8c] sm:$0xf] %vm3601, %v3564
      %v3638 = vld [vmem:[#allocation2] sm:$0xf]
      %v3639 = vld [vmem:[#allocation2 + $0x4] sm:$0xf]
      %v3640 = vld [vmem:[#allocation2 + $0x8] sm:$0xf]
      %v3641 = vld [vmem:[#allocation2 + $0xc] sm:$0xf]
      %v3642 = vld [vmem:[#allocation2 + $0x10] sm:$0xf]
      %v3643 = vld [vmem:[#allocation2 + $0x14] sm:$0xf]
      %v3644 = vld [vmem:[#allocation2 + $0x18] sm:$0xf]
      %v3645 = vld [vmem:[#allocation2 + $0x1c] sm:$0xf]
      %v3646 = vld [vmem:[#allocation2 + $0x20] sm:$0xf]
      %v3647 = vld [vmem:[#allocation2 + $0x24] sm:$0xf]
      %v3648 = vld [vmem:[#allocation2 + $0x28] sm:$0xf]
      %v3649 = vld [vmem:[#allocation2 + $0x2c] sm:$0xf]
      %v3650 = vld [vmem:[#allocation2 + $0x30] sm:$0xf]
      %v3651 = vld [vmem:[#allocation2 + $0x34] sm:$0xf]
      %v3652 = vld [vmem:[#allocation2 + $0x38] sm:$0xf]
      %v3653 = vld [vmem:[#allocation2 + $0x3c] sm:$0xf]
      %v3654 = vld [vmem:[#allocation2 + $0x40] sm:$0xf]
      %v3655 = vld [vmem:[#allocation2 + $0x44] sm:$0xf]
      %v3656 = vld [vmem:[#allocation2 + $0x48] sm:$0xf]
      %v3657 = vld [vmem:[#allocation2 + $0x4c] sm:$0xf]
      %v3658 = vld [vmem:[#allocation2 + $0x50] sm:$0xf]
      %v3659 = vld [vmem:[#allocation2 + $0x54] sm:$0xf]
      %v3660 = vld [vmem:[#allocation2 + $0x58] sm:$0xf]
      %v3661 = vld [vmem:[#allocation2 + $0x5c] sm:$0xf]
      %v3662 = vld [vmem:[#allocation2 + $0x60] sm:$0xf]
      %v3663 = vld [vmem:[#allocation2 + $0x64] sm:$0xf]
      %v3664 = vld [vmem:[#allocation2 + $0x68] sm:$0xf]
      %v3665 = vld [vmem:[#allocation2 + $0x6c] sm:$0xf]
      %v3666 = vld [vmem:[#allocation2 + $0x70] sm:$0xf]
      %v3667 = vld [vmem:[#allocation2 + $0x74] sm:$0xf]
      %v3668 = vld [vmem:[#allocation2 + $0x78] sm:$0xf]
      %v3669 = vld [vmem:[#allocation2 + $0x7c] sm:$0xf]
      %v3670 = vld [vmem:[#allocation2 + $0x80] sm:$0xf]
      %v3671 = vld [vmem:[#allocation2 + $0x84] sm:$0xf]
      %v3672 = vld [vmem:[#allocation2 + $0x88] sm:$0xf]
      %v3673 = vld [vmem:[#allocation2 + $0x8c] sm:$0xf]
      %v3674 = vld [vmem:[%s1] sm:$0xff]
      %v3675 = vld [vmem:[%s1 + $0x8] sm:$0xff]
      %v3676 = vld [vmem:[%s1 + $0x10] sm:$0xff]
      %v3677 = vld [vmem:[%s1 + $0x18] sm:$0xff]
      %v3678 = vld [vmem:[%s1 + $0x20] sm:$0xff]
      %v3679 = vld [vmem:[%s1 + $0x28] sm:$0xff]
      %v3680 = vld [vmem:[%s1 + $0x30] sm:$0xff]
      %v3681 = vld [vmem:[%s1 + $0x38] sm:$0xff]
      %v3682 = vld [vmem:[%s1 + $0x40] sm:$0xff]
      %v3683 = vld [vmem:[%s1 + $0x48] sm:$0xff]
      %v3684 = vld [vmem:[%s1 + $0x50] sm:$0xff]
      %v3685 = vld [vmem:[%s1 + $0x58] sm:$0xff]
      %v3686 = vld [vmem:[%s1 + $0x60] sm:$0xff]
      %v3687 = vld [vmem:[%s1 + $0x68] sm:$0xff]
      %v3688 = vld [vmem:[%s1 + $0x70] sm:$0xff]
      %v3689 = vld [vmem:[%s1 + $0x78] sm:$0xff]
      %v3690 = vld [vmem:[%s2] sm:$0x3]
      %v3692 = vlaneseq
      %v3693 = vshrl.u32 %v3692, 7
      %v3694 = vsub.s32 0, %v3693
      %v3695 = vrot.slane %v3690, %v3694
      %v3696 = vlaneseq
      %v3697 = vshrl.u32 %v3696, 7
      %v3698 = vsub.s32 1, %v3697
      %v3699 = vrot.slane %v3690, %v3698
      %v3738 = vunpack.c.l.b16 %v3638
      %v3739 = vunpack.c.l.b16 %v3639
      %v3740 = vunpack.c.l.b16 %v3640
      %v3741 = vunpack.c.l.b16 %v3641
      %v3742 = vunpack.c.l.b16 %v3642
      %v3743 = vunpack.c.l.b16 %v3643
      %v3744 = vunpack.c.l.b16 %v3644
      %v3745 = vunpack.c.l.b16 %v3645
      %v3746 = vunpack.c.l.b16 %v3646
      %v3747 = vunpack.c.l.b16 %v3647
      %v3748 = vunpack.c.l.b16 %v3648
      %v3749 = vunpack.c.l.b16 %v3649
      %v3750 = vunpack.c.l.b16 %v3650
      %v3751 = vunpack.c.l.b16 %v3651
      %v3752 = vunpack.c.l.b16 %v3652
      %v3753 = vunpack.c.l.b16 %v3653
      %v3754 = vunpack.c.l.b16 %v3654
      %v3755 = vunpack.c.l.b16 %v3655
      %v3756 = vunpack.c.l.b16 %v3656
      %v3757 = vunpack.c.l.b16 %v3657
      %v3758 = vunpack.c.l.b16 %v3658
      %v3759 = vunpack.c.l.b16 %v3659
      %v3760 = vunpack.c.l.b16 %v3660
      %v3761 = vunpack.c.l.b16 %v3661
      %v3762 = vunpack.c.l.b16 %v3662
      %v3763 = vunpack.c.l.b16 %v3663
      %v3764 = vunpack.c.l.b16 %v3664
      %v3765 = vunpack.c.l.b16 %v3665
      %v3766 = vunpack.c.l.b16 %v3666
      %v3767 = vunpack.c.l.b16 %v3667
      %v3768 = vunpack.c.l.b16 %v3668
      %v3769 = vunpack.c.l.b16 %v3669
      %v3770 = vunpack.c.l.b16 %v3670
      %v3771 = vunpack.c.l.b16 %v3671
      %v3772 = vunpack.c.l.b16 %v3672
      %v3773 = vunpack.c.l.b16 %v3673
      %v3774 = vpack.c.b16 %v3739, %v3738
      %v3775 = vpack.c.b16 %v3741, %v3740
      %v3776 = vpack.c.b16 %v3743, %v3742
      %v3777 = vpack.c.b16 %v3745, %v3744
      %v3778 = vpack.c.b16 %v3747, %v3746
      %v3779 = vpack.c.b16 %v3749, %v3748
      %v3780 = vpack.c.b16 %v3751, %v3750
      %v3781 = vpack.c.b16 %v3753, %v3752
      %v3782 = vpack.c.b16 %v3755, %v3754
      %v3783 = vpack.c.b16 %v3757, %v3756
      %v3784 = vpack.c.b16 %v3759, %v3758
      %v3785 = vpack.c.b16 %v3761, %v3760
      %v3786 = vpack.c.b16 %v3763, %v3762
      %v3787 = vpack.c.b16 %v3765, %v3764
      %v3788 = vpack.c.b16 %v3767, %v3766
      %v3789 = vpack.c.b16 %v3769, %v3768
      %v3790 = vpack.c.b16 %v3771, %v3770
      %v3791 = vpack.c.b16 %v3773, %v3772
      %v3826 = vunpack.c.l.b16 %v3674
      %v3827 = vunpack.c.h.b16 %v3674
      %v3828 = vunpack.c.l.b16 %v3675
      %v3829 = vunpack.c.h.b16 %v3675
      %v3830 = vunpack.c.l.b16 %v3676
      %v3831 = vunpack.c.h.b16 %v3676
      %v3832 = vunpack.c.l.b16 %v3677
      %v3833 = vunpack.c.h.b16 %v3677
      %v3834 = vunpack.c.l.b16 %v3678
      %v3835 = vunpack.c.h.b16 %v3678
      %v3836 = vunpack.c.l.b16 %v3679
      %v3837 = vunpack.c.h.b16 %v3679
      %v3838 = vunpack.c.l.b16 %v3680
      %v3839 = vunpack.c.h.b16 %v3680
      %v3840 = vunpack.c.l.b16 %v3681
      %v3841 = vunpack.c.h.b16 %v3681
      %v3842 = vunpack.c.l.b16 %v3682
      %v3843 = vunpack.c.h.b16 %v3682
      %v3844 = vunpack.c.l.b16 %v3683
      %v3845 = vunpack.c.h.b16 %v3683
      %v3846 = vunpack.c.l.b16 %v3684
      %v3847 = vunpack.c.h.b16 %v3684
      %v3848 = vunpack.c.l.b16 %v3685
      %v3849 = vunpack.c.h.b16 %v3685
      %v3850 = vunpack.c.l.b16 %v3686
      %v3851 = vunpack.c.h.b16 %v3686
      %v3852 = vunpack.c.l.b16 %v3687
      %v3853 = vunpack.c.h.b16 %v3687
      %v3854 = vunpack.c.l.b16 %v3688
      %v3855 = vunpack.c.h.b16 %v3688
      %v3856 = vunpack.c.l.b16 %v3689
      %v3857 = vunpack.c.h.b16 %v3689
      %v3858 = vpack.c.b16 %v3828, %v3826
      %v3859 = vpack.c.b16 %v3829, %v3827
      %v3860 = vpack.c.b16 %v3832, %v3830
      %v3861 = vpack.c.b16 %v3833, %v3831
      %v3862 = vpack.c.b16 %v3836, %v3834
      %v3863 = vpack.c.b16 %v3837, %v3835
      %v3864 = vpack.c.b16 %v3840, %v3838
      %v3865 = vpack.c.b16 %v3841, %v3839
      %v3866 = vpack.c.b16 %v3844, %v3842
      %v3867 = vpack.c.b16 %v3845, %v3843
      %v3868 = vpack.c.b16 %v3848, %v3846
      %v3869 = vpack.c.b16 %v3849, %v3847
      %v3870 = vpack.c.b16 %v3852, %v3850
      %v3871 = vpack.c.b16 %v3853, %v3851
      %v3872 = vpack.c.b16 %v3856, %v3854
      %v3873 = vpack.c.b16 %v3857, %v3855
      %3890 = vmatprep.subr.bf16.mxu0 %v3873
      %3891 = vmatpush1.bf16.msra.mxu0 %v3872
      %3892 = vmatprep.subr.bf16.mxu0 %v3871
      %3893 = vmatpush1.bf16.msra.mxu0 %v3870
      %3894 = vmatprep.subr.bf16.mxu0 %v3869
      %3895 = vmatpush1.bf16.msra.mxu0 %v3868
      %3896 = vmatprep.subr.bf16.mxu0 %v3867
      %3897 = vmatpush1.bf16.msra.mxu0 %v3866
      %3898 = vmatprep.subr.bf16.mxu0 %v3865
      %3899 = vmatpush1.bf16.msra.mxu0 %v3864
      %3900 = vmatprep.subr.bf16.mxu0 %v3863
      %3901 = vmatpush1.bf16.msra.mxu0 %v3862
      %3902 = vmatprep.subr.bf16.mxu0 %v3861
      %3903 = vmatpush1.bf16.msra.mxu0 %v3860
      %3904 = vmatprep.subr.bf16.mxu0 %v3859
      %3905 = vmatpush1.bf16.msra.mxu0 %v3858
      %3906 = vmatprep.subr.bf16.mxu0 0
      %3907 = vmatpush2.bf16.msra.mxu0 0
      %3908 = vmatprep.subr.bf16.mxu0 0
      %3909 = vmatpush2.bf16.msra.mxu0 0
      %3910 = vmatprep.subr.bf16.mxu0 0
      %3911 = vmatpush2.bf16.msra.mxu0 0
      %3912 = vmatprep.subr.bf16.mxu0 0
      %3913 = vmatpush2.bf16.msra.mxu0 0
      %3914 = vmatprep.subr.bf16.mxu0 0
      %3915 = vmatpush2.bf16.msra.mxu0 0
      %3916 = vmatprep.subr.bf16.mxu0 0
      %3917 = vmatpush2.bf16.msra.mxu0 0
      %3918 = vmatprep.subr.bf16.mxu0 0
      %3919 = vmatpush2.bf16.msra.mxu0 0
      %3920 = vmatprep.subr.bf16.mxu0 0
      %3921 = vmatpush2.bf16.msra.mxu0 0
      %3922 = vmatprep.mubr.bf16.mxu0 0
      %3923 = vmatmul.mubr.bf16.gmra.mxu0 %v3774
      %v3924 = vpop.f32.mrf.mxu0
      %v3925 = vadd.f32 %v3695, %v3924
      %v3926 = vpop.f32.mrf.mxu0
      %v3927 = vadd.f32 %v3699, %v3926
      %v3928 = vpop.f32.mrf.mxu0
      %v3929 = vadd.f32 %v3695, %v3928
      %v3930 = vpop.f32.mrf.mxu0
      %v3931 = vadd.f32 %v3699, %v3930
      %3932 = vmatprep.mubr.bf16.mxu0 0
      %3933 = vmatmul.mubr.bf16.gmra.mxu0 %v3775
      %v3934 = vpop.f32.mrf.mxu0
      %v3935 = vadd.f32 %v3695, %v3934
      %v3936 = vpop.f32.mrf.mxu0
      %v3937 = vadd.f32 %v3699, %v3936
      %v3938 = vpop.f32.mrf.mxu0
      %v3939 = vadd.f32 %v3695, %v3938
      %v3940 = vpop.f32.mrf.mxu0
      %v3941 = vadd.f32 %v3699, %v3940
      %3942 = vmatprep.mubr.bf16.mxu0 0
      %3943 = vmatmul.mubr.bf16.gmra.mxu0 %v3776
      %v3944 = vpop.f32.mrf.mxu0
      %v3945 = vadd.f32 %v3695, %v3944
      %v3946 = vpop.f32.mrf.mxu0
      %v3947 = vadd.f32 %v3699, %v3946
      %v3948 = vpop.f32.mrf.mxu0
      %v3949 = vadd.f32 %v3695, %v3948
      %v3950 = vpop.f32.mrf.mxu0
      %v3951 = vadd.f32 %v3699, %v3950
      %3952 = vmatprep.mubr.bf16.mxu0 0
      %3953 = vmatmul.mubr.bf16.gmra.mxu0 %v3777
      %v3954 = vpop.f32.mrf.mxu0
      %v3955 = vadd.f32 %v3695, %v3954
      %v3956 = vpop.f32.mrf.mxu0
      %v3957 = vadd.f32 %v3699, %v3956
      %v3958 = vpop.f32.mrf.mxu0
      %v3959 = vadd.f32 %v3695, %v3958
      %v3960 = vpop.f32.mrf.mxu0
      %v3961 = vadd.f32 %v3699, %v3960
      %3962 = vmatprep.mubr.bf16.mxu0 0
      %3963 = vmatmul.mubr.bf16.gmra.mxu0 %v3778
      %v3964 = vpop.f32.mrf.mxu0
      %v3965 = vadd.f32 %v3695, %v3964
      %v3966 = vpop.f32.mrf.mxu0
      %v3967 = vadd.f32 %v3699, %v3966
      %v3968 = vpop.f32.mrf.mxu0
      %v3969 = vadd.f32 %v3695, %v3968
      %v3970 = vpop.f32.mrf.mxu0
      %v3971 = vadd.f32 %v3699, %v3970
      %3972 = vmatprep.mubr.bf16.mxu0 0
      %3973 = vmatmul.mubr.bf16.gmra.mxu0 %v3779
      %v3974 = vpop.f32.mrf.mxu0
      %v3975 = vadd.f32 %v3695, %v3974
      %v3976 = vpop.f32.mrf.mxu0
      %v3977 = vadd.f32 %v3699, %v3976
      %v3978 = vpop.f32.mrf.mxu0
      %v3979 = vadd.f32 %v3695, %v3978
      %v3980 = vpop.f32.mrf.mxu0
      %v3981 = vadd.f32 %v3699, %v3980
      %3982 = vmatprep.mubr.bf16.mxu0 0
      %3983 = vmatmul.mubr.bf16.gmra.mxu0 %v3780
      %v3984 = vpop.f32.mrf.mxu0
      %v3985 = vadd.f32 %v3695, %v3984
      %v3986 = vpop.f32.mrf.mxu0
      %v3987 = vadd.f32 %v3699, %v3986
      %v3988 = vpop.f32.mrf.mxu0
      %v3989 = vadd.f32 %v3695, %v3988
      %v3990 = vpop.f32.mrf.mxu0
      %v3991 = vadd.f32 %v3699, %v3990
      %3992 = vmatprep.mubr.bf16.mxu0 0
      %3993 = vmatmul.mubr.bf16.gmra.mxu0 %v3781
      %v3994 = vpop.f32.mrf.mxu0
      %v3995 = vadd.f32 %v3695, %v3994
      %v3996 = vpop.f32.mrf.mxu0
      %v3997 = vadd.f32 %v3699, %v3996
      %v3998 = vpop.f32.mrf.mxu0
      %v3999 = vadd.f32 %v3695, %v3998
      %v4000 = vpop.f32.mrf.mxu0
      %v4001 = vadd.f32 %v3699, %v4000
      %4002 = vmatprep.mubr.bf16.mxu0 0
      %4003 = vmatmul.mubr.bf16.gmra.mxu0 %v3782
      %v4004 = vpop.f32.mrf.mxu0
      %v4005 = vadd.f32 %v3695, %v4004
      %v4006 = vpop.f32.mrf.mxu0
      %v4007 = vadd.f32 %v3699, %v4006
      %v4008 = vpop.f32.mrf.mxu0
      %v4009 = vadd.f32 %v3695, %v4008
      %v4010 = vpop.f32.mrf.mxu0
      %v4011 = vadd.f32 %v3699, %v4010
      %4012 = vmatprep.mubr.bf16.mxu0 0
      %4013 = vmatmul.mubr.bf16.gmra.mxu0 %v3783
      %v4014 = vpop.f32.mrf.mxu0
      %v4015 = vadd.f32 %v3695, %v4014
      %v4016 = vpop.f32.mrf.mxu0
      %v4017 = vadd.f32 %v3699, %v4016
      %v4018 = vpop.f32.mrf.mxu0
      %v4019 = vadd.f32 %v3695, %v4018
      %v4020 = vpop.f32.mrf.mxu0
      %v4021 = vadd.f32 %v3699, %v4020
      %4022 = vmatprep.mubr.bf16.mxu0 0
      %4023 = vmatmul.mubr.bf16.gmra.mxu0 %v3784
      %v4024 = vpop.f32.mrf.mxu0
      %v4025 = vadd.f32 %v3695, %v4024
      %v4026 = vpop.f32.mrf.mxu0
      %v4027 = vadd.f32 %v3699, %v4026
      %v4028 = vpop.f32.mrf.mxu0
      %v4029 = vadd.f32 %v3695, %v4028
      %v4030 = vpop.f32.mrf.mxu0
      %v4031 = vadd.f32 %v3699, %v4030
      %4032 = vmatprep.mubr.bf16.mxu0 0
      %4033 = vmatmul.mubr.bf16.gmra.mxu0 %v3785
      %v4034 = vpop.f32.mrf.mxu0
      %v4035 = vadd.f32 %v3695, %v4034
      %v4036 = vpop.f32.mrf.mxu0
      %v4037 = vadd.f32 %v3699, %v4036
      %v4038 = vpop.f32.mrf.mxu0
      %v4039 = vadd.f32 %v3695, %v4038
      %v4040 = vpop.f32.mrf.mxu0
      %v4041 = vadd.f32 %v3699, %v4040
      %4042 = vmatprep.mubr.bf16.mxu0 0
      %4043 = vmatmul.mubr.bf16.gmra.mxu0 %v3786
      %v4044 = vpop.f32.mrf.mxu0
      %v4045 = vadd.f32 %v3695, %v4044
      %v4046 = vpop.f32.mrf.mxu0
      %v4047 = vadd.f32 %v3699, %v4046
      %v4048 = vpop.f32.mrf.mxu0
      %v4049 = vadd.f32 %v3695, %v4048
      %v4050 = vpop.f32.mrf.mxu0
      %v4051 = vadd.f32 %v3699, %v4050
      %4052 = vmatprep.mubr.bf16.mxu0 0
      %4053 = vmatmul.mubr.bf16.gmra.mxu0 %v3787
      %v4054 = vpop.f32.mrf.mxu0
      %v4055 = vadd.f32 %v3695, %v4054
      %v4056 = vpop.f32.mrf.mxu0
      %v4057 = vadd.f32 %v3699, %v4056
      %v4058 = vpop.f32.mrf.mxu0
      %v4059 = vadd.f32 %v3695, %v4058
      %v4060 = vpop.f32.mrf.mxu0
      %v4061 = vadd.f32 %v3699, %v4060
      %4062 = vmatprep.mubr.bf16.mxu0 0
      %4063 = vmatmul.mubr.bf16.gmra.mxu0 %v3788
      %v4064 = vpop.f32.mrf.mxu0
      %v4065 = vadd.f32 %v3695, %v4064
      %v4066 = vpop.f32.mrf.mxu0
      %v4067 = vadd.f32 %v3699, %v4066
      %v4068 = vpop.f32.mrf.mxu0
      %v4069 = vadd.f32 %v3695, %v4068
      %v4070 = vpop.f32.mrf.mxu0
      %v4071 = vadd.f32 %v3699, %v4070
      %4072 = vmatprep.mubr.bf16.mxu0 0
      %4073 = vmatmul.mubr.bf16.gmra.mxu0 %v3789
      %v4074 = vpop.f32.mrf.mxu0
      %v4075 = vadd.f32 %v3695, %v4074
      %v4076 = vpop.f32.mrf.mxu0
      %v4077 = vadd.f32 %v3699, %v4076
      %v4078 = vpop.f32.mrf.mxu0
      %v4079 = vadd.f32 %v3695, %v4078
      %v4080 = vpop.f32.mrf.mxu0
      %v4081 = vadd.f32 %v3699, %v4080
      %4082 = vmatprep.mubr.bf16.mxu0 0
      %4083 = vmatmul.mubr.bf16.gmra.mxu0 %v3790
      %v4084 = vpop.f32.mrf.mxu0
      %v4085 = vadd.f32 %v3695, %v4084
      %v4086 = vpop.f32.mrf.mxu0
      %v4087 = vadd.f32 %v3699, %v4086
      %v4088 = vpop.f32.mrf.mxu0
      %v4089 = vadd.f32 %v3695, %v4088
      %v4090 = vpop.f32.mrf.mxu0
      %v4091 = vadd.f32 %v3699, %v4090
      %4092 = vmatprep.mubr.bf16.mxu0 0
      %4093 = vmatmul.mubr.bf16.gmra.mxu0 %v3791
      %v4094 = vpop.f32.mrf.mxu0
      %v4095 = vadd.f32 %v3695, %v4094
      %v4096 = vpop.f32.mrf.mxu0
      %v4097 = vadd.f32 %v3699, %v4096
      %v4098 = vpop.f32.mrf.mxu0
      %v4099 = vadd.f32 %v3695, %v4098
      %v4100 = vpop.f32.mrf.mxu0
      %v4101 = vadd.f32 %v3699, %v4100
      %4102 = vdwg.mxu0
      %v4103 = vmax.f32 %v3925, 0.0
      %v4104 = vmax.f32 %v3927, 0.0
      %v4105 = vmax.f32 %v3929, 0.0
      %v4106 = vmax.f32 %v3931, 0.0
      %v4107 = vmax.f32 %v3935, 0.0
      %v4108 = vmax.f32 %v3937, 0.0
      %v4109 = vmax.f32 %v3939, 0.0
      %v4110 = vmax.f32 %v3941, 0.0
      %v4111 = vmax.f32 %v3945, 0.0
      %v4112 = vmax.f32 %v3947, 0.0
      %v4113 = vmax.f32 %v3949, 0.0
      %v4114 = vmax.f32 %v3951, 0.0
      %v4115 = vmax.f32 %v3955, 0.0
      %v4116 = vmax.f32 %v3957, 0.0
      %v4117 = vmax.f32 %v3959, 0.0
      %v4118 = vmax.f32 %v3961, 0.0
      %v4119 = vmax.f32 %v3965, 0.0
      %v4120 = vmax.f32 %v3967, 0.0
      %v4121 = vmax.f32 %v3969, 0.0
      %v4122 = vmax.f32 %v3971, 0.0
      %v4123 = vmax.f32 %v3975, 0.0
      %v4124 = vmax.f32 %v3977, 0.0
      %v4125 = vmax.f32 %v3979, 0.0
      %v4126 = vmax.f32 %v3981, 0.0
      %v4127 = vmax.f32 %v3985, 0.0
      %v4128 = vmax.f32 %v3987, 0.0
      %v4129 = vmax.f32 %v3989, 0.0
      %v4130 = vmax.f32 %v3991, 0.0
      %v4131 = vmax.f32 %v3995, 0.0
      %v4132 = vmax.f32 %v3997, 0.0
      %v4133 = vmax.f32 %v3999, 0.0
      %v4134 = vmax.f32 %v4001, 0.0
      %v4135 = vmax.f32 %v4005, 0.0
      %v4136 = vmax.f32 %v4007, 0.0
      %v4137 = vmax.f32 %v4009, 0.0
      %v4138 = vmax.f32 %v4011, 0.0
      %v4139 = vmax.f32 %v4015, 0.0
      %v4140 = vmax.f32 %v4017, 0.0
      %v4141 = vmax.f32 %v4019, 0.0
      %v4142 = vmax.f32 %v4021, 0.0
      %v4143 = vmax.f32 %v4025, 0.0
      %v4144 = vmax.f32 %v4027, 0.0
      %v4145 = vmax.f32 %v4029, 0.0
      %v4146 = vmax.f32 %v4031, 0.0
      %v4147 = vmax.f32 %v4035, 0.0
      %v4148 = vmax.f32 %v4037, 0.0
      %v4149 = vmax.f32 %v4039, 0.0
      %v4150 = vmax.f32 %v4041, 0.0
      %v4151 = vmax.f32 %v4045, 0.0
      %v4152 = vmax.f32 %v4047, 0.0
      %v4153 = vmax.f32 %v4049, 0.0
      %v4154 = vmax.f32 %v4051, 0.0
      %v4155 = vmax.f32 %v4055, 0.0
      %v4156 = vmax.f32 %v4057, 0.0
      %v4157 = vmax.f32 %v4059, 0.0
      %v4158 = vmax.f32 %v4061, 0.0
      %v4159 = vmax.f32 %v4065, 0.0
      %v4160 = vmax.f32 %v4067, 0.0
      %v4161 = vmax.f32 %v4069, 0.0
      %v4162 = vmax.f32 %v4071, 0.0
      %v4163 = vmax.f32 %v4075, 0.0
      %v4164 = vmax.f32 %v4077, 0.0
      %v4165 = vmax.f32 %v4079, 0.0
      %v4166 = vmax.f32 %v4081, 0.0
      %v4167 = vmax.f32 %v4085, 0.0
      %v4168 = vmax.f32 %v4087, 0.0
      %v4169 = vmax.f32 %v4089, 0.0
      %v4170 = vmax.f32 %v4091, 0.0
      %v4171 = vmax.f32 %v4095, 0.0
      %v4172 = vmax.f32 %v4097, 0.0
      %v4173 = vmax.f32 %v4099, 0.0
      %v4174 = vmax.f32 %v4101, 0.0
      %v4175 = vlaneseq
      %v4176 = vand.u32 %v4175, 127
      %v4177 = vadd.s32 %v4176, 128
      %v4178 = vadd.s32 %v4176, 256
      %vm4179 = vcmp.lt.s32.totalorder %v4176, 0
      %v4180 = vsub.s32 0, %v4176
      %v4181 = vsel %vm4179, %v4180, %v4176
      %v4182 = vmul.u32.u64.compose %v4181, 3817748708
      %v4183 = vextract.low.u32 %v4182
      %v4184 = vextract.high.u32 %v4182
      %v4185 = vshrl.u32 %v4184, 4
      %v4186 = vmul.u32 %v4185, 18
      %v4187 = vsub.s32 %v4181, %v4186
      %v4188 = vsub.s32 0, %v4187
      %v4189 = vsel %vm4179, %v4188, %v4187
      %vm4190 = vcmp.lt.s32.totalorder %v4177, 0
      %v4191 = vsub.s32 0, %v4177
      %v4192 = vsel %vm4190, %v4191, %v4177
      %v4193 = vmul.u32.u64.compose %v4192, 3817748708
      %v4194 = vextract.low.u32 %v4193
      %v4195 = vextract.high.u32 %v4193
      %v4196 = vshrl.u32 %v4195, 4
      %v4197 = vmul.u32 %v4196, 18
      %v4198 = vsub.s32 %v4192, %v4197
      %v4199 = vsub.s32 0, %v4198
      %v4200 = vsel %vm4190, %v4199, %v4198
      %vm4201 = vcmp.lt.s32.totalorder %v4178, 0
      %v4202 = vsub.s32 0, %v4178
      %v4203 = vsel %vm4201, %v4202, %v4178
      %v4204 = vmul.u32.u64.compose %v4203, 3817748708
      %v4205 = vextract.low.u32 %v4204
      %v4206 = vextract.high.u32 %v4204
      %v4207 = vshrl.u32 %v4206, 4
      %v4208 = vmul.u32 %v4207, 18
      %v4209 = vsub.s32 %v4203, %v4208
      %v4210 = vsub.s32 0, %v4209
      %v4211 = vsel %vm4201, %v4210, %v4209
      %vm4212 = vcmp.ne.s32.totalorder %v4189, 0
      %vm4213 = vcmp.ne.s32.totalorder %v4200, 0
      %vm4214 = vcmp.ne.s32.totalorder %v4211, 0
      %vm4215 = vcmp.lt.s32.totalorder %v4189, 0
      %vm4216 = vcmp.lt.s32.totalorder %v4200, 0
      %vm4217 = vcmp.lt.s32.totalorder %v4211, 0
      %vm4218 = vmand %vm4215, %vm4212
      %vm4219 = vmand %vm4216, %vm4213
      %vm4220 = vmand %vm4217, %vm4214
      %v4221 = vadd.s32 %v4189, 18
      %v4222 = vadd.s32 %v4200, 18
      %v4223 = vadd.s32 %v4211, 18
      %v4224 = vsel %vm4218, %v4221, %v4189
      %v4225 = vsel %vm4219, %v4222, %v4200
      %v4226 = vsel %vm4220, %v4223, %v4211
      %vm4227 = vcmp.lt.s32.totalorder %v4224, 16
      %vm4228 = vcmp.lt.s32.totalorder %v4225, 16
      %vm4229 = vcmp.lt.s32.totalorder %v4226, 16
      %v4230 = vsel %vm4227, 0.00390625, 0.0
      %v4231 = vsel %vm4228, 0.00390625, 0.0
      %v4232 = vsel %vm4229, 0.00390625, 0.0
      %vm4233 = vcmask 261120
      %v4235 = vsel %vm4233, %v4232, 0
      %4237 = vmatprep.subr.mxu0 %v4134
      %4238 = vmatpush1.msra.mxu0 %v4133
      %4239 = vmatprep.subr.mxu0 %v4132
      %4240 = vmatpush1.msra.mxu0 %v4131
      %4241 = vmatprep.subr.mxu0 %v4130
      %4242 = vmatpush1.msra.mxu0 %v4129
      %4243 = vmatprep.subr.mxu0 %v4128
      %4244 = vmatpush1.msra.mxu0 %v4127
      %4245 = vmatprep.subr.mxu0 %v4126
      %4246 = vmatpush1.msra.mxu0 %v4125
      %4247 = vmatprep.subr.mxu0 %v4124
      %4248 = vmatpush1.msra.mxu0 %v4123
      %4249 = vmatprep.subr.mxu0 %v4122
      %4250 = vmatpush1.msra.mxu0 %v4121
      %4251 = vmatprep.subr.mxu0 %v4120
      %4252 = vmatpush1.msra.mxu0 %v4119
      %4253 = vmatprep.subr.mxu0 %v4118
      %4254 = vmatpush1.msra.mxu0 %v4117
      %4255 = vmatprep.subr.mxu0 %v4116
      %4256 = vmatpush1.msra.mxu0 %v4115
      %4257 = vmatprep.subr.mxu0 %v4114
      %4258 = vmatpush1.msra.mxu0 %v4113
      %4259 = vmatprep.subr.mxu0 %v4112
      %4260 = vmatpush1.msra.mxu0 %v4111
      %4261 = vmatprep.subr.mxu0 %v4110
      %4262 = vmatpush1.msra.mxu0 %v4109
      %4263 = vmatprep.subr.mxu0 %v4108
      %4264 = vmatpush1.msra.mxu0 %v4107
      %4265 = vmatprep.subr.mxu0 %v4106
      %4266 = vmatpush1.msra.mxu0 %v4105
      %4267 = vmatprep.subr.mxu0 %v4104
      %4268 = vmatpush1.msra.mxu0 %v4103
      %4269 = vmatprep.subr.mxu0 %v4166
      %4270 = vmatpush2.msra.mxu0 %v4165
      %4271 = vmatprep.subr.mxu0 %v4164
      %4272 = vmatpush2.msra.mxu0 %v4163
      %4273 = vmatprep.subr.mxu0 %v4162
      %4274 = vmatpush2.msra.mxu0 %v4161
      %4275 = vmatprep.subr.mxu0 %v4160
      %4276 = vmatpush2.msra.mxu0 %v4159
      %4277 = vmatprep.subr.mxu0 %v4158
      %4278 = vmatpush2.msra.mxu0 %v4157
      %4279 = vmatprep.subr.mxu0 %v4156
      %4280 = vmatpush2.msra.mxu0 %v4155
      %4281 = vmatprep.subr.mxu0 %v4154
      %4282 = vmatpush2.msra.mxu0 %v4153
      %4283 = vmatprep.subr.mxu0 %v4152
      %4284 = vmatpush2.msra.mxu0 %v4151
      %4285 = vmatprep.subr.mxu0 %v4150
      %4286 = vmatpush2.msra.mxu0 %v4149
      %4287 = vmatprep.subr.mxu0 %v4148
      %4288 = vmatpush2.msra.mxu0 %v4147
      %4289 = vmatprep.subr.mxu0 %v4146
      %4290 = vmatpush2.msra.mxu0 %v4145
      %4291 = vmatprep.subr.mxu0 %v4144
      %4292 = vmatpush2.msra.mxu0 %v4143
      %4293 = vmatprep.subr.mxu0 %v4142
      %4294 = vmatpush2.msra.mxu0 %v4141
      %4295 = vmatprep.subr.mxu0 %v4140
      %4296 = vmatpush2.msra.mxu0 %v4139
      %4297 = vmatprep.subr.mxu0 %v4138
      %4298 = vmatpush2.msra.mxu0 %v4137
      %4299 = vmatprep.subr.mxu0 %v4136
      %4300 = vmatpush2.msra.mxu0 %v4135
      %4301 = vmatprep.mubr.f32.mxu0 %v4231
      %4302 = vmatmul.mubr.f32.gmra.mxu0 %v4230
      %v4303 = vpop.f32.mrf.mxu0
      %v4304 = vadd.f32 0.0, %v4303
      %v4305 = vpop.f32.mrf.mxu0
      %v4306 = vadd.f32 0.0, %v4305
      %4307 = vdwg.mxu0
      %4308 = vmatprep.subr.mxu0 0.0
      %4309 = vmatpush1.msra.mxu0 0.0
      %4310 = vmatprep.subr.mxu0 0.0
      %4311 = vmatpush1.msra.mxu0 0.0
      %4312 = vmatprep.subr.mxu0 0.0
      %4313 = vmatpush1.msra.mxu0 0.0
      %4314 = vmatprep.subr.mxu0 0.0
      %4315 = vmatpush1.msra.mxu0 0.0
      %4316 = vmatprep.subr.mxu0 0.0
      %4317 = vmatpush1.msra.mxu0 0.0
      %4318 = vmatprep.subr.mxu0 0.0
      %4319 = vmatpush1.msra.mxu0 0.0
      %4320 = vmatprep.subr.mxu0 0.0
      %4321 = vmatpush1.msra.mxu0 0.0
      %4322 = vmatprep.subr.mxu0 0.0
      %4323 = vmatpush1.msra.mxu0 0.0
      %4324 = vmatprep.subr.mxu0 0.0
      %4325 = vmatpush1.msra.mxu0 0.0
      %4326 = vmatprep.subr.mxu0 0.0
      %4327 = vmatpush1.msra.mxu0 0.0
      %4328 = vmatprep.subr.mxu0 0.0
      %4329 = vmatpush1.msra.mxu0 0.0
      %4330 = vmatprep.subr.mxu0 0.0
      %4331 = vmatpush1.msra.mxu0 0.0
      %4332 = vmatprep.subr.mxu0 %v4174
      %4333 = vmatpush1.msra.mxu0 %v4173
      %4334 = vmatprep.subr.mxu0 %v4172
      %4335 = vmatpush1.msra.mxu0 %v4171
      %4336 = vmatprep.subr.mxu0 %v4170
      %4337 = vmatpush1.msra.mxu0 %v4169
      %4338 = vmatprep.subr.mxu0 %v4168
      %4339 = vmatpush1.msra.mxu0 %v4167
      %4340 = vmatprep.subr.mxu0 0.0
      %4341 = vmatpush2.msra.mxu0 0.0
      %4342 = vmatprep.subr.mxu0 0.0
      %4343 = vmatpush2.msra.mxu0 0.0
      %4344 = vmatprep.subr.mxu0 0.0
      %4345 = vmatpush2.msra.mxu0 0.0
      %4346 = vmatprep.subr.mxu0 0.0
      %4347 = vmatpush2.msra.mxu0 0.0
      %4348 = vmatprep.subr.mxu0 0.0
      %4349 = vmatpush2.msra.mxu0 0.0
      %4350 = vmatprep.subr.mxu0 0.0
      %4351 = vmatpush2.msra.mxu0 0.0
      %4352 = vmatprep.subr.mxu0 0.0
      %4353 = vmatpush2.msra.mxu0 0.0
      %4354 = vmatprep.subr.mxu0 0.0
      %4355 = vmatpush2.msra.mxu0 0.0
      %4356 = vmatprep.subr.mxu0 0.0
      %4357 = vmatpush2.msra.mxu0 0.0
      %4358 = vmatprep.subr.mxu0 0.0
      %4359 = vmatpush2.msra.mxu0 0.0
      %4360 = vmatprep.subr.mxu0 0.0
      %4361 = vmatpush2.msra.mxu0 0.0
      %4362 = vmatprep.subr.mxu0 0.0
      %4363 = vmatpush2.msra.mxu0 0.0
      %4364 = vmatprep.subr.mxu0 0.0
      %4365 = vmatpush2.msra.mxu0 0.0
      %4366 = vmatprep.subr.mxu0 0.0
      %4367 = vmatpush2.msra.mxu0 0.0
      %4368 = vmatprep.subr.mxu0 0.0
      %4369 = vmatpush2.msra.mxu0 0.0
      %4370 = vmatprep.subr.mxu0 0.0
      %4371 = vmatpush2.msra.mxu0 0.0
      %4372 = vmatprep.mubr.f32.mxu0 0.0
      %4373 = vmatmul.mubr.f32.gmra.mxu0 %v4235
      %v4374 = vpop.f32.mrf.mxu0
      %v4375 = vadd.f32 %v4304, %v4374
      %v4376 = vpop.f32.mrf.mxu0
      %v4377 = vadd.f32 %v4306, %v4376
      %4378 = vdwg.mxu0
      %v4379 = vpack.c.bf16 %v4375, %v4375
      %v4380 = vpack.c.bf16 %v4377, %v4377
      %v4381 = vld [vmem:[%s3] sm:$0xf]
      %v4382 = vld [vmem:[%s3 + $0x4] sm:$0xf]
      %v4383 = vld [vmem:[%s3 + $0x8] sm:$0xf]
      %v4384 = vld [vmem:[%s3 + $0xc] sm:$0xf]
      %v4385 = vld [vmem:[%s3 + $0x10] sm:$0xf]
      %v4386 = vld [vmem:[%s3 + $0x14] sm:$0xf]
      %v4387 = vld [vmem:[%s3 + $0x18] sm:$0xf]
      %v4388 = vld [vmem:[%s3 + $0x1c] sm:$0xf]
      %v4389 = vld [vmem:[%s3 + $0x20] sm:$0xf]
      %v4390 = vld [vmem:[%s3 + $0x24] sm:$0xf]
      %v4391 = vld [vmem:[%s3 + $0x28] sm:$0xf]
      %v4392 = vld [vmem:[%s3 + $0x2c] sm:$0xf]
      %v4393 = vld [vmem:[%s3 + $0x30] sm:$0xf]
      %v4394 = vld [vmem:[%s3 + $0x34] sm:$0xf]
      %v4395 = vld [vmem:[%s3 + $0x38] sm:$0xf]
      %v4396 = vld [vmem:[%s3 + $0x3c] sm:$0xf]
      %v4397 = vld [vmem:[%s3 + $0x40] sm:$0xf]
      %v4398 = vld [vmem:[%s3 + $0x44] sm:$0xf]
      %v4399 = vld [vmem:[%s3 + $0x48] sm:$0xf]
      %v4400 = vld [vmem:[%s3 + $0x4c] sm:$0xf]
      %v4401 = vld [vmem:[%s3 + $0x50] sm:$0xf]
      %v4402 = vld [vmem:[%s3 + $0x54] sm:$0xf]
      %v4403 = vld [vmem:[%s3 + $0x58] sm:$0xf]
      %v4404 = vld [vmem:[%s3 + $0x5c] sm:$0xf]
      %v4405 = vld [vmem:[%s3 + $0x60] sm:$0xf]
      %v4406 = vld [vmem:[%s3 + $0x64] sm:$0xf]
      %v4407 = vld [vmem:[%s3 + $0x68] sm:$0xf]
      %v4408 = vld [vmem:[%s3 + $0x6c] sm:$0xf]
      %v4409 = vld [vmem:[%s3 + $0x70] sm:$0xf]
      %v4410 = vld [vmem:[%s3 + $0x74] sm:$0xf]
      %v4411 = vld [vmem:[%s3 + $0x78] sm:$0xf]
      %v4412 = vld [vmem:[%s3 + $0x7c] sm:$0xf]
      %v4413 = vld [vmem:[%s4] sm:$0x1]
      %v4446 = vunpack.c.l.b16 %v4381
      %v4447 = vunpack.c.l.b16 %v4382
      %v4448 = vunpack.c.l.b16 %v4383
      %v4449 = vunpack.c.l.b16 %v4384
      %v4450 = vunpack.c.l.b16 %v4385
      %v4451 = vunpack.c.l.b16 %v4386
      %v4452 = vunpack.c.l.b16 %v4387
      %v4453 = vunpack.c.l.b16 %v4388
      %v4454 = vunpack.c.l.b16 %v4389
      %v4455 = vunpack.c.l.b16 %v4390
      %v4456 = vunpack.c.l.b16 %v4391
      %v4457 = vunpack.c.l.b16 %v4392
      %v4458 = vunpack.c.l.b16 %v4393
      %v4459 = vunpack.c.l.b16 %v4394
      %v4460 = vunpack.c.l.b16 %v4395
      %v4461 = vunpack.c.l.b16 %v4396
      %v4462 = vunpack.c.l.b16 %v4397
      %v4463 = vunpack.c.l.b16 %v4398
      %v4464 = vunpack.c.l.b16 %v4399
      %v4465 = vunpack.c.l.b16 %v4400
      %v4466 = vunpack.c.l.b16 %v4401
      %v4467 = vunpack.c.l.b16 %v4402
      %v4468 = vunpack.c.l.b16 %v4403
      %v4469 = vunpack.c.l.b16 %v4404
      %v4470 = vunpack.c.l.b16 %v4405
      %v4471 = vunpack.c.l.b16 %v4406
      %v4472 = vunpack.c.l.b16 %v4407
      %v4473 = vunpack.c.l.b16 %v4408
      %v4474 = vunpack.c.l.b16 %v4409
      %v4475 = vunpack.c.l.b16 %v4410
      %v4476 = vunpack.c.l.b16 %v4411
      %v4477 = vunpack.c.l.b16 %v4412
      %v4478 = vpack.c.b16 %v4447, %v4446
      %v4479 = vpack.c.b16 %v4449, %v4448
      %v4480 = vpack.c.b16 %v4451, %v4450
      %v4481 = vpack.c.b16 %v4453, %v4452
      %v4482 = vpack.c.b16 %v4455, %v4454
      %v4483 = vpack.c.b16 %v4457, %v4456
      %v4484 = vpack.c.b16 %v4459, %v4458
      %v4485 = vpack.c.b16 %v4461, %v4460
      %v4486 = vpack.c.b16 %v4463, %v4462
      %v4487 = vpack.c.b16 %v4465, %v4464
      %v4488 = vpack.c.b16 %v4467, %v4466
      %v4489 = vpack.c.b16 %v4469, %v4468
      %v4490 = vpack.c.b16 %v4471, %v4470
      %v4491 = vpack.c.b16 %v4473, %v4472
      %v4492 = vpack.c.b16 %v4475, %v4474
      %v4493 = vpack.c.b16 %v4477, %v4476
      %4510 = vmatprep.subr.bf16.mxu0 0
      %4511 = vmatpush1.bf16.msra.mxu0 %v4485
      %4512 = vmatprep.subr.bf16.mxu0 0
      %4513 = vmatpush1.bf16.msra.mxu0 %v4484
      %4514 = vmatprep.subr.bf16.mxu0 0
      %4515 = vmatpush1.bf16.msra.mxu0 %v4483
      %4516 = vmatprep.subr.bf16.mxu0 0
      %4517 = vmatpush1.bf16.msra.mxu0 %v4482
      %4518 = vmatprep.subr.bf16.mxu0 0
      %4519 = vmatpush1.bf16.msra.mxu0 %v4481
      %4520 = vmatprep.subr.bf16.mxu0 0
      %4521 = vmatpush1.bf16.msra.mxu0 %v4480
      %4522 = vmatprep.subr.bf16.mxu0 0
      %4523 = vmatpush1.bf16.msra.mxu0 %v4479
      %4524 = vmatprep.subr.bf16.mxu0 0
      %4525 = vmatpush1.bf16.msra.mxu0 %v4478
      %4526 = vmatprep.subr.bf16.mxu0 0
      %4527 = vmatpush2.bf16.msra.mxu0 %v4493
      %4528 = vmatprep.subr.bf16.mxu0 0
      %4529 = vmatpush2.bf16.msra.mxu0 %v4492
      %4530 = vmatprep.subr.bf16.mxu0 0
      %4531 = vmatpush2.bf16.msra.mxu0 %v4491
      %4532 = vmatprep.subr.bf16.mxu0 0
      %4533 = vmatpush2.bf16.msra.mxu0 %v4490
      %4534 = vmatprep.subr.bf16.mxu0 0
      %4535 = vmatpush2.bf16.msra.mxu0 %v4489
      %4536 = vmatprep.subr.bf16.mxu0 0
      %4537 = vmatpush2.bf16.msra.mxu0 %v4488
      %4538 = vmatprep.subr.bf16.mxu0 0
      %4539 = vmatpush2.bf16.msra.mxu0 %v4487
      %4540 = vmatprep.subr.bf16.mxu0 0
      %4541 = vmatpush2.bf16.msra.mxu0 %v4486
      %4542 = vmatprep.mubr.bf16.mxu0 %v4380
      %4543 = vmatmul.mubr.bf16.gmra.mxu0 %v4379
      %v4544 = vpop.f32.mrf.mxu0
      %v4545 = vadd.f32 %v4413, %v4544
      %v4546 = vpop.f32.mrf.mxu0
      %v4547 = vpop.f32.mrf.mxu0
      %v4548 = vpop.f32.mrf.mxu0
      %4549 = vdwg.mxu0
      %4550 = vst [vmem:[%s222] sm:$0x1] %v4545
      %p4551 = scmp.lt.s32.totalorder %s16, 1
      %s4552 = scalar_select %p4551, %s16, 1
      %s4553 = scalar_lea.vmem %s5, %s4552
      // Predicated region
      $region41: #{encoder_cnn_forward.1} parent=39 // pred_check
        %p4554 = pneg %p144
      $region42: #{encoder_cnn_forward.1} parent=39 // pred_check_branch
        %4556 = sbr.rel (%p4554) target = $region44
      $region43: #{encoder_cnn_forward.1} parent=39 // pred_region
        _
      $region44: #{encoder_cnn_forward.1} parent=39 // pred_fallthru
        _
    $region40: #{encoder_cnn_forward.1} parent=5 // pred_fallthru
      _
    %p4557 = scmp.le.s32.totalorder 2, %s11
    // Predicated region
    $region45: #{encoder_cnn_forward.1} parent=5 // pred_check
      %p4558 = pneg %p4557
    $region46: #{encoder_cnn_forward.1} parent=5 // pred_check_branch
      %4560 = sbr.rel (%p4558) target = $region48
    $region47: #{encoder_cnn_forward.1} parent=5 // pred_region
      %s4561 = ssub.s32 %s11, 2
      // Predicated region
      $region49: #{encoder_cnn_forward.1} parent=47 // pred_check
        %p4562 = pneg %p150
      $region50: #{encoder_cnn_forward.1} parent=47 // pred_check_branch
        %4564 = sbr.rel (%p4562) target = $region52
      $region51: #{encoder_cnn_forward.1} parent=47 // pred_region
        %p4565 = scmp.lt.s32.totalorder %s17, 1
        %s4566 = scalar_select %p4565, %s17, 1
        %s4567 = scalar_lea.vmem %s5, %s4566
      $region52: #{encoder_cnn_forward.1} parent=47 // pred_fallthru
        _
    $region48: #{encoder_cnn_forward.1} parent=5 // pred_fallthru
      _
  $region6: #{encoder_cnn_forward.1} parent=0 // loop_footer
    %s15 = sadd.s32 1, %s11
  $region7: #{encoder_cnn_forward.1} parent=0 // loop_footer_branch
    %10 = sbr.rel target = $region3
  $region8: #{encoder_cnn_forward.1} parent=0 // loop_exit
    _

</llo_original>
